<compile_context>
chip_gen: v7x
topology: tpu7x:2x2x1
jax: 0.10.0
libtpu: 0.0.40
codegen_flags: <defaults>
</compile_context>

<pallas_src>
import functools

import jax
import jax.numpy as jnp
from jax import lax
from jax.experimental import pallas as pl
from jax.experimental.pallas import tpu as pltpu

# ----------------------- small synthetic GPT-Neo config -----------------------
BATCH = 2
SEQ = 8
HIDDEN = 64
NUM_HEADS = 2
HEAD_DIM = HIDDEN // NUM_HEADS
VOCAB = 256
NUM_LAYERS = 2
MAX_POS = 32

NUM_SWITCHES = 2   # num_switches
RANK = 4           # rank
EPSILON = 1e-3     # epsilon
INIT_VAR = 1e-2    # init_var

NEG_INF = -1e9
LN_EPS = 1e-5
GELU_C = 0.7978845608028654   # sqrt(2/pi), gelu_new (tanh approximation)


# --------------------------- fused whole-model kernel ---------------------------
def _fused_model_kernel(sv_ref, ids_ref, mask_ref, wte_ref, wpe_ref,
                        ln1_g_ref, ln1_b_ref, w_qkv_ref, wo_ref, bo_ref,
                        ln2_g_ref, ln2_b_ref, w_fc_ref, b_fc_ref, w_proj_ref, b_proj_ref,
                        lnf_g_ref, lnf_b_ref, p1_ref, wlm_t_ref, p2head_ref,
                        logits_ref, loss_ref,
                        *, num_layers, num_heads, epsilon, num_switches, rank):
    b = pl.program_id(0)
    S, D = wpe_ref.shape
    V = wte_ref.shape[0]
    Dh = D // num_heads
    KR = num_switches * rank

    def ln(x, g, beta):                                   # f32 LayerNorm
        mu = jnp.mean(x, axis=-1, keepdims=True)
        var = jnp.mean(jnp.square(x - mu), axis=-1, keepdims=True)
        return (x - mu) * lax.rsqrt(var + LN_EPS) * g + beta

    def mm(a, w_bf16):                                    # bf16 MXU, f32 accumulate
        return jnp.dot(a.astype(jnp.bfloat16), w_bf16, preferred_element_type=jnp.float32)

    # --- in-kernel embedding lookup + shifted-CE labels (ids live in SMEM) ---
    pos = lax.broadcasted_iota(jnp.int32, (S, 1), 0)      # (S, 1) row index
    ids_col = jnp.zeros((S, 1), jnp.int32)
    lbl_col = jnp.zeros((S, 1), jnp.int32)                # label[t] = ids[t+1], last row unused
    for s in range(S):
        tok = ids_ref[b, s]
        ids_col = jnp.where(pos == s, tok, ids_col)
        if s >= 1:
            lbl_col = jnp.where(pos == s - 1, tok, lbl_col)
    vcol = lax.broadcasted_iota(jnp.int32, (S, V), 1)     # vocab column index, reused by CE
    onehot = (vcol == ids_col).astype(jnp.float32)        # exact f32 gather via MXU
    h = jnp.dot(onehot, wte_ref[...], preferred_element_type=jnp.float32) + wpe_ref[...]

    # combined causal + padding keep-mask (single where)
    row = lax.broadcasted_iota(jnp.int32, (S, S), 0)
    col = lax.broadcasted_iota(jnp.int32, (S, S), 1)
    keep = (col <= row) & (jnp.broadcast_to(mask_ref[0], (S, S)) > 0)

    # TODO(synk): GPT-Neo alternates global/local attention (window=256); with SEQ <= 256
    # both reduce to plain causal attention, which is what this loop implements.
    for l in range(num_layers):
        # --- attention sub-block ---
        xn = ln(h, ln1_g_ref[l], ln1_b_ref[l])
        qkv = mm(xn, w_qkv_ref[l])                        # (S, 3D) fused q/k/v (no bias)
        wo_l = wo_ref[l]                                  # (D, D) bf16
        a = jnp.broadcast_to(bo_ref[l], (S, D))           # start from out-proj bias (f32)
        for hh in range(num_heads):
            qh = qkv[:, hh * Dh:(hh + 1) * Dh]
            kh = qkv[:, D + hh * Dh:D + (hh + 1) * Dh]
            vh = qkv[:, 2 * D + hh * Dh:2 * D + (hh + 1) * Dh]
            # GPT-Neo: f32 scores, NO 1/sqrt(head_dim) scaling.
            s_ = lax.dot_general(qh, kh, (((1,), (1,)), ((), ())),
                                 preferred_element_type=jnp.float32)      # (S, S) f32
            s_ = jnp.where(keep, s_, NEG_INF)
            s_ = s_ - jnp.max(s_, axis=-1, keepdims=True)
            p = jnp.exp(s_)
            p = p / jnp.sum(p, axis=-1, keepdims=True)
            ctx = jnp.dot(p, vh, preferred_element_type=jnp.float32)      # (S, Dh) f32
            # accumulate straight into the out-projection (no head concat)
            a = a + mm(ctx, wo_l[hh * Dh:(hh + 1) * Dh, :])
        h = h + a

        # --- MLP sub-block ---
        xn = ln(h, ln2_g_ref[l], ln2_b_ref[l])
        ff = mm(xn, w_fc_ref[l]) + b_fc_ref[l]            # (S, 4D)
        ff = 0.5 * ff * (1.0 + jnp.tanh(GELU_C * (ff + 0.044715 * ff * ff * ff)))
        h = h + mm(ff, w_proj_ref[l]) + b_proj_ref[l]     # (S, D)

    # --- final LayerNorm ---
    hn = ln(h, lnf_g_ref[...], lnf_b_ref[...])            # (S, D)

    # --- Projected_Adaptor (switch): eps*sv[b,k] folded in as a per-column scale ---
    t = mm(hn, p1_ref[...])                               # (S, K*R)
    cidx = lax.broadcasted_iota(jnp.int32, (1, KR), 1)
    scale = jnp.zeros((1, KR), jnp.float32)
    for kk in range(num_switches):
        sval = sv_ref[b, kk]
        scale = jnp.where((cidx >= kk * rank) & (cidx < (kk + 1) * rank), sval, scale)
    t = t * (epsilon * scale)

    # --- tied lm_head with the adaptor's 2nd matmul folded in:
    #     logits = hn @ W^T + t_scaled @ (P2^T @ W^T) -- two independent MXU matmuls ---
    logits = mm(hn, wlm_t_ref[...]) + mm(t, p2head_ref[...])               # (S, V) f32
    logits_ref[0] = logits

    # --- fused shifted cross-entropy, reduced to a per-batch sum ---
    # NOTE: matches HF behavior — averages over ALL shifted tokens, padding included.
    m = jnp.max(logits, axis=-1, keepdims=True)
    lse = m + jnp.log(jnp.sum(jnp.exp(logits - m), axis=-1, keepdims=True))
    tgt = jnp.sum(jnp.where(vcol == lbl_col, logits, 0.0), axis=-1, keepdims=True)
    nll = lse - tgt                                       # (S, 1) per-token NLL
    loss_sum = jnp.sum(jnp.where(pos < (S - 1), nll, 0.0))
    loss_ref[...] = jnp.broadcast_to(loss_sum, (1, 1, 1))


def _rep(shape):
    """BlockSpec for a weight shared across all grid steps (full array, block index 0)."""
    zeros = (0,) * len(shape)
    return pl.BlockSpec(shape, lambda b, _z=zeros: _z)


def fused_model(params, input_ids, key_mask, switch_values):
    B, S = input_ids.shape
    D = HIDDEN
    V = params["wte"].shape[0]
    L = NUM_LAYERS
    KR = NUM_SWITCHES * RANK

    kernel = functools.partial(
        _fused_model_kernel,
        num_layers=L, num_heads=NUM_HEADS,
        epsilon=EPSILON, num_switches=NUM_SWITCHES, rank=RANK)

    in_specs = [
        pl.BlockSpec(memory_space=pltpu.MemorySpace.SMEM),      # switch_values (B, K)
        pl.BlockSpec(memory_space=pltpu.MemorySpace.SMEM),      # input_ids (B, S) int32
        pl.BlockSpec((1, 1, S), lambda b: (b, 0, 0)),           # key padding mask (B,1,S)
        _rep((V, D)),                                           # wte (f32, embedding only)
        pl.BlockSpec((S, D), lambda b: (0, 0)),                 # wpe rows 0..S-1
        _rep((L, 1, D)), _rep((L, 1, D)),                       # ln1 g/b
        _rep((L, D, 3 * D)),                                    # fused w_qkv (bf16, no bias)
        _rep((L, D, D)), _rep((L, 1, D)),                       # wo (bf16), bo (f32)
        _rep((L, 1, D)), _rep((L, 1, D)),                       # ln2 g/b
        _rep((L, D, 4 * D)), _rep((L, 1, 4 * D)),               # w_fc (bf16), b_fc
        _rep((L, 4 * D, D)), _rep((L, 1, D)),                   # w_proj (bf16), b_proj
        _rep((1, D)), _rep((1, D)),                             # ln_f g/b
        _rep((D, KR)),                                          # P1 cat (bf16)
        _rep((D, V)),                                           # lm_head^T (bf16)
        _rep((KR, V)),                                          # P2^T @ W^T folded (bf16)
    ]
    out_specs = (
        pl.BlockSpec((1, S, V), lambda b: (b, 0, 0)),           # logits
        pl.BlockSpec((1, 1, 1), lambda b: (b, 0, 0)),           # per-batch NLL sum
    )
    out_shapes = (
        jax.ShapeDtypeStruct((B, S, V), jnp.float32),
        jax.ShapeDtypeStruct((B, 1, 1), jnp.float32),
    )

    logits, loss_sums = pl.pallas_call(
        kernel,
        grid=(B,),
        out_shape=out_shapes,
        in_specs=in_specs,
        out_specs=out_specs,
        compiler_params=pltpu.CompilerParams(dimension_semantics=("parallel",)),
    )(switch_values, input_ids, key_mask,
      params["wte"], params["wpe"],
      params["ln1_g"], params["ln1_b"], params["w_qkv"],
      params["wo"], params["bo"],
      params["ln2_g"], params["ln2_b"],
      params["w_fc"], params["b_fc"], params["w_proj"], params["b_proj"],
      params["ln_f_g"], params["ln_f_b"],
      params["p1cat"], params["wlm_t"], params["p2_head"])
    return logits, loss_sums


# --------------------------------- parameters ----------------------------------
def init_params(key):
    keys = iter(jax.random.split(key, 64))

    def nrm(shape, scale=0.02):
        return (scale * jax.random.normal(next(keys), shape)).astype(jnp.float32)

    def bf(x):
        return x.astype(jnp.bfloat16)

    L, D = NUM_LAYERS, HIDDEN

    # GPT-Neo q/k/v projections have no bias; fuse them into one (D, 3D) weight.
    wq, wk, wv = nrm((L, D, D)), nrm((L, D, D)), nrm((L, D, D))
    w_qkv = jnp.concatenate([wq, wk, wv], axis=-1)                 # (L, D, 3D)

    # Projected_Adaptor ("switch") params: randn * init_var, stacked for a 2-matmul path.
    proj1 = nrm((NUM_SWITCHES, D, RANK), INIT_VAR)                 # (K, D, R)
    proj2 = nrm((NUM_SWITCHES, D, RANK), INIT_VAR)                 # (K, D, R)
    p1cat = jnp.transpose(proj1, (1, 0, 2)).reshape(D, NUM_SWITCHES * RANK)   # (D, K*R)
    p2cat_t = jnp.transpose(proj2, (0, 2, 1)).reshape(NUM_SWITCHES * RANK, D) # (K*R, D)

    wte = nrm((VOCAB, D))                                          # f32 embedding table
    wlm_t = jnp.transpose(wte)                                     # (D, V) tied lm_head^T
    p2_head = p2cat_t @ wlm_t                                      # (K*R, V) folded at init

    return {
        "wte": wte,                                                # f32 (embedding gather)
        "wpe": nrm((MAX_POS, D)),
        "ln_f_g": jnp.ones((1, D), jnp.float32),
        "ln_f_b": jnp.zeros((1, D), jnp.float32),
        "p1cat": bf(p1cat),
        "wlm_t": bf(wlm_t),
        "p2_head": bf(p2_head),
        "ln1_g": jnp.ones((L, 1, D), jnp.float32),
        "ln1_b": jnp.zeros((L, 1, D), jnp.float32),
        "w_qkv": bf(w_qkv),
        "wo": bf(nrm((L, D, D))),
        "bo": jnp.zeros((L, 1, D), jnp.float32),
        "ln2_g": jnp.ones((L, 1, D), jnp.float32),
        "ln2_b": jnp.zeros((L, 1, D), jnp.float32),
        "w_fc": bf(nrm((L, D, 4 * D))),
        "b_fc": jnp.zeros((L, 1, 4 * D), jnp.float32),
        "w_proj": bf(nrm((L, 4 * D, D))),
        "b_proj": jnp.zeros((L, 1, D), jnp.float32),
    }


# --------------------------------- forward pass ---------------------------------
def forward(params, input_ids, attention_mask, switch_values):
    """Mirrors Switching_GPTNeoModel.forward: returns (loss, logits)."""
    B, S = input_ids.shape

    key_mask = attention_mask.astype(jnp.int32).reshape(B, 1, S)
    logits, loss_sums = fused_model(params, input_ids.astype(jnp.int32), key_mask,
                                    switch_values.astype(jnp.float32))

    # final tiny reduction: mean over all B*(S-1) shifted tokens
    loss = jnp.sum(loss_sums) / float(B * (S - 1))
    return loss, logits


# ------------------------------------ main ---------------------------------------
if __name__ == "__main__":
    key = jax.random.PRNGKey(0)
    k_param, k_ids, k_sw = jax.random.split(key, 3)

    params = init_params(k_param)
    input_ids = jax.random.randint(k_ids, (BATCH, SEQ), 0, VOCAB, dtype=jnp.int32)
    attention_mask = jnp.ones((BATCH, SEQ), jnp.int32)
    switch_values = jax.random.normal(k_sw, (BATCH, NUM_SWITCHES), dtype=jnp.float32)

    loss, logits = jax.jit(forward)(params, input_ids, attention_mask, switch_values)
    jax.block_until_ready((loss, logits))
    assert logits.shape == (BATCH, SEQ, VOCAB)
    assert loss.shape == ()
    print("KERNEL_OK")
</pallas_src>

<mosaic_0001>
module attributes {stable_mosaic.version = 11 : i64} {
  func.func @_fused_model_kernel(%arg0: i32, %arg1: memref<2x2xf32, #tpu.memory_space<smem>>, %arg2: memref<2x8xi32, #tpu.memory_space<smem>>, %arg3: memref<1x1x8xi32, #tpu.memory_space<vmem>>, %arg4: memref<256x64xf32, #tpu.memory_space<vmem>>, %arg5: memref<8x64xf32, #tpu.memory_space<vmem>>, %arg6: memref<2x1x64xf32, #tpu.memory_space<vmem>>, %arg7: memref<2x1x64xf32, #tpu.memory_space<vmem>>, %arg8: memref<2x64x192xbf16, #tpu.memory_space<vmem>>, %arg9: memref<2x64x64xbf16, #tpu.memory_space<vmem>>, %arg10: memref<2x1x64xf32, #tpu.memory_space<vmem>>, %arg11: memref<2x1x64xf32, #tpu.memory_space<vmem>>, %arg12: memref<2x1x64xf32, #tpu.memory_space<vmem>>, %arg13: memref<2x64x256xbf16, #tpu.memory_space<vmem>>, %arg14: memref<2x1x256xf32, #tpu.memory_space<vmem>>, %arg15: memref<2x256x64xbf16, #tpu.memory_space<vmem>>, %arg16: memref<2x1x64xf32, #tpu.memory_space<vmem>>, %arg17: memref<1x64xf32, #tpu.memory_space<vmem>>, %arg18: memref<1x64xf32, #tpu.memory_space<vmem>>, %arg19: memref<64x8xbf16, #tpu.memory_space<vmem>>, %arg20: memref<64x256xbf16, #tpu.memory_space<vmem>>, %arg21: memref<8x256xbf16, #tpu.memory_space<vmem>>, %arg22: memref<1x8x256xf32, #tpu.memory_space<vmem>>, %arg23: memref<1x1x1xf32, #tpu.memory_space<vmem>>) attributes {dimension_semantics = [#tpu.dimension_semantics<parallel>], iteration_bounds = array<i64: 2>, scalar_prefetch = 0 : i64, scratch_operands = 0 : i64, tpu.core_type = #tpu.core_type<tc>, window_params = [{transform_indices = @transform_0, window_bounds = array<i64: 2, 2>}, {transform_indices = @transform_1, window_bounds = array<i64: 2, 8>}, {transform_indices = @transform_2, window_bounds = array<i64: 1, 1, 8>}, {pipeline_mode = #tpu.pipeline_mode<synchronous>, transform_indices = @transform_3, window_bounds = array<i64: 256, 64>}, {transform_indices = @transform_4, window_bounds = array<i64: 8, 64>}, {pipeline_mode = #tpu.pipeline_mode<synchronous>, transform_indices = @transform_5, window_bounds = array<i64: 2, 1, 64>}, {pipeline_mode = #tpu.pipeline_mode<synchronous>, transform_indices = @transform_6, window_bounds = array<i64: 2, 1, 64>}, {pipeline_mode = #tpu.pipeline_mode<synchronous>, transform_indices = @transform_7, window_bounds = array<i64: 2, 64, 192>}, {pipeline_mode = #tpu.pipeline_mode<synchronous>, transform_indices = @transform_8, window_bounds = array<i64: 2, 64, 64>}, {pipeline_mode = #tpu.pipeline_mode<synchronous>, transform_indices = @transform_9, window_bounds = array<i64: 2, 1, 64>}, {pipeline_mode = #tpu.pipeline_mode<synchronous>, transform_indices = @transform_10, window_bounds = array<i64: 2, 1, 64>}, {pipeline_mode = #tpu.pipeline_mode<synchronous>, transform_indices = @transform_11, window_bounds = array<i64: 2, 1, 64>}, {pipeline_mode = #tpu.pipeline_mode<synchronous>, transform_indices = @transform_12, window_bounds = array<i64: 2, 64, 256>}, {pipeline_mode = #tpu.pipeline_mode<synchronous>, transform_indices = @transform_13, window_bounds = array<i64: 2, 1, 256>}, {pipeline_mode = #tpu.pipeline_mode<synchronous>, transform_indices = @transform_14, window_bounds = array<i64: 2, 256, 64>}, {pipeline_mode = #tpu.pipeline_mode<synchronous>, transform_indices = @transform_15, window_bounds = array<i64: 2, 1, 64>}, {pipeline_mode = #tpu.pipeline_mode<synchronous>, transform_indices = @transform_16, window_bounds = array<i64: 1, 64>}, {pipeline_mode = #tpu.pipeline_mode<synchronous>, transform_indices = @transform_17, window_bounds = array<i64: 1, 64>}, {pipeline_mode = #tpu.pipeline_mode<synchronous>, transform_indices = @transform_18, window_bounds = array<i64: 64, 8>}, {pipeline_mode = #tpu.pipeline_mode<synchronous>, transform_indices = @transform_19, window_bounds = array<i64: 64, 256>}, {pipeline_mode = #tpu.pipeline_mode<synchronous>, transform_indices = @transform_20, window_bounds = array<i64: 8, 256>}, {transform_indices = @transform_21, window_bounds = array<i64: 1, 8, 256>}, {transform_indices = @transform_22, window_bounds = array<i64: 1, 1, 1>}]} {
    %0 = tpu.iota {dimensions = array<i32: 0>} : vector<8x1xi32>
    %c0_i32 = arith.constant 0 : i32
    %1 = vector.broadcast %c0_i32 : i32 to vector<8x1xi32>
    %c0_i32_0 = arith.constant 0 : i32
    %2 = vector.broadcast %c0_i32_0 : i32 to vector<8x1xi32>
    %3 = arith.index_cast %arg0 : i32 to index
    %c0 = arith.constant 0 : index
    %4 = memref.load %arg2[%3, %c0] : memref<2x8xi32, #tpu.memory_space<smem>>
    %c0_i32_1 = arith.constant 0 : i32
    %5 = vector.broadcast %c0_i32_1 : i32 to vector<8x1xi32>
    %6 = arith.cmpi eq, %0, %5 : vector<8x1xi32>
    %7 = vector.broadcast %4 : i32 to vector<8x1xi32>
    %8 = arith.select %6, %7, %1 : vector<8x1xi1>, vector<8x1xi32>
    %9 = arith.index_cast %arg0 : i32 to index
    %c1 = arith.constant 1 : index
    %10 = memref.load %arg2[%9, %c1] : memref<2x8xi32, #tpu.memory_space<smem>>
    %c1_i32 = arith.constant 1 : i32
    %11 = vector.broadcast %c1_i32 : i32 to vector<8x1xi32>
    %12 = arith.cmpi eq, %0, %11 : vector<8x1xi32>
    %13 = vector.broadcast %10 : i32 to vector<8x1xi32>
    %14 = arith.select %12, %13, %8 : vector<8x1xi1>, vector<8x1xi32>
    %c0_i32_2 = arith.constant 0 : i32
    %15 = vector.broadcast %c0_i32_2 : i32 to vector<8x1xi32>
    %16 = arith.cmpi eq, %0, %15 : vector<8x1xi32>
    %17 = vector.broadcast %10 : i32 to vector<8x1xi32>
    %18 = arith.select %16, %17, %2 : vector<8x1xi1>, vector<8x1xi32>
    %19 = arith.index_cast %arg0 : i32 to index
    %c2 = arith.constant 2 : index
    %20 = memref.load %arg2[%19, %c2] : memref<2x8xi32, #tpu.memory_space<smem>>
    %c2_i32 = arith.constant 2 : i32
    %21 = vector.broadcast %c2_i32 : i32 to vector<8x1xi32>
    %22 = arith.cmpi eq, %0, %21 : vector<8x1xi32>
    %23 = vector.broadcast %20 : i32 to vector<8x1xi32>
    %24 = arith.select %22, %23, %14 : vector<8x1xi1>, vector<8x1xi32>
    %c1_i32_3 = arith.constant 1 : i32
    %25 = vector.broadcast %c1_i32_3 : i32 to vector<8x1xi32>
    %26 = arith.cmpi eq, %0, %25 : vector<8x1xi32>
    %27 = vector.broadcast %20 : i32 to vector<8x1xi32>
    %28 = arith.select %26, %27, %18 : vector<8x1xi1>, vector<8x1xi32>
    %29 = arith.index_cast %arg0 : i32 to index
    %c3 = arith.constant 3 : index
    %30 = memref.load %arg2[%29, %c3] : memref<2x8xi32, #tpu.memory_space<smem>>
    %c3_i32 = arith.constant 3 : i32
    %31 = vector.broadcast %c3_i32 : i32 to vector<8x1xi32>
    %32 = arith.cmpi eq, %0, %31 : vector<8x1xi32>
    %33 = vector.broadcast %30 : i32 to vector<8x1xi32>
    %34 = arith.select %32, %33, %24 : vector<8x1xi1>, vector<8x1xi32>
    %c2_i32_4 = arith.constant 2 : i32
    %35 = vector.broadcast %c2_i32_4 : i32 to vector<8x1xi32>
    %36 = arith.cmpi eq, %0, %35 : vector<8x1xi32>
    %37 = vector.broadcast %30 : i32 to vector<8x1xi32>
    %38 = arith.select %36, %37, %28 : vector<8x1xi1>, vector<8x1xi32>
    %39 = arith.index_cast %arg0 : i32 to index
    %c4 = arith.constant 4 : index
    %40 = memref.load %arg2[%39, %c4] : memref<2x8xi32, #tpu.memory_space<smem>>
    %c4_i32 = arith.constant 4 : i32
    %41 = vector.broadcast %c4_i32 : i32 to vector<8x1xi32>
    %42 = arith.cmpi eq, %0, %41 : vector<8x1xi32>
    %43 = vector.broadcast %40 : i32 to vector<8x1xi32>
    %44 = arith.select %42, %43, %34 : vector<8x1xi1>, vector<8x1xi32>
    %c3_i32_5 = arith.constant 3 : i32
    %45 = vector.broadcast %c3_i32_5 : i32 to vector<8x1xi32>
    %46 = arith.cmpi eq, %0, %45 : vector<8x1xi32>
    %47 = vector.broadcast %40 : i32 to vector<8x1xi32>
    %48 = arith.select %46, %47, %38 : vector<8x1xi1>, vector<8x1xi32>
    %49 = arith.index_cast %arg0 : i32 to index
    %c5 = arith.constant 5 : index
    %50 = memref.load %arg2[%49, %c5] : memref<2x8xi32, #tpu.memory_space<smem>>
    %c5_i32 = arith.constant 5 : i32
    %51 = vector.broadcast %c5_i32 : i32 to vector<8x1xi32>
    %52 = arith.cmpi eq, %0, %51 : vector<8x1xi32>
    %53 = vector.broadcast %50 : i32 to vector<8x1xi32>
    %54 = arith.select %52, %53, %44 : vector<8x1xi1>, vector<8x1xi32>
    %c4_i32_6 = arith.constant 4 : i32
    %55 = vector.broadcast %c4_i32_6 : i32 to vector<8x1xi32>
    %56 = arith.cmpi eq, %0, %55 : vector<8x1xi32>
    %57 = vector.broadcast %50 : i32 to vector<8x1xi32>
    %58 = arith.select %56, %57, %48 : vector<8x1xi1>, vector<8x1xi32>
    %59 = arith.index_cast %arg0 : i32 to index
    %c6 = arith.constant 6 : index
    %60 = memref.load %arg2[%59, %c6] : memref<2x8xi32, #tpu.memory_space<smem>>
    %c6_i32 = arith.constant 6 : i32
    %61 = vector.broadcast %c6_i32 : i32 to vector<8x1xi32>
    %62 = arith.cmpi eq, %0, %61 : vector<8x1xi32>
    %63 = vector.broadcast %60 : i32 to vector<8x1xi32>
    %64 = arith.select %62, %63, %54 : vector<8x1xi1>, vector<8x1xi32>
    %c5_i32_7 = arith.constant 5 : i32
    %65 = vector.broadcast %c5_i32_7 : i32 to vector<8x1xi32>
    %66 = arith.cmpi eq, %0, %65 : vector<8x1xi32>
    %67 = vector.broadcast %60 : i32 to vector<8x1xi32>
    %68 = arith.select %66, %67, %58 : vector<8x1xi1>, vector<8x1xi32>
    %69 = arith.index_cast %arg0 : i32 to index
    %c7 = arith.constant 7 : index
    %70 = memref.load %arg2[%69, %c7] : memref<2x8xi32, #tpu.memory_space<smem>>
    %c7_i32 = arith.constant 7 : i32
    %71 = vector.broadcast %c7_i32 : i32 to vector<8x1xi32>
    %72 = arith.cmpi eq, %0, %71 : vector<8x1xi32>
    %73 = vector.broadcast %70 : i32 to vector<8x1xi32>
    %74 = arith.select %72, %73, %64 : vector<8x1xi1>, vector<8x1xi32>
    %c6_i32_8 = arith.constant 6 : i32
    %75 = vector.broadcast %c6_i32_8 : i32 to vector<8x1xi32>
    %76 = arith.cmpi eq, %0, %75 : vector<8x1xi32>
    %77 = vector.broadcast %70 : i32 to vector<8x1xi32>
    %78 = arith.select %76, %77, %68 : vector<8x1xi1>, vector<8x1xi32>
    %79 = tpu.iota {dimensions = array<i32: 1>} : vector<8x256xi32>
    %80 = vector.broadcast %74 : vector<8x1xi32> to vector<8x256xi32>
    %81 = arith.cmpi eq, %79, %80 : vector<8x256xi32>
    %82 = arith.extui %81 : vector<8x256xi1> to vector<8x256xi32>
    %83 = arith.sitofp %82 : vector<8x256xi32> to vector<8x256xf32>
    %c0_9 = arith.constant 0 : index
    %c0_10 = arith.constant 0 : index
    %84 = vector.load %arg4[%c0_9, %c0_10] : memref<256x64xf32, #tpu.memory_space<vmem>>, vector<256x64xf32>
    %cst = arith.constant dense<0.000000e+00> : vector<8x64xf32>
    %85 = tpu.matmul %83, %84, %cst {dimension_numbers = #tpu.dot_dimension_numbers<[1], [0], [0], [1], [0, 0, 1, 1], [], []>} : vector<8x256xf32>, vector<256x64xf32>, vector<8x64xf32> -> vector<8x64xf32>
    %c0_11 = arith.constant 0 : index
    %c0_12 = arith.constant 0 : index
    %86 = vector.load %arg5[%c0_11, %c0_12] : memref<8x64xf32, #tpu.memory_space<vmem>>, vector<8x64xf32>
    %87 = arith.addf %85, %86 : vector<8x64xf32>
    %88 = tpu.iota {dimensions = array<i32: 0>} : vector<8x8xi32>
    %89 = tpu.iota {dimensions = array<i32: 1>} : vector<8x8xi32>
    %90 = arith.cmpi sle, %89, %88 : vector<8x8xi32>
    %c0_13 = arith.constant 0 : index
    %c0_14 = arith.constant 0 : index
    %c0_15 = arith.constant 0 : index
    %91 = vector.load %arg3[%c0_13, %c0_14, %c0_15] : memref<1x1x8xi32, #tpu.memory_space<vmem>>, vector<1x1x8xi32>
    %92 = vector.shape_cast %91 : vector<1x1x8xi32> to vector<1x8xi32>
    %93 = vector.shape_cast %92 : vector<1x8xi32> to vector<1x8xi32>
    %94 = vector.broadcast %93 : vector<1x8xi32> to vector<8x8xi32>
    %c0_i32_16 = arith.constant 0 : i32
    %95 = vector.broadcast %c0_i32_16 : i32 to vector<8x8xi32>
    %96 = arith.cmpi sgt, %94, %95 : vector<8x8xi32>
    %97 = arith.andi %90, %96 : vector<8x8xi1>
    %c0_17 = arith.constant 0 : index
    %c0_18 = arith.constant 0 : index
    %c0_19 = arith.constant 0 : index
    %98 = vector.load %arg6[%c0_17, %c0_18, %c0_19] : memref<2x1x64xf32, #tpu.memory_space<vmem>>, vector<1x1x64xf32>
    %99 = vector.shape_cast %98 : vector<1x1x64xf32> to vector<1x64xf32>
    %c0_20 = arith.constant 0 : index
    %c0_21 = arith.constant 0 : index
    %c0_22 = arith.constant 0 : index
    %100 = vector.load %arg7[%c0_20, %c0_21, %c0_22] : memref<2x1x64xf32, #tpu.memory_space<vmem>>, vector<1x1x64xf32>
    %101 = vector.shape_cast %100 : vector<1x1x64xf32> to vector<1x64xf32>
    %cst_23 = arith.constant dense<0.000000e+00> : vector<8xf32>
    %102 = vector.multi_reduction <add>, %87, %cst_23 [1] : vector<8x64xf32> to vector<8xf32>
    %103 = vector.shape_cast %102 : vector<8xf32> to vector<8x1xf32>
    %cst_24 = arith.constant 6.400000e+01 : f32
    %104 = vector.broadcast %cst_24 : f32 to vector<8x1xf32>
    %105 = arith.divf %103, %104 : vector<8x1xf32>
    %106 = vector.broadcast %105 : vector<8x1xf32> to vector<8x64xf32>
    %107 = arith.subf %87, %106 : vector<8x64xf32>
    %108 = arith.mulf %107, %107 : vector<8x64xf32>
    %cst_25 = arith.constant dense<0.000000e+00> : vector<8xf32>
    %109 = vector.multi_reduction <add>, %108, %cst_25 [1] : vector<8x64xf32> to vector<8xf32>
    %110 = vector.shape_cast %109 : vector<8xf32> to vector<8x1xf32>
    %cst_26 = arith.constant 6.400000e+01 : f32
    %111 = vector.broadcast %cst_26 : f32 to vector<8x1xf32>
    %112 = arith.divf %110, %111 : vector<8x1xf32>
    %113 = vector.broadcast %105 : vector<8x1xf32> to vector<8x64xf32>
    %114 = arith.subf %87, %113 : vector<8x64xf32>
    %cst_27 = arith.constant 9.99999974E-6 : f32
    %115 = vector.broadcast %cst_27 : f32 to vector<8x1xf32>
    %116 = arith.addf %112, %115 : vector<8x1xf32>
    %117 = math.rsqrt %116 : vector<8x1xf32>
    %118 = vector.broadcast %117 : vector<8x1xf32> to vector<8x64xf32>
    %119 = arith.mulf %114, %118 : vector<8x64xf32>
    %120 = vector.broadcast %99 : vector<1x64xf32> to vector<8x64xf32>
    %121 = arith.mulf %119, %120 : vector<8x64xf32>
    %122 = vector.broadcast %101 : vector<1x64xf32> to vector<8x64xf32>
    %123 = arith.addf %121, %122 : vector<8x64xf32>
    %c0_28 = arith.constant 0 : index
    %c0_29 = arith.constant 0 : index
    %c0_30 = arith.constant 0 : index
    %124 = vector.load %arg8[%c0_28, %c0_29, %c0_30] : memref<2x64x192xbf16, #tpu.memory_space<vmem>>, vector<1x64x192xbf16>
    %125 = vector.shape_cast %124 : vector<1x64x192xbf16> to vector<64x192xbf16>
    %126 = arith.truncf %123 : vector<8x64xf32> to vector<8x64xbf16>
    %cst_31 = arith.constant dense<0.000000e+00> : vector<8x192xf32>
    %127 = tpu.matmul %126, %125, %cst_31 {dimension_numbers = #tpu.dot_dimension_numbers<[1], [0], [0], [1], [0, 0, 1, 1], [], []>} : vector<8x64xbf16>, vector<64x192xbf16>, vector<8x192xf32> -> vector<8x192xf32>
    %c0_32 = arith.constant 0 : index
    %c0_33 = arith.constant 0 : index
    %c0_34 = arith.constant 0 : index
    %128 = vector.load %arg9[%c0_32, %c0_33, %c0_34] : memref<2x64x64xbf16, #tpu.memory_space<vmem>>, vector<1x64x64xbf16>
    %129 = vector.shape_cast %128 : vector<1x64x64xbf16> to vector<64x64xbf16>
    %c0_35 = arith.constant 0 : index
    %c0_36 = arith.constant 0 : index
    %c0_37 = arith.constant 0 : index
    %130 = vector.load %arg10[%c0_35, %c0_36, %c0_37] : memref<2x1x64xf32, #tpu.memory_space<vmem>>, vector<1x1x64xf32>
    %131 = vector.shape_cast %130 : vector<1x1x64xf32> to vector<1x64xf32>
    %132 = vector.shape_cast %131 : vector<1x64xf32> to vector<1x64xf32>
    %133 = vector.broadcast %132 : vector<1x64xf32> to vector<8x64xf32>
    %134 = vector.extract_strided_slice %127 {offsets = [0, 0], sizes = [8, 32], strides = [1, 1]} : vector<8x192xf32> to vector<8x32xf32>
    %135 = vector.extract_strided_slice %127 {offsets = [0, 64], sizes = [8, 32], strides = [1, 1]} : vector<8x192xf32> to vector<8x32xf32>
    %136 = vector.extract_strided_slice %127 {offsets = [0, 128], sizes = [8, 32], strides = [1, 1]} : vector<8x192xf32> to vector<8x32xf32>
    %cst_38 = arith.constant dense<0.000000e+00> : vector<8x8xf32>
    %137 = tpu.matmul %134, %135, %cst_38 {dimension_numbers = #tpu.dot_dimension_numbers<[1], [1], [0], [0], [0, 0, 1, 0], [], []>} : vector<8x32xf32>, vector<8x32xf32>, vector<8x8xf32> -> vector<8x8xf32>
    %cst_39 = arith.constant -1.000000e+09 : f32
    %138 = vector.broadcast %cst_39 : f32 to vector<8x8xf32>
    %139 = arith.select %97, %137, %138 : vector<8x8xi1>, vector<8x8xf32>
    %cst_40 = arith.constant dense<0xFF800000> : vector<8xf32>
    %140 = vector.multi_reduction <maximumf>, %139, %cst_40 [1] : vector<8x8xf32> to vector<8xf32>
    %141 = vector.shape_cast %140 : vector<8xf32> to vector<8x1xf32>
    %142 = vector.broadcast %141 : vector<8x1xf32> to vector<8x8xf32>
    %143 = arith.subf %139, %142 : vector<8x8xf32>
    %144 = math.exp %143 : vector<8x8xf32>
    %cst_41 = arith.constant dense<0.000000e+00> : vector<8xf32>
    %145 = vector.multi_reduction <add>, %144, %cst_41 [1] : vector<8x8xf32> to vector<8xf32>
    %146 = vector.shape_cast %145 : vector<8xf32> to vector<8x1xf32>
    %147 = vector.broadcast %146 : vector<8x1xf32> to vector<8x8xf32>
    %148 = arith.divf %144, %147 : vector<8x8xf32>
    %cst_42 = arith.constant dense<0.000000e+00> : vector<8x32xf32>
    %149 = tpu.matmul %148, %136, %cst_42 {dimension_numbers = #tpu.dot_dimension_numbers<[1], [0], [0], [1], [0, 0, 1, 1], [], []>} : vector<8x8xf32>, vector<8x32xf32>, vector<8x32xf32> -> vector<8x32xf32>
    %150 = vector.extract_strided_slice %129 {offsets = [0, 0], sizes = [32, 64], strides = [1, 1]} : vector<64x64xbf16> to vector<32x64xbf16>
    %151 = arith.truncf %149 : vector<8x32xf32> to vector<8x32xbf16>
    %cst_43 = arith.constant dense<0.000000e+00> : vector<8x64xf32>
    %152 = tpu.matmul %151, %150, %cst_43 {dimension_numbers = #tpu.dot_dimension_numbers<[1], [0], [0], [1], [0, 0, 1, 1], [], []>} : vector<8x32xbf16>, vector<32x64xbf16>, vector<8x64xf32> -> vector<8x64xf32>
    %153 = arith.addf %133, %152 : vector<8x64xf32>
    %154 = vector.extract_strided_slice %127 {offsets = [0, 32], sizes = [8, 32], strides = [1, 1]} : vector<8x192xf32> to vector<8x32xf32>
    %155 = vector.extract_strided_slice %127 {offsets = [0, 96], sizes = [8, 32], strides = [1, 1]} : vector<8x192xf32> to vector<8x32xf32>
    %156 = vector.extract_strided_slice %127 {offsets = [0, 160], sizes = [8, 32], strides = [1, 1]} : vector<8x192xf32> to vector<8x32xf32>
    %cst_44 = arith.constant dense<0.000000e+00> : vector<8x8xf32>
    %157 = tpu.matmul %154, %155, %cst_44 {dimension_numbers = #tpu.dot_dimension_numbers<[1], [1], [0], [0], [0, 0, 1, 0], [], []>} : vector<8x32xf32>, vector<8x32xf32>, vector<8x8xf32> -> vector<8x8xf32>
    %cst_45 = arith.constant -1.000000e+09 : f32
    %158 = vector.broadcast %cst_45 : f32 to vector<8x8xf32>
    %159 = arith.select %97, %157, %158 : vector<8x8xi1>, vector<8x8xf32>
    %cst_46 = arith.constant dense<0xFF800000> : vector<8xf32>
    %160 = vector.multi_reduction <maximumf>, %159, %cst_46 [1] : vector<8x8xf32> to vector<8xf32>
    %161 = vector.shape_cast %160 : vector<8xf32> to vector<8x1xf32>
    %162 = vector.broadcast %161 : vector<8x1xf32> to vector<8x8xf32>
    %163 = arith.subf %159, %162 : vector<8x8xf32>
    %164 = math.exp %163 : vector<8x8xf32>
    %cst_47 = arith.constant dense<0.000000e+00> : vector<8xf32>
    %165 = vector.multi_reduction <add>, %164, %cst_47 [1] : vector<8x8xf32> to vector<8xf32>
    %166 = vector.shape_cast %165 : vector<8xf32> to vector<8x1xf32>
    %167 = vector.broadcast %166 : vector<8x1xf32> to vector<8x8xf32>
    %168 = arith.divf %164, %167 : vector<8x8xf32>
    %cst_48 = arith.constant dense<0.000000e+00> : vector<8x32xf32>
    %169 = tpu.matmul %168, %156, %cst_48 {dimension_numbers = #tpu.dot_dimension_numbers<[1], [0], [0], [1], [0, 0, 1, 1], [], []>} : vector<8x8xf32>, vector<8x32xf32>, vector<8x32xf32> -> vector<8x32xf32>
    %170 = vector.extract_strided_slice %129 {offsets = [32, 0], sizes = [32, 64], strides = [1, 1]} : vector<64x64xbf16> to vector<32x64xbf16>
    %171 = arith.truncf %169 : vector<8x32xf32> to vector<8x32xbf16>
    %cst_49 = arith.constant dense<0.000000e+00> : vector<8x64xf32>
    %172 = tpu.matmul %171, %170, %cst_49 {dimension_numbers = #tpu.dot_dimension_numbers<[1], [0], [0], [1], [0, 0, 1, 1], [], []>} : vector<8x32xbf16>, vector<32x64xbf16>, vector<8x64xf32> -> vector<8x64xf32>
    %173 = arith.addf %153, %172 : vector<8x64xf32>
    %174 = arith.addf %87, %173 : vector<8x64xf32>
    %c0_50 = arith.constant 0 : index
    %c0_51 = arith.constant 0 : index
    %c0_52 = arith.constant 0 : index
    %175 = vector.load %arg11[%c0_50, %c0_51, %c0_52] : memref<2x1x64xf32, #tpu.memory_space<vmem>>, vector<1x1x64xf32>
    %176 = vector.shape_cast %175 : vector<1x1x64xf32> to vector<1x64xf32>
    %c0_53 = arith.constant 0 : index
    %c0_54 = arith.constant 0 : index
    %c0_55 = arith.constant 0 : index
    %177 = vector.load %arg12[%c0_53, %c0_54, %c0_55] : memref<2x1x64xf32, #tpu.memory_space<vmem>>, vector<1x1x64xf32>
    %178 = vector.shape_cast %177 : vector<1x1x64xf32> to vector<1x64xf32>
    %cst_56 = arith.constant dense<0.000000e+00> : vector<8xf32>
    %179 = vector.multi_reduction <add>, %174, %cst_56 [1] : vector<8x64xf32> to vector<8xf32>
    %180 = vector.shape_cast %179 : vector<8xf32> to vector<8x1xf32>
    %cst_57 = arith.constant 6.400000e+01 : f32
    %181 = vector.broadcast %cst_57 : f32 to vector<8x1xf32>
    %182 = arith.divf %180, %181 : vector<8x1xf32>
    %183 = vector.broadcast %182 : vector<8x1xf32> to vector<8x64xf32>
    %184 = arith.subf %174, %183 : vector<8x64xf32>
    %185 = arith.mulf %184, %184 : vector<8x64xf32>
    %cst_58 = arith.constant dense<0.000000e+00> : vector<8xf32>
    %186 = vector.multi_reduction <add>, %185, %cst_58 [1] : vector<8x64xf32> to vector<8xf32>
    %187 = vector.shape_cast %186 : vector<8xf32> to vector<8x1xf32>
    %cst_59 = arith.constant 6.400000e+01 : f32
    %188 = vector.broadcast %cst_59 : f32 to vector<8x1xf32>
    %189 = arith.divf %187, %188 : vector<8x1xf32>
    %190 = vector.broadcast %182 : vector<8x1xf32> to vector<8x64xf32>
    %191 = arith.subf %174, %190 : vector<8x64xf32>
    %cst_60 = arith.constant 9.99999974E-6 : f32
    %192 = vector.broadcast %cst_60 : f32 to vector<8x1xf32>
    %193 = arith.addf %189, %192 : vector<8x1xf32>
    %194 = math.rsqrt %193 : vector<8x1xf32>
    %195 = vector.broadcast %194 : vector<8x1xf32> to vector<8x64xf32>
    %196 = arith.mulf %191, %195 : vector<8x64xf32>
    %197 = vector.broadcast %176 : vector<1x64xf32> to vector<8x64xf32>
    %198 = arith.mulf %196, %197 : vector<8x64xf32>
    %199 = vector.broadcast %178 : vector<1x64xf32> to vector<8x64xf32>
    %200 = arith.addf %198, %199 : vector<8x64xf32>
    %c0_61 = arith.constant 0 : index
    %c0_62 = arith.constant 0 : index
    %c0_63 = arith.constant 0 : index
    %201 = vector.load %arg13[%c0_61, %c0_62, %c0_63] : memref<2x64x256xbf16, #tpu.memory_space<vmem>>, vector<1x64x256xbf16>
    %202 = vector.shape_cast %201 : vector<1x64x256xbf16> to vector<64x256xbf16>
    %203 = arith.truncf %200 : vector<8x64xf32> to vector<8x64xbf16>
    %cst_64 = arith.constant dense<0.000000e+00> : vector<8x256xf32>
    %204 = tpu.matmul %203, %202, %cst_64 {dimension_numbers = #tpu.dot_dimension_numbers<[1], [0], [0], [1], [0, 0, 1, 1], [], []>} : vector<8x64xbf16>, vector<64x256xbf16>, vector<8x256xf32> -> vector<8x256xf32>
    %c0_65 = arith.constant 0 : index
    %c0_66 = arith.constant 0 : index
    %c0_67 = arith.constant 0 : index
    %205 = vector.load %arg14[%c0_65, %c0_66, %c0_67] : memref<2x1x256xf32, #tpu.memory_space<vmem>>, vector<1x1x256xf32>
    %206 = vector.shape_cast %205 : vector<1x1x256xf32> to vector<1x256xf32>
    %207 = vector.broadcast %206 : vector<1x256xf32> to vector<8x256xf32>
    %208 = arith.addf %204, %207 : vector<8x256xf32>
    %cst_68 = arith.constant 5.000000e-01 : f32
    %209 = vector.broadcast %cst_68 : f32 to vector<8x256xf32>
    %210 = arith.mulf %209, %208 : vector<8x256xf32>
    %cst_69 = arith.constant 4.471500e-02 : f32
    %211 = vector.broadcast %cst_69 : f32 to vector<8x256xf32>
    %212 = arith.mulf %211, %208 : vector<8x256xf32>
    %213 = arith.mulf %212, %208 : vector<8x256xf32>
    %214 = arith.mulf %213, %208 : vector<8x256xf32>
    %215 = arith.addf %208, %214 : vector<8x256xf32>
    %cst_70 = arith.constant 0.797884583 : f32
    %216 = vector.broadcast %cst_70 : f32 to vector<8x256xf32>
    %217 = arith.mulf %216, %215 : vector<8x256xf32>
    %218 = math.tanh %217 : vector<8x256xf32>
    %cst_71 = arith.constant 1.000000e+00 : f32
    %219 = vector.broadcast %cst_71 : f32 to vector<8x256xf32>
    %220 = arith.addf %219, %218 : vector<8x256xf32>
    %221 = arith.mulf %210, %220 : vector<8x256xf32>
    %c0_72 = arith.constant 0 : index
    %c0_73 = arith.constant 0 : index
    %c0_74 = arith.constant 0 : index
    %222 = vector.load %arg15[%c0_72, %c0_73, %c0_74] : memref<2x256x64xbf16, #tpu.memory_space<vmem>>, vector<1x256x64xbf16>
    %223 = vector.shape_cast %222 : vector<1x256x64xbf16> to vector<256x64xbf16>
    %224 = arith.truncf %221 : vector<8x256xf32> to vector<8x256xbf16>
    %cst_75 = arith.constant dense<0.000000e+00> : vector<8x64xf32>
    %225 = tpu.matmul %224, %223, %cst_75 {dimension_numbers = #tpu.dot_dimension_numbers<[1], [0], [0], [1], [0, 0, 1, 1], [], []>} : vector<8x256xbf16>, vector<256x64xbf16>, vector<8x64xf32> -> vector<8x64xf32>
    %226 = arith.addf %174, %225 : vector<8x64xf32>
    %c0_76 = arith.constant 0 : index
    %c0_77 = arith.constant 0 : index
    %c0_78 = arith.constant 0 : index
    %227 = vector.load %arg16[%c0_76, %c0_77, %c0_78] : memref<2x1x64xf32, #tpu.memory_space<vmem>>, vector<1x1x64xf32>
    %228 = vector.shape_cast %227 : vector<1x1x64xf32> to vector<1x64xf32>
    %229 = vector.broadcast %228 : vector<1x64xf32> to vector<8x64xf32>
    %230 = arith.addf %226, %229 : vector<8x64xf32>
    %c1_79 = arith.constant 1 : index
    %c0_80 = arith.constant 0 : index
    %c0_81 = arith.constant 0 : index
    %231 = vector.load %arg6[%c1_79, %c0_80, %c0_81] : memref<2x1x64xf32, #tpu.memory_space<vmem>>, vector<1x1x64xf32>
    %232 = vector.shape_cast %231 : vector<1x1x64xf32> to vector<1x64xf32>
    %c1_82 = arith.constant 1 : index
    %c0_83 = arith.constant 0 : index
    %c0_84 = arith.constant 0 : index
    %233 = vector.load %arg7[%c1_82, %c0_83, %c0_84] : memref<2x1x64xf32, #tpu.memory_space<vmem>>, vector<1x1x64xf32>
    %234 = vector.shape_cast %233 : vector<1x1x64xf32> to vector<1x64xf32>
    %cst_85 = arith.constant dense<0.000000e+00> : vector<8xf32>
    %235 = vector.multi_reduction <add>, %230, %cst_85 [1] : vector<8x64xf32> to vector<8xf32>
    %236 = vector.shape_cast %235 : vector<8xf32> to vector<8x1xf32>
    %cst_86 = arith.constant 6.400000e+01 : f32
    %237 = vector.broadcast %cst_86 : f32 to vector<8x1xf32>
    %238 = arith.divf %236, %237 : vector<8x1xf32>
    %239 = vector.broadcast %238 : vector<8x1xf32> to vector<8x64xf32>
    %240 = arith.subf %230, %239 : vector<8x64xf32>
    %241 = arith.mulf %240, %240 : vector<8x64xf32>
    %cst_87 = arith.constant dense<0.000000e+00> : vector<8xf32>
    %242 = vector.multi_reduction <add>, %241, %cst_87 [1] : vector<8x64xf32> to vector<8xf32>
    %243 = vector.shape_cast %242 : vector<8xf32> to vector<8x1xf32>
    %cst_88 = arith.constant 6.400000e+01 : f32
    %244 = vector.broadcast %cst_88 : f32 to vector<8x1xf32>
    %245 = arith.divf %243, %244 : vector<8x1xf32>
    %246 = vector.broadcast %238 : vector<8x1xf32> to vector<8x64xf32>
    %247 = arith.subf %230, %246 : vector<8x64xf32>
    %cst_89 = arith.constant 9.99999974E-6 : f32
    %248 = vector.broadcast %cst_89 : f32 to vector<8x1xf32>
    %249 = arith.addf %245, %248 : vector<8x1xf32>
    %250 = math.rsqrt %249 : vector<8x1xf32>
    %251 = vector.broadcast %250 : vector<8x1xf32> to vector<8x64xf32>
    %252 = arith.mulf %247, %251 : vector<8x64xf32>
    %253 = vector.broadcast %232 : vector<1x64xf32> to vector<8x64xf32>
    %254 = arith.mulf %252, %253 : vector<8x64xf32>
    %255 = vector.broadcast %234 : vector<1x64xf32> to vector<8x64xf32>
    %256 = arith.addf %254, %255 : vector<8x64xf32>
    %c1_90 = arith.constant 1 : index
    %c0_91 = arith.constant 0 : index
    %c0_92 = arith.constant 0 : index
    %257 = vector.load %arg8[%c1_90, %c0_91, %c0_92] : memref<2x64x192xbf16, #tpu.memory_space<vmem>>, vector<1x64x192xbf16>
    %258 = vector.shape_cast %257 : vector<1x64x192xbf16> to vector<64x192xbf16>
    %259 = arith.truncf %256 : vector<8x64xf32> to vector<8x64xbf16>
    %cst_93 = arith.constant dense<0.000000e+00> : vector<8x192xf32>
    %260 = tpu.matmul %259, %258, %cst_93 {dimension_numbers = #tpu.dot_dimension_numbers<[1], [0], [0], [1], [0, 0, 1, 1], [], []>} : vector<8x64xbf16>, vector<64x192xbf16>, vector<8x192xf32> -> vector<8x192xf32>
    %c1_94 = arith.constant 1 : index
    %c0_95 = arith.constant 0 : index
    %c0_96 = arith.constant 0 : index
    %261 = vector.load %arg9[%c1_94, %c0_95, %c0_96] : memref<2x64x64xbf16, #tpu.memory_space<vmem>>, vector<1x64x64xbf16>
    %262 = vector.shape_cast %261 : vector<1x64x64xbf16> to vector<64x64xbf16>
    %c1_97 = arith.constant 1 : index
    %c0_98 = arith.constant 0 : index
    %c0_99 = arith.constant 0 : index
    %263 = vector.load %arg10[%c1_97, %c0_98, %c0_99] : memref<2x1x64xf32, #tpu.memory_space<vmem>>, vector<1x1x64xf32>
    %264 = vector.shape_cast %263 : vector<1x1x64xf32> to vector<1x64xf32>
    %265 = vector.shape_cast %264 : vector<1x64xf32> to vector<1x64xf32>
    %266 = vector.broadcast %265 : vector<1x64xf32> to vector<8x64xf32>
    %267 = vector.extract_strided_slice %260 {offsets = [0, 0], sizes = [8, 32], strides = [1, 1]} : vector<8x192xf32> to vector<8x32xf32>
    %268 = vector.extract_strided_slice %260 {offsets = [0, 64], sizes = [8, 32], strides = [1, 1]} : vector<8x192xf32> to vector<8x32xf32>
    %269 = vector.extract_strided_slice %260 {offsets = [0, 128], sizes = [8, 32], strides = [1, 1]} : vector<8x192xf32> to vector<8x32xf32>
    %cst_100 = arith.constant dense<0.000000e+00> : vector<8x8xf32>
    %270 = tpu.matmul %267, %268, %cst_100 {dimension_numbers = #tpu.dot_dimension_numbers<[1], [1], [0], [0], [0, 0, 1, 0], [], []>} : vector<8x32xf32>, vector<8x32xf32>, vector<8x8xf32> -> vector<8x8xf32>
    %cst_101 = arith.constant -1.000000e+09 : f32
    %271 = vector.broadcast %cst_101 : f32 to vector<8x8xf32>
    %272 = arith.select %97, %270, %271 : vector<8x8xi1>, vector<8x8xf32>
    %cst_102 = arith.constant dense<0xFF800000> : vector<8xf32>
    %273 = vector.multi_reduction <maximumf>, %272, %cst_102 [1] : vector<8x8xf32> to vector<8xf32>
    %274 = vector.shape_cast %273 : vector<8xf32> to vector<8x1xf32>
    %275 = vector.broadcast %274 : vector<8x1xf32> to vector<8x8xf32>
    %276 = arith.subf %272, %275 : vector<8x8xf32>
    %277 = math.exp %276 : vector<8x8xf32>
    %cst_103 = arith.constant dense<0.000000e+00> : vector<8xf32>
    %278 = vector.multi_reduction <add>, %277, %cst_103 [1] : vector<8x8xf32> to vector<8xf32>
    %279 = vector.shape_cast %278 : vector<8xf32> to vector<8x1xf32>
    %280 = vector.broadcast %279 : vector<8x1xf32> to vector<8x8xf32>
    %281 = arith.divf %277, %280 : vector<8x8xf32>
    %cst_104 = arith.constant dense<0.000000e+00> : vector<8x32xf32>
    %282 = tpu.matmul %281, %269, %cst_104 {dimension_numbers = #tpu.dot_dimension_numbers<[1], [0], [0], [1], [0, 0, 1, 1], [], []>} : vector<8x8xf32>, vector<8x32xf32>, vector<8x32xf32> -> vector<8x32xf32>
    %283 = vector.extract_strided_slice %262 {offsets = [0, 0], sizes = [32, 64], strides = [1, 1]} : vector<64x64xbf16> to vector<32x64xbf16>
    %284 = arith.truncf %282 : vector<8x32xf32> to vector<8x32xbf16>
    %cst_105 = arith.constant dense<0.000000e+00> : vector<8x64xf32>
    %285 = tpu.matmul %284, %283, %cst_105 {dimension_numbers = #tpu.dot_dimension_numbers<[1], [0], [0], [1], [0, 0, 1, 1], [], []>} : vector<8x32xbf16>, vector<32x64xbf16>, vector<8x64xf32> -> vector<8x64xf32>
    %286 = arith.addf %266, %285 : vector<8x64xf32>
    %287 = vector.extract_strided_slice %260 {offsets = [0, 32], sizes = [8, 32], strides = [1, 1]} : vector<8x192xf32> to vector<8x32xf32>
    %288 = vector.extract_strided_slice %260 {offsets = [0, 96], sizes = [8, 32], strides = [1, 1]} : vector<8x192xf32> to vector<8x32xf32>
    %289 = vector.extract_strided_slice %260 {offsets = [0, 160], sizes = [8, 32], strides = [1, 1]} : vector<8x192xf32> to vector<8x32xf32>
    %cst_106 = arith.constant dense<0.000000e+00> : vector<8x8xf32>
    %290 = tpu.matmul %287, %288, %cst_106 {dimension_numbers = #tpu.dot_dimension_numbers<[1], [1], [0], [0], [0, 0, 1, 0], [], []>} : vector<8x32xf32>, vector<8x32xf32>, vector<8x8xf32> -> vector<8x8xf32>
    %cst_107 = arith.constant -1.000000e+09 : f32
    %291 = vector.broadcast %cst_107 : f32 to vector<8x8xf32>
    %292 = arith.select %97, %290, %291 : vector<8x8xi1>, vector<8x8xf32>
    %cst_108 = arith.constant dense<0xFF800000> : vector<8xf32>
    %293 = vector.multi_reduction <maximumf>, %292, %cst_108 [1] : vector<8x8xf32> to vector<8xf32>
    %294 = vector.shape_cast %293 : vector<8xf32> to vector<8x1xf32>
    %295 = vector.broadcast %294 : vector<8x1xf32> to vector<8x8xf32>
    %296 = arith.subf %292, %295 : vector<8x8xf32>
    %297 = math.exp %296 : vector<8x8xf32>
    %cst_109 = arith.constant dense<0.000000e+00> : vector<8xf32>
    %298 = vector.multi_reduction <add>, %297, %cst_109 [1] : vector<8x8xf32> to vector<8xf32>
    %299 = vector.shape_cast %298 : vector<8xf32> to vector<8x1xf32>
    %300 = vector.broadcast %299 : vector<8x1xf32> to vector<8x8xf32>
    %301 = arith.divf %297, %300 : vector<8x8xf32>
    %cst_110 = arith.constant dense<0.000000e+00> : vector<8x32xf32>
    %302 = tpu.matmul %301, %289, %cst_110 {dimension_numbers = #tpu.dot_dimension_numbers<[1], [0], [0], [1], [0, 0, 1, 1], [], []>} : vector<8x8xf32>, vector<8x32xf32>, vector<8x32xf32> -> vector<8x32xf32>
    %303 = vector.extract_strided_slice %262 {offsets = [32, 0], sizes = [32, 64], strides = [1, 1]} : vector<64x64xbf16> to vector<32x64xbf16>
    %304 = arith.truncf %302 : vector<8x32xf32> to vector<8x32xbf16>
    %cst_111 = arith.constant dense<0.000000e+00> : vector<8x64xf32>
    %305 = tpu.matmul %304, %303, %cst_111 {dimension_numbers = #tpu.dot_dimension_numbers<[1], [0], [0], [1], [0, 0, 1, 1], [], []>} : vector<8x32xbf16>, vector<32x64xbf16>, vector<8x64xf32> -> vector<8x64xf32>
    %306 = arith.addf %286, %305 : vector<8x64xf32>
    %307 = arith.addf %230, %306 : vector<8x64xf32>
    %c1_112 = arith.constant 1 : index
    %c0_113 = arith.constant 0 : index
    %c0_114 = arith.constant 0 : index
    %308 = vector.load %arg11[%c1_112, %c0_113, %c0_114] : memref<2x1x64xf32, #tpu.memory_space<vmem>>, vector<1x1x64xf32>
    %309 = vector.shape_cast %308 : vector<1x1x64xf32> to vector<1x64xf32>
    %c1_115 = arith.constant 1 : index
    %c0_116 = arith.constant 0 : index
    %c0_117 = arith.constant 0 : index
    %310 = vector.load %arg12[%c1_115, %c0_116, %c0_117] : memref<2x1x64xf32, #tpu.memory_space<vmem>>, vector<1x1x64xf32>
    %311 = vector.shape_cast %310 : vector<1x1x64xf32> to vector<1x64xf32>
    %cst_118 = arith.constant dense<0.000000e+00> : vector<8xf32>
    %312 = vector.multi_reduction <add>, %307, %cst_118 [1] : vector<8x64xf32> to vector<8xf32>
    %313 = vector.shape_cast %312 : vector<8xf32> to vector<8x1xf32>
    %cst_119 = arith.constant 6.400000e+01 : f32
    %314 = vector.broadcast %cst_119 : f32 to vector<8x1xf32>
    %315 = arith.divf %313, %314 : vector<8x1xf32>
    %316 = vector.broadcast %315 : vector<8x1xf32> to vector<8x64xf32>
    %317 = arith.subf %307, %316 : vector<8x64xf32>
    %318 = arith.mulf %317, %317 : vector<8x64xf32>
    %cst_120 = arith.constant dense<0.000000e+00> : vector<8xf32>
    %319 = vector.multi_reduction <add>, %318, %cst_120 [1] : vector<8x64xf32> to vector<8xf32>
    %320 = vector.shape_cast %319 : vector<8xf32> to vector<8x1xf32>
    %cst_121 = arith.constant 6.400000e+01 : f32
    %321 = vector.broadcast %cst_121 : f32 to vector<8x1xf32>
    %322 = arith.divf %320, %321 : vector<8x1xf32>
    %323 = vector.broadcast %315 : vector<8x1xf32> to vector<8x64xf32>
    %324 = arith.subf %307, %323 : vector<8x64xf32>
    %cst_122 = arith.constant 9.99999974E-6 : f32
    %325 = vector.broadcast %cst_122 : f32 to vector<8x1xf32>
    %326 = arith.addf %322, %325 : vector<8x1xf32>
    %327 = math.rsqrt %326 : vector<8x1xf32>
    %328 = vector.broadcast %327 : vector<8x1xf32> to vector<8x64xf32>
    %329 = arith.mulf %324, %328 : vector<8x64xf32>
    %330 = vector.broadcast %309 : vector<1x64xf32> to vector<8x64xf32>
    %331 = arith.mulf %329, %330 : vector<8x64xf32>
    %332 = vector.broadcast %311 : vector<1x64xf32> to vector<8x64xf32>
    %333 = arith.addf %331, %332 : vector<8x64xf32>
    %c1_123 = arith.constant 1 : index
    %c0_124 = arith.constant 0 : index
    %c0_125 = arith.constant 0 : index
    %334 = vector.load %arg13[%c1_123, %c0_124, %c0_125] : memref<2x64x256xbf16, #tpu.memory_space<vmem>>, vector<1x64x256xbf16>
    %335 = vector.shape_cast %334 : vector<1x64x256xbf16> to vector<64x256xbf16>
    %336 = arith.truncf %333 : vector<8x64xf32> to vector<8x64xbf16>
    %cst_126 = arith.constant dense<0.000000e+00> : vector<8x256xf32>
    %337 = tpu.matmul %336, %335, %cst_126 {dimension_numbers = #tpu.dot_dimension_numbers<[1], [0], [0], [1], [0, 0, 1, 1], [], []>} : vector<8x64xbf16>, vector<64x256xbf16>, vector<8x256xf32> -> vector<8x256xf32>
    %c1_127 = arith.constant 1 : index
    %c0_128 = arith.constant 0 : index
    %c0_129 = arith.constant 0 : index
    %338 = vector.load %arg14[%c1_127, %c0_128, %c0_129] : memref<2x1x256xf32, #tpu.memory_space<vmem>>, vector<1x1x256xf32>
    %339 = vector.shape_cast %338 : vector<1x1x256xf32> to vector<1x256xf32>
    %340 = vector.broadcast %339 : vector<1x256xf32> to vector<8x256xf32>
    %341 = arith.addf %337, %340 : vector<8x256xf32>
    %cst_130 = arith.constant 5.000000e-01 : f32
    %342 = vector.broadcast %cst_130 : f32 to vector<8x256xf32>
    %343 = arith.mulf %342, %341 : vector<8x256xf32>
    %cst_131 = arith.constant 4.471500e-02 : f32
    %344 = vector.broadcast %cst_131 : f32 to vector<8x256xf32>
    %345 = arith.mulf %344, %341 : vector<8x256xf32>
    %346 = arith.mulf %345, %341 : vector<8x256xf32>
    %347 = arith.mulf %346, %341 : vector<8x256xf32>
    %348 = arith.addf %341, %347 : vector<8x256xf32>
    %cst_132 = arith.constant 0.797884583 : f32
    %349 = vector.broadcast %cst_132 : f32 to vector<8x256xf32>
    %350 = arith.mulf %349, %348 : vector<8x256xf32>
    %351 = math.tanh %350 : vector<8x256xf32>
    %cst_133 = arith.constant 1.000000e+00 : f32
    %352 = vector.broadcast %cst_133 : f32 to vector<8x256xf32>
    %353 = arith.addf %352, %351 : vector<8x256xf32>
    %354 = arith.mulf %343, %353 : vector<8x256xf32>
    %c1_134 = arith.constant 1 : index
    %c0_135 = arith.constant 0 : index
    %c0_136 = arith.constant 0 : index
    %355 = vector.load %arg15[%c1_134, %c0_135, %c0_136] : memref<2x256x64xbf16, #tpu.memory_space<vmem>>, vector<1x256x64xbf16>
    %356 = vector.shape_cast %355 : vector<1x256x64xbf16> to vector<256x64xbf16>
    %357 = arith.truncf %354 : vector<8x256xf32> to vector<8x256xbf16>
    %cst_137 = arith.constant dense<0.000000e+00> : vector<8x64xf32>
    %358 = tpu.matmul %357, %356, %cst_137 {dimension_numbers = #tpu.dot_dimension_numbers<[1], [0], [0], [1], [0, 0, 1, 1], [], []>} : vector<8x256xbf16>, vector<256x64xbf16>, vector<8x64xf32> -> vector<8x64xf32>
    %359 = arith.addf %307, %358 : vector<8x64xf32>
    %c1_138 = arith.constant 1 : index
    %c0_139 = arith.constant 0 : index
    %c0_140 = arith.constant 0 : index
    %360 = vector.load %arg16[%c1_138, %c0_139, %c0_140] : memref<2x1x64xf32, #tpu.memory_space<vmem>>, vector<1x1x64xf32>
    %361 = vector.shape_cast %360 : vector<1x1x64xf32> to vector<1x64xf32>
    %362 = vector.broadcast %361 : vector<1x64xf32> to vector<8x64xf32>
    %363 = arith.addf %359, %362 : vector<8x64xf32>
    %c0_141 = arith.constant 0 : index
    %c0_142 = arith.constant 0 : index
    %364 = vector.load %arg17[%c0_141, %c0_142] : memref<1x64xf32, #tpu.memory_space<vmem>>, vector<1x64xf32>
    %c0_143 = arith.constant 0 : index
    %c0_144 = arith.constant 0 : index
    %365 = vector.load %arg18[%c0_143, %c0_144] : memref<1x64xf32, #tpu.memory_space<vmem>>, vector<1x64xf32>
    %cst_145 = arith.constant dense<0.000000e+00> : vector<8xf32>
    %366 = vector.multi_reduction <add>, %363, %cst_145 [1] : vector<8x64xf32> to vector<8xf32>
    %367 = vector.shape_cast %366 : vector<8xf32> to vector<8x1xf32>
    %cst_146 = arith.constant 6.400000e+01 : f32
    %368 = vector.broadcast %cst_146 : f32 to vector<8x1xf32>
    %369 = arith.divf %367, %368 : vector<8x1xf32>
    %370 = vector.broadcast %369 : vector<8x1xf32> to vector<8x64xf32>
    %371 = arith.subf %363, %370 : vector<8x64xf32>
    %372 = arith.mulf %371, %371 : vector<8x64xf32>
    %cst_147 = arith.constant dense<0.000000e+00> : vector<8xf32>
    %373 = vector.multi_reduction <add>, %372, %cst_147 [1] : vector<8x64xf32> to vector<8xf32>
    %374 = vector.shape_cast %373 : vector<8xf32> to vector<8x1xf32>
    %cst_148 = arith.constant 6.400000e+01 : f32
    %375 = vector.broadcast %cst_148 : f32 to vector<8x1xf32>
    %376 = arith.divf %374, %375 : vector<8x1xf32>
    %377 = vector.broadcast %369 : vector<8x1xf32> to vector<8x64xf32>
    %378 = arith.subf %363, %377 : vector<8x64xf32>
    %cst_149 = arith.constant 9.99999974E-6 : f32
    %379 = vector.broadcast %cst_149 : f32 to vector<8x1xf32>
    %380 = arith.addf %376, %379 : vector<8x1xf32>
    %381 = math.rsqrt %380 : vector<8x1xf32>
    %382 = vector.broadcast %381 : vector<8x1xf32> to vector<8x64xf32>
    %383 = arith.mulf %378, %382 : vector<8x64xf32>
    %384 = vector.broadcast %364 : vector<1x64xf32> to vector<8x64xf32>
    %385 = arith.mulf %383, %384 : vector<8x64xf32>
    %386 = vector.broadcast %365 : vector<1x64xf32> to vector<8x64xf32>
    %387 = arith.addf %385, %386 : vector<8x64xf32>
    %c0_150 = arith.constant 0 : index
    %c0_151 = arith.constant 0 : index
    %388 = vector.load %arg19[%c0_150, %c0_151] : memref<64x8xbf16, #tpu.memory_space<vmem>>, vector<64x8xbf16>
    %389 = arith.truncf %387 : vector<8x64xf32> to vector<8x64xbf16>
    %cst_152 = arith.constant dense<0.000000e+00> : vector<8x8xf32>
    %390 = tpu.matmul %389, %388, %cst_152 {dimension_numbers = #tpu.dot_dimension_numbers<[1], [0], [0], [1], [0, 0, 1, 1], [], []>} : vector<8x64xbf16>, vector<64x8xbf16>, vector<8x8xf32> -> vector<8x8xf32>
    %391 = tpu.iota {dimensions = array<i32: 1>} : vector<1x8xi32>
    %cst_153 = arith.constant 0.000000e+00 : f32
    %392 = vector.broadcast %cst_153 : f32 to vector<1x8xf32>
    %393 = arith.index_cast %arg0 : i32 to index
    %c0_154 = arith.constant 0 : index
    %394 = memref.load %arg1[%393, %c0_154] : memref<2x2xf32, #tpu.memory_space<smem>>
    %c0_i32_155 = arith.constant 0 : i32
    %395 = vector.broadcast %c0_i32_155 : i32 to vector<1x8xi32>
    %396 = arith.cmpi sge, %391, %395 : vector<1x8xi32>
    %c4_i32_156 = arith.constant 4 : i32
    %397 = vector.broadcast %c4_i32_156 : i32 to vector<1x8xi32>
    %398 = arith.cmpi slt, %391, %397 : vector<1x8xi32>
    %399 = arith.andi %396, %398 : vector<1x8xi1>
    %400 = vector.broadcast %394 : f32 to vector<1x8xf32>
    %401 = arith.select %399, %400, %392 : vector<1x8xi1>, vector<1x8xf32>
    %402 = arith.index_cast %arg0 : i32 to index
    %c1_157 = arith.constant 1 : index
    %403 = memref.load %arg1[%402, %c1_157] : memref<2x2xf32, #tpu.memory_space<smem>>
    %c4_i32_158 = arith.constant 4 : i32
    %404 = vector.broadcast %c4_i32_158 : i32 to vector<1x8xi32>
    %405 = arith.cmpi sge, %391, %404 : vector<1x8xi32>
    %c8_i32 = arith.constant 8 : i32
    %406 = vector.broadcast %c8_i32 : i32 to vector<1x8xi32>
    %407 = arith.cmpi slt, %391, %406 : vector<1x8xi32>
    %408 = arith.andi %405, %407 : vector<1x8xi1>
    %409 = vector.broadcast %403 : f32 to vector<1x8xf32>
    %410 = arith.select %408, %409, %401 : vector<1x8xi1>, vector<1x8xf32>
    %cst_159 = arith.constant 1.000000e-03 : f32
    %411 = vector.broadcast %cst_159 : f32 to vector<1x8xf32>
    %412 = arith.mulf %411, %410 : vector<1x8xf32>
    %413 = vector.broadcast %412 : vector<1x8xf32> to vector<8x8xf32>
    %414 = arith.mulf %390, %413 : vector<8x8xf32>
    %c0_160 = arith.constant 0 : index
    %c0_161 = arith.constant 0 : index
    %415 = vector.load %arg20[%c0_160, %c0_161] : memref<64x256xbf16, #tpu.memory_space<vmem>>, vector<64x256xbf16>
    %416 = arith.truncf %387 : vector<8x64xf32> to vector<8x64xbf16>
    %cst_162 = arith.constant dense<0.000000e+00> : vector<8x256xf32>
    %417 = tpu.matmul %416, %415, %cst_162 {dimension_numbers = #tpu.dot_dimension_numbers<[1], [0], [0], [1], [0, 0, 1, 1], [], []>} : vector<8x64xbf16>, vector<64x256xbf16>, vector<8x256xf32> -> vector<8x256xf32>
    %c0_163 = arith.constant 0 : index
    %c0_164 = arith.constant 0 : index
    %418 = vector.load %arg21[%c0_163, %c0_164] : memref<8x256xbf16, #tpu.memory_space<vmem>>, vector<8x256xbf16>
    %419 = arith.truncf %414 : vector<8x8xf32> to vector<8x8xbf16>
    %cst_165 = arith.constant dense<0.000000e+00> : vector<8x256xf32>
    %420 = tpu.matmul %419, %418, %cst_165 {dimension_numbers = #tpu.dot_dimension_numbers<[1], [0], [0], [1], [0, 0, 1, 1], [], []>} : vector<8x8xbf16>, vector<8x256xbf16>, vector<8x256xf32> -> vector<8x256xf32>
    %421 = arith.addf %417, %420 : vector<8x256xf32>
    %c0_166 = arith.constant 0 : index
    %c0_167 = arith.constant 0 : index
    %c0_168 = arith.constant 0 : index
    %422 = vector.load %arg22[%c0_166, %c0_167, %c0_168] : memref<1x8x256xf32, #tpu.memory_space<vmem>>, vector<1x8x256xf32>
    %423 = vector.shape_cast %422 : vector<1x8x256xf32> to vector<8x256xf32>
    %424 = vector.shape_cast %421 : vector<8x256xf32> to vector<1x8x256xf32>
    tpu.vector_store %arg22[%c0_166, %c0_167, %c0_168], %424 {strides = array<i32>} : memref<1x8x256xf32, #tpu.memory_space<vmem>>, vector<1x8x256xf32>,
    %cst_169 = arith.constant dense<0xFF800000> : vector<8xf32>
    %425 = vector.multi_reduction <maximumf>, %421, %cst_169 [1] : vector<8x256xf32> to vector<8xf32>
    %426 = vector.shape_cast %425 : vector<8xf32> to vector<8x1xf32>
    %427 = vector.broadcast %426 : vector<8x1xf32> to vector<8x256xf32>
    %428 = arith.subf %421, %427 : vector<8x256xf32>
    %429 = math.exp %428 : vector<8x256xf32>
    %cst_170 = arith.constant dense<0.000000e+00> : vector<8xf32>
    %430 = vector.multi_reduction <add>, %429, %cst_170 [1] : vector<8x256xf32> to vector<8xf32>
    %431 = vector.shape_cast %430 : vector<8xf32> to vector<8x1xf32>
    %432 = math.log %431 : vector<8x1xf32>
    %433 = arith.addf %426, %432 : vector<8x1xf32>
    %434 = vector.broadcast %78 : vector<8x1xi32> to vector<8x256xi32>
    %435 = arith.cmpi eq, %79, %434 : vector<8x256xi32>
    %cst_171 = arith.constant 0.000000e+00 : f32
    %436 = vector.broadcast %cst_171 : f32 to vector<8x256xf32>
    %437 = arith.select %435, %421, %436 : vector<8x256xi1>, vector<8x256xf32>
    %cst_172 = arith.constant dense<0.000000e+00> : vector<8xf32>
    %438 = vector.multi_reduction <add>, %437, %cst_172 [1] : vector<8x256xf32> to vector<8xf32>
    %439 = vector.shape_cast %438 : vector<8xf32> to vector<8x1xf32>
    %440 = arith.subf %433, %439 : vector<8x1xf32>
    %c7_i32_173 = arith.constant 7 : i32
    %441 = vector.broadcast %c7_i32_173 : i32 to vector<8x1xi32>
    %442 = arith.cmpi slt, %0, %441 : vector<8x1xi32>
    %cst_174 = arith.constant 0.000000e+00 : f32
    %443 = vector.broadcast %cst_174 : f32 to vector<8x1xf32>
    %444 = arith.select %442, %440, %443 : vector<8x1xi1>, vector<8x1xf32>
    %445 = vector.shape_cast %444 : vector<8x1xf32> to vector<1x8x1xf32>
    %cst_175 = arith.constant dense<0.000000e+00> : vector<1xf32>
    %446 = vector.multi_reduction <add>, %445, %cst_175 [1, 2] : vector<1x8x1xf32> to vector<1xf32>
    %447 = vector.shape_cast %446 : vector<1xf32> to vector<1x1x1xf32>
    %448 = vector.extract %447[0, 0, 0] : f32 from vector<1x1x1xf32>
    %449 = vector.broadcast %448 : f32 to vector<1x1x1xf32>
    %c0_176 = arith.constant 0 : index
    %c0_177 = arith.constant 0 : index
    %c0_178 = arith.constant 0 : index
    %450 = vector.load %arg23[%c0_176, %c0_177, %c0_178] : memref<1x1x1xf32, #tpu.memory_space<vmem>>, vector<1x1x1xf32>
    tpu.vector_store %arg23[%c0_176, %c0_177, %c0_178], %449 {strides = array<i32>} : memref<1x1x1xf32, #tpu.memory_space<vmem>>, vector<1x1x1xf32>,
    return
  }
  func.func @transform_0(%arg0: i32) -> (i32, i32) {
    %c0_i32 = arith.constant 0 : i32
    %c0_i32_0 = arith.constant 0 : i32
    %c0_i32_1 = arith.constant 0 : i32
    return %c0_i32, %c0_i32_0 : i32, i32
  }
  func.func @transform_1(%arg0: i32) -> (i32, i32) {
    %c0_i32 = arith.constant 0 : i32
    %c0_i32_0 = arith.constant 0 : i32
    %c0_i32_1 = arith.constant 0 : i32
    return %c0_i32, %c0_i32_0 : i32, i32
  }
  func.func @transform_2(%arg0: i32) -> (i32, i32, i32) {
    %c0_i32 = arith.constant 0 : i32
    %c0_i32_0 = arith.constant 0 : i32
    %c0_i32_1 = arith.constant 0 : i32
    return %arg0, %c0_i32, %c0_i32_0 : i32, i32, i32
  }
  func.func @transform_3(%arg0: i32) -> (i32, i32) {
    %c0_i32 = arith.constant 0 : i32
    %c0_i32_0 = arith.constant 0 : i32
    %c0_i32_1 = arith.constant 0 : i32
    return %c0_i32, %c0_i32_0 : i32, i32
  }
  func.func @transform_4(%arg0: i32) -> (i32, i32) {
    %c0_i32 = arith.constant 0 : i32
    %c0_i32_0 = arith.constant 0 : i32
    %c0_i32_1 = arith.constant 0 : i32
    return %c0_i32, %c0_i32_0 : i32, i32
  }
  func.func @transform_5(%arg0: i32) -> (i32, i32, i32) {
    %c0_i32 = arith.constant 0 : i32
    %c0_i32_0 = arith.constant 0 : i32
    %c0_i32_1 = arith.constant 0 : i32
    %c0_i32_2 = arith.constant 0 : i32
    return %c0_i32, %c0_i32_0, %c0_i32_1 : i32, i32, i32
  }
  func.func @transform_6(%arg0: i32) -> (i32, i32, i32) {
    %c0_i32 = arith.constant 0 : i32
    %c0_i32_0 = arith.constant 0 : i32
    %c0_i32_1 = arith.constant 0 : i32
    %c0_i32_2 = arith.constant 0 : i32
    return %c0_i32, %c0_i32_0, %c0_i32_1 : i32, i32, i32
  }
  func.func @transform_7(%arg0: i32) -> (i32, i32, i32) {
    %c0_i32 = arith.constant 0 : i32
    %c0_i32_0 = arith.constant 0 : i32
    %c0_i32_1 = arith.constant 0 : i32
    %c0_i32_2 = arith.constant 0 : i32
    return %c0_i32, %c0_i32_0, %c0_i32_1 : i32, i32, i32
  }
  func.func @transform_8(%arg0: i32) -> (i32, i32, i32) {
    %c0_i32 = arith.constant 0 : i32
    %c0_i32_0 = arith.constant 0 : i32
    %c0_i32_1 = arith.constant 0 : i32
    %c0_i32_2 = arith.constant 0 : i32
    return %c0_i32, %c0_i32_0, %c0_i32_1 : i32, i32, i32
  }
  func.func @transform_9(%arg0: i32) -> (i32, i32, i32) {
    %c0_i32 = arith.constant 0 : i32
    %c0_i32_0 = arith.constant 0 : i32
    %c0_i32_1 = arith.constant 0 : i32
    %c0_i32_2 = arith.constant 0 : i32
    return %c0_i32, %c0_i32_0, %c0_i32_1 : i32, i32, i32
  }
  func.func @transform_10(%arg0: i32) -> (i32, i32, i32) {
    %c0_i32 = arith.constant 0 : i32
    %c0_i32_0 = arith.constant 0 : i32
    %c0_i32_1 = arith.constant 0 : i32
    %c0_i32_2 = arith.constant 0 : i32
    return %c0_i32, %c0_i32_0, %c0_i32_1 : i32, i32, i32
  }
  func.func @transform_11(%arg0: i32) -> (i32, i32, i32) {
    %c0_i32 = arith.constant 0 : i32
    %c0_i32_0 = arith.constant 0 : i32
    %c0_i32_1 = arith.constant 0 : i32
    %c0_i32_2 = arith.constant 0 : i32
    return %c0_i32, %c0_i32_0, %c0_i32_1 : i32, i32, i32
  }
  func.func @transform_12(%arg0: i32) -> (i32, i32, i32) {
    %c0_i32 = arith.constant 0 : i32
    %c0_i32_0 = arith.constant 0 : i32
    %c0_i32_1 = arith.constant 0 : i32
    %c0_i32_2 = arith.constant 0 : i32
    return %c0_i32, %c0_i32_0, %c0_i32_1 : i32, i32, i32
  }
  func.func @transform_13(%arg0: i32) -> (i32, i32, i32) {
    %c0_i32 = arith.constant 0 : i32
    %c0_i32_0 = arith.constant 0 : i32
    %c0_i32_1 = arith.constant 0 : i32
    %c0_i32_2 = arith.constant 0 : i32
    return %c0_i32, %c0_i32_0, %c0_i32_1 : i32, i32, i32
  }
  func.func @transform_14(%arg0: i32) -> (i32, i32, i32) {
    %c0_i32 = arith.constant 0 : i32
    %c0_i32_0 = arith.constant 0 : i32
    %c0_i32_1 = arith.constant 0 : i32
    %c0_i32_2 = arith.constant 0 : i32
    return %c0_i32, %c0_i32_0, %c0_i32_1 : i32, i32, i32
  }
  func.func @transform_15(%arg0: i32) -> (i32, i32, i32) {
    %c0_i32 = arith.constant 0 : i32
    %c0_i32_0 = arith.constant 0 : i32
    %c0_i32_1 = arith.constant 0 : i32
    %c0_i32_2 = arith.constant 0 : i32
    return %c0_i32, %c0_i32_0, %c0_i32_1 : i32, i32, i32
  }
  func.func @transform_16(%arg0: i32) -> (i32, i32) {
    %c0_i32 = arith.constant 0 : i32
    %c0_i32_0 = arith.constant 0 : i32
    %c0_i32_1 = arith.constant 0 : i32
    return %c0_i32, %c0_i32_0 : i32, i32
  }
  func.func @transform_17(%arg0: i32) -> (i32, i32) {
    %c0_i32 = arith.constant 0 : i32
    %c0_i32_0 = arith.constant 0 : i32
    %c0_i32_1 = arith.constant 0 : i32
    return %c0_i32, %c0_i32_0 : i32, i32
  }
  func.func @transform_18(%arg0: i32) -> (i32, i32) {
    %c0_i32 = arith.constant 0 : i32
    %c0_i32_0 = arith.constant 0 : i32
    %c0_i32_1 = arith.constant 0 : i32
    return %c0_i32, %c0_i32_0 : i32, i32
  }
  func.func @transform_19(%arg0: i32) -> (i32, i32) {
    %c0_i32 = arith.constant 0 : i32
    %c0_i32_0 = arith.constant 0 : i32
    %c0_i32_1 = arith.constant 0 : i32
    return %c0_i32, %c0_i32_0 : i32, i32
  }
  func.func @transform_20(%arg0: i32) -> (i32, i32) {
    %c0_i32 = arith.constant 0 : i32
    %c0_i32_0 = arith.constant 0 : i32
    %c0_i32_1 = arith.constant 0 : i32
    return %c0_i32, %c0_i32_0 : i32, i32
  }
  func.func @transform_21(%arg0: i32) -> (i32, i32, i32) {
    %c0_i32 = arith.constant 0 : i32
    %c0_i32_0 = arith.constant 0 : i32
    %c0_i32_1 = arith.constant 0 : i32
    return %arg0, %c0_i32, %c0_i32_0 : i32, i32, i32
  }
  func.func @transform_22(%arg0: i32) -> (i32, i32, i32) {
    %c0_i32 = arith.constant 0 : i32
    %c0_i32_0 = arith.constant 0 : i32
    %c0_i32_1 = arith.constant 0 : i32
    return %arg0, %c0_i32, %c0_i32_0 : i32, i32, i32
  }
}

</mosaic_0001>

<llo_original>
// kernel: forward.1
$region0: #{forward.1}
  #allocation0 [shape = 'u32[]', space=smem, size = 0x4, offset = 0x4, fixed_abs, tag = 'smem constant byte address 0x4 - core index']
  #allocation1 [shape = 'u32[144,128]{1,0:T(1,128)}', space=vmem, size = 0x12000, scoped, tag = 'internal scratch']
  %s0 = inlined_call_operand.vmem [shape: f32[2,2], index: 0, kind: input, shape index: {}]
  %s1 = inlined_call_operand.vmem [shape: s32[2,8], index: 1, kind: input, shape index: {}]
  %s2 = inlined_call_operand.vmem [shape: s32[2,1,8], index: 2, kind: input, shape index: {}]
  %s3 = inlined_call_operand.vmem [shape: f32[256,64], index: 3, kind: input, shape index: {}]
  %s4 = inlined_call_operand.vmem [shape: f32[32,64], index: 4, kind: input, shape index: {}]
  %s5 = inlined_call_operand.vmem [shape: f32[2,1,64], index: 5, kind: input, shape index: {}]
  %s6 = inlined_call_operand.vmem [shape: f32[2,1,64], index: 6, kind: input, shape index: {}]
  %s7 = inlined_call_operand.vmem [shape: bf16[2,64,192], index: 7, kind: input, shape index: {}]
  %s8 = inlined_call_operand.vmem [shape: bf16[2,64,64], index: 8, kind: input, shape index: {}]
  %s9 = inlined_call_operand.vmem [shape: f32[2,1,64], index: 9, kind: input, shape index: {}]
  %s10 = inlined_call_operand.vmem [shape: f32[2,1,64], index: 10, kind: input, shape index: {}]
  %s11 = inlined_call_operand.vmem [shape: f32[2,1,64], index: 11, kind: input, shape index: {}]
  %s12 = inlined_call_operand.vmem [shape: bf16[2,64,256], index: 12, kind: input, shape index: {}]
  %s13 = inlined_call_operand.vmem [shape: f32[2,1,256], index: 13, kind: input, shape index: {}]
  %s14 = inlined_call_operand.vmem [shape: bf16[2,256,64], index: 14, kind: input, shape index: {}]
  %s15 = inlined_call_operand.vmem [shape: f32[2,1,64], index: 15, kind: input, shape index: {}]
  %s16 = inlined_call_operand.vmem [shape: f32[1,64], index: 16, kind: input, shape index: {}]
  %s17 = inlined_call_operand.vmem [shape: f32[1,64], index: 17, kind: input, shape index: {}]
  %s18 = inlined_call_operand.vmem [shape: bf16[64,8], index: 18, kind: input, shape index: {}]
  %s19 = inlined_call_operand.vmem [shape: bf16[64,256], index: 19, kind: input, shape index: {}]
  %s20 = inlined_call_operand.vmem [shape: bf16[8,256], index: 20, kind: input, shape index: {}]
  %s21 = inlined_call_operand.hbm [shape: f32[2,8,256], index: 21, kind: output, shape index: {0}]
  %s22 = inlined_call_operand.vmem [shape: f32[2,1,1], index: 22, kind: output, shape index: {1}]
  %23 = xla_tuple %s21, %s22
  %s24 = sld [smem:[#allocation0]]
  $region133: #{forward.1} parent=0
    _
  %s26 = ssub.s32 1, %s24
  %s27 = scalar_select 0, %s26, %s24
  $region1: #{forward.1} parent=0
    #allocation2 [shape = 'u8[1024]{0}', space=smem, size = 0x400, scoped, tag = 'input window, operand 0, single buffered']
    #allocation3 [shape = 's32[2]{0}', space=sflag, size = 0x8, scoped, tag = 'scoped memory for forward.1']
    #allocation4 [shape = 's32[2]{0}', space=sflag, size = 0x8, scoped, tag = 'scoped memory for forward.1']
    #allocation5 [shape = 'u8[1024]{0}', space=smem, size = 0x400, scoped, tag = 'input window, operand 1, single buffered']
    #allocation6 [shape = 's32[1]{0}', space=sflag, size = 0x4, scoped, tag = 'scoped memory for forward.1']
    #allocation7 [shape = 'u8[16384]{0}', space=vmem, size = 0x4000, scoped, tag = 'output window, operand 0']
    %28 = vsyncpa [#allocation4], 0
    %29 = vsyncpa [#allocation6], 0
    %30 = vsyncpa [#allocation3], 0
    %s31 = scalar_lea.sflag [#allocation3], 1
    %32 = vsyncpa %s31, 0
    loop: start=0, step=1, limit=4
    $region2: #{forward.1} parent=1 // loop_pre_header
      _
    $region3: #{forward.1} parent=1 // loop_header
      %s34 = sphi 0, %s38
      %p35 = scmp.ge.s32.totalorder %s34, 4
      %s42 = sphi 0, %s42
      %s44 = sphi 0, %s42
      %s45 = sphi 0, %s44
      %s59 = sphi 0, %s45
      %s63 = sphi 0, %s63
      %s65 = sphi 0, %s63
      %s66 = sphi 0, %s65
      %s80 = sphi 0, %s66
      %s86 = sphi 0, %s88
      %s89 = sphi 0, %s86
      %s90 = sphi 0, %s89
      %s106 = sphi 0, %s90
      %s110 = sphi 0, %s110
      %s112 = sphi 0, %s110
      %s113 = sphi 0, %s112
      %s127 = sphi 0, %s113
      %s131 = sphi 0, %s131
      %s133 = sphi 0, %s131
      %s134 = sphi 0, %s133
      %s148 = sphi 0, %s134
      %s152 = sphi 0, %s152
      %s154 = sphi 0, %s152
      %s155 = sphi 0, %s154
      %s169 = sphi 0, %s155
      %s173 = sphi 0, %s173
      %s175 = sphi 0, %s173
      %s176 = sphi 0, %s175
      %s190 = sphi 0, %s176
      %s194 = sphi 0, %s194
      %s196 = sphi 0, %s194
      %s197 = sphi 0, %s196
      %s211 = sphi 0, %s197
      %s215 = sphi 0, %s215
      %s217 = sphi 0, %s215
      %s218 = sphi 0, %s217
      %s232 = sphi 0, %s218
      %s236 = sphi 0, %s236
      %s238 = sphi 0, %s236
      %s239 = sphi 0, %s238
      %s253 = sphi 0, %s239
      %s257 = sphi 0, %s257
      %s259 = sphi 0, %s257
      %s260 = sphi 0, %s259
      %s274 = sphi 0, %s260
      %s278 = sphi 0, %s278
      %s280 = sphi 0, %s278
      %s281 = sphi 0, %s280
      %s295 = sphi 0, %s281
      %s299 = sphi 0, %s299
      %s301 = sphi 0, %s299
      %s302 = sphi 0, %s301
      %s316 = sphi 0, %s302
      %s320 = sphi 0, %s320
      %s322 = sphi 0, %s320
      %s323 = sphi 0, %s322
      %s337 = sphi 0, %s323
      %s341 = sphi 0, %s341
      %s343 = sphi 0, %s341
      %s344 = sphi 0, %s343
      %s358 = sphi 0, %s344
      %s362 = sphi 0, %s362
      %s364 = sphi 0, %s362
      %s365 = sphi 0, %s364
      %s379 = sphi 0, %s365
      %s383 = sphi 0, %s383
      %s385 = sphi 0, %s383
      %s386 = sphi 0, %s385
      %s400 = sphi 0, %s386
      %s404 = sphi 0, %s404
      %s406 = sphi 0, %s404
      %s407 = sphi 0, %s406
      %s421 = sphi 0, %s407
      %s425 = sphi 0, %s425
      %s427 = sphi 0, %s425
      %s428 = sphi 0, %s427
      %s442 = sphi 0, %s428
      %s446 = sphi 0, %s446
      %s448 = sphi 0, %s446
      %s449 = sphi 0, %s448
      %s463 = sphi 0, %s449
      %s467 = sphi 0, %s467
      %s469 = sphi 0, %s467
      %s470 = sphi 0, %s469
      %s484 = sphi 0, %s470
      %s490 = sphi 0, %s492
      %s493 = sphi 0, %s490
      %s494 = sphi 0, %s493
      %s510 = sphi 0, %s494
      %s516 = sphi 0, %s518
      %s519 = sphi 0, %s516
      %s520 = sphi 0, %s519
      %s536 = sphi 0, %s520
    $region4: #{forward.1} parent=1 // loop_header_branch
      %37 = sbr.rel (%p35) target = $region8
    $region5: #{forward.1} parent=1 // loop_body
      %s39 = ssub.s32 %s34, 1
      %s40 = ssub.s32 %s34, 2
      %s41 = sadd.s32 %s34, 1
      %s43 = sadd.s32 %s42, 1
      %p46 = scmp.eq.s32.totalorder %s34, 1
      %p47 = scmp.ne.s32.totalorder %s42, %s44
      %p48 = scmp.eq.s32.totalorder %s34, 0
      %p49 = por %p47, %p48
      %p50 = scmp.ne.s32.totalorder %s42, %s44
      %p51 = scmp.eq.s32.totalorder %s39, 1
      %p52 = por %p50, %p51
      %p53 = scmp.ne.s32.totalorder %s44, %s45
      %p54 = scmp.eq.s32.totalorder %s39, 0
      %p55 = por %p53, %p54
      %p56 = scmp.ne.s32.totalorder %s44, %s45
      %p57 = scmp.eq.s32.totalorder %s40, 1
      %p58 = por %p56, %p57
      %p60 = scmp.ne.s32.totalorder %s45, %s59
      %p61 = scmp.eq.s32.totalorder %s40, 0
      %p62 = por %p60, %p61
      %s64 = sadd.s32 %s63, 1
      %p67 = scmp.eq.s32.totalorder %s34, 1
      %p68 = scmp.ne.s32.totalorder %s63, %s65
      %p69 = scmp.eq.s32.totalorder %s34, 0
      %p70 = por %p68, %p69
      %p71 = scmp.ne.s32.totalorder %s63, %s65
      %p72 = scmp.eq.s32.totalorder %s39, 1
      %p73 = por %p71, %p72
      %p74 = scmp.ne.s32.totalorder %s65, %s66
      %p75 = scmp.eq.s32.totalorder %s39, 0
      %p76 = por %p74, %p75
      %p77 = scmp.ne.s32.totalorder %s65, %s66
      %p78 = scmp.eq.s32.totalorder %s40, 1
      %p79 = por %p77, %p78
      %p81 = scmp.ne.s32.totalorder %s66, %s80
      %p82 = scmp.eq.s32.totalorder %s40, 0
      %p83 = por %p81, %p82
      %s84 = ssub.s32 %s34, %s41
      %p85 = scmp.eq.s32.totalorder %s84, 0
      %s87 = sadd.s32 %s86, 1
      %s88 = scalar_select %p85, %s86, %s87
      %p91 = pneg %p85
      %p92 = scmp.eq.s32.totalorder %s34, 1
      %p93 = por %p91, %p92
      %p94 = scmp.ne.s32.totalorder %s86, %s89
      %p95 = scmp.eq.s32.totalorder %s34, 0
      %p96 = por %p94, %p95
      %p97 = scmp.ne.s32.totalorder %s86, %s89
      %p98 = scmp.eq.s32.totalorder %s39, 1
      %p99 = por %p97, %p98
      %p100 = scmp.ne.s32.totalorder %s89, %s90
      %p101 = scmp.eq.s32.totalorder %s39, 0
      %p102 = por %p100, %p101
      %p103 = scmp.ne.s32.totalorder %s89, %s90
      %p104 = scmp.eq.s32.totalorder %s40, 1
      %p105 = por %p103, %p104
      %p107 = scmp.ne.s32.totalorder %s90, %s106
      %p108 = scmp.eq.s32.totalorder %s40, 0
      %p109 = por %p107, %p108
      %s111 = sadd.s32 %s110, 1
      %p114 = scmp.eq.s32.totalorder %s34, 1
      %p115 = scmp.ne.s32.totalorder %s110, %s112
      %p116 = scmp.eq.s32.totalorder %s34, 0
      %p117 = por %p115, %p116
      %p118 = scmp.ne.s32.totalorder %s110, %s112
      %p119 = scmp.eq.s32.totalorder %s39, 1
      %p120 = por %p118, %p119
      %p121 = scmp.ne.s32.totalorder %s112, %s113
      %p122 = scmp.eq.s32.totalorder %s39, 0
      %p123 = por %p121, %p122
      %p124 = scmp.ne.s32.totalorder %s112, %s113
      %p125 = scmp.eq.s32.totalorder %s40, 1
      %p126 = por %p124, %p125
      %p128 = scmp.ne.s32.totalorder %s113, %s127
      %p129 = scmp.eq.s32.totalorder %s40, 0
      %p130 = por %p128, %p129
      %s132 = sadd.s32 %s131, 1
      %p135 = scmp.eq.s32.totalorder %s34, 1
      %p136 = scmp.ne.s32.totalorder %s131, %s133
      %p137 = scmp.eq.s32.totalorder %s34, 0
      %p138 = por %p136, %p137
      %p139 = scmp.ne.s32.totalorder %s131, %s133
      %p140 = scmp.eq.s32.totalorder %s39, 1
      %p141 = por %p139, %p140
      %p142 = scmp.ne.s32.totalorder %s133, %s134
      %p143 = scmp.eq.s32.totalorder %s39, 0
      %p144 = por %p142, %p143
      %p145 = scmp.ne.s32.totalorder %s133, %s134
      %p146 = scmp.eq.s32.totalorder %s40, 1
      %p147 = por %p145, %p146
      %p149 = scmp.ne.s32.totalorder %s134, %s148
      %p150 = scmp.eq.s32.totalorder %s40, 0
      %p151 = por %p149, %p150
      %s153 = sadd.s32 %s152, 1
      %p156 = scmp.eq.s32.totalorder %s34, 1
      %p157 = scmp.ne.s32.totalorder %s152, %s154
      %p158 = scmp.eq.s32.totalorder %s34, 0
      %p159 = por %p157, %p158
      %p160 = scmp.ne.s32.totalorder %s152, %s154
      %p161 = scmp.eq.s32.totalorder %s39, 1
      %p162 = por %p160, %p161
      %p163 = scmp.ne.s32.totalorder %s154, %s155
      %p164 = scmp.eq.s32.totalorder %s39, 0
      %p165 = por %p163, %p164
      %p166 = scmp.ne.s32.totalorder %s154, %s155
      %p167 = scmp.eq.s32.totalorder %s40, 1
      %p168 = por %p166, %p167
      %p170 = scmp.ne.s32.totalorder %s155, %s169
      %p171 = scmp.eq.s32.totalorder %s40, 0
      %p172 = por %p170, %p171
      %s174 = sadd.s32 %s173, 1
      %p177 = scmp.eq.s32.totalorder %s34, 1
      %p178 = scmp.ne.s32.totalorder %s173, %s175
      %p179 = scmp.eq.s32.totalorder %s34, 0
      %p180 = por %p178, %p179
      %p181 = scmp.ne.s32.totalorder %s173, %s175
      %p182 = scmp.eq.s32.totalorder %s39, 1
      %p183 = por %p181, %p182
      %p184 = scmp.ne.s32.totalorder %s175, %s176
      %p185 = scmp.eq.s32.totalorder %s39, 0
      %p186 = por %p184, %p185
      %p187 = scmp.ne.s32.totalorder %s175, %s176
      %p188 = scmp.eq.s32.totalorder %s40, 1
      %p189 = por %p187, %p188
      %p191 = scmp.ne.s32.totalorder %s176, %s190
      %p192 = scmp.eq.s32.totalorder %s40, 0
      %p193 = por %p191, %p192
      %s195 = sadd.s32 %s194, 1
      %p198 = scmp.eq.s32.totalorder %s34, 1
      %p199 = scmp.ne.s32.totalorder %s194, %s196
      %p200 = scmp.eq.s32.totalorder %s34, 0
      %p201 = por %p199, %p200
      %p202 = scmp.ne.s32.totalorder %s194, %s196
      %p203 = scmp.eq.s32.totalorder %s39, 1
      %p204 = por %p202, %p203
      %p205 = scmp.ne.s32.totalorder %s196, %s197
      %p206 = scmp.eq.s32.totalorder %s39, 0
      %p207 = por %p205, %p206
      %p208 = scmp.ne.s32.totalorder %s196, %s197
      %p209 = scmp.eq.s32.totalorder %s40, 1
      %p210 = por %p208, %p209
      %p212 = scmp.ne.s32.totalorder %s197, %s211
      %p213 = scmp.eq.s32.totalorder %s40, 0
      %p214 = por %p212, %p213
      %s216 = sadd.s32 %s215, 1
      %p219 = scmp.eq.s32.totalorder %s34, 1
      %p220 = scmp.ne.s32.totalorder %s215, %s217
      %p221 = scmp.eq.s32.totalorder %s34, 0
      %p222 = por %p220, %p221
      %p223 = scmp.ne.s32.totalorder %s215, %s217
      %p224 = scmp.eq.s32.totalorder %s39, 1
      %p225 = por %p223, %p224
      %p226 = scmp.ne.s32.totalorder %s217, %s218
      %p227 = scmp.eq.s32.totalorder %s39, 0
      %p228 = por %p226, %p227
      %p229 = scmp.ne.s32.totalorder %s217, %s218
      %p230 = scmp.eq.s32.totalorder %s40, 1
      %p231 = por %p229, %p230
      %p233 = scmp.ne.s32.totalorder %s218, %s232
      %p234 = scmp.eq.s32.totalorder %s40, 0
      %p235 = por %p233, %p234
      %s237 = sadd.s32 %s236, 1
      %p240 = scmp.eq.s32.totalorder %s34, 1
      %p241 = scmp.ne.s32.totalorder %s236, %s238
      %p242 = scmp.eq.s32.totalorder %s34, 0
      %p243 = por %p241, %p242
      %p244 = scmp.ne.s32.totalorder %s236, %s238
      %p245 = scmp.eq.s32.totalorder %s39, 1
      %p246 = por %p244, %p245
      %p247 = scmp.ne.s32.totalorder %s238, %s239
      %p248 = scmp.eq.s32.totalorder %s39, 0
      %p249 = por %p247, %p248
      %p250 = scmp.ne.s32.totalorder %s238, %s239
      %p251 = scmp.eq.s32.totalorder %s40, 1
      %p252 = por %p250, %p251
      %p254 = scmp.ne.s32.totalorder %s239, %s253
      %p255 = scmp.eq.s32.totalorder %s40, 0
      %p256 = por %p254, %p255
      %s258 = sadd.s32 %s257, 1
      %p261 = scmp.eq.s32.totalorder %s34, 1
      %p262 = scmp.ne.s32.totalorder %s257, %s259
      %p263 = scmp.eq.s32.totalorder %s34, 0
      %p264 = por %p262, %p263
      %p265 = scmp.ne.s32.totalorder %s257, %s259
      %p266 = scmp.eq.s32.totalorder %s39, 1
      %p267 = por %p265, %p266
      %p268 = scmp.ne.s32.totalorder %s259, %s260
      %p269 = scmp.eq.s32.totalorder %s39, 0
      %p270 = por %p268, %p269
      %p271 = scmp.ne.s32.totalorder %s259, %s260
      %p272 = scmp.eq.s32.totalorder %s40, 1
      %p273 = por %p271, %p272
      %p275 = scmp.ne.s32.totalorder %s260, %s274
      %p276 = scmp.eq.s32.totalorder %s40, 0
      %p277 = por %p275, %p276
      %s279 = sadd.s32 %s278, 1
      %p282 = scmp.eq.s32.totalorder %s34, 1
      %p283 = scmp.ne.s32.totalorder %s278, %s280
      %p284 = scmp.eq.s32.totalorder %s34, 0
      %p285 = por %p283, %p284
      %p286 = scmp.ne.s32.totalorder %s278, %s280
      %p287 = scmp.eq.s32.totalorder %s39, 1
      %p288 = por %p286, %p287
      %p289 = scmp.ne.s32.totalorder %s280, %s281
      %p290 = scmp.eq.s32.totalorder %s39, 0
      %p291 = por %p289, %p290
      %p292 = scmp.ne.s32.totalorder %s280, %s281
      %p293 = scmp.eq.s32.totalorder %s40, 1
      %p294 = por %p292, %p293
      %p296 = scmp.ne.s32.totalorder %s281, %s295
      %p297 = scmp.eq.s32.totalorder %s40, 0
      %p298 = por %p296, %p297
      %s300 = sadd.s32 %s299, 1
      %p303 = scmp.eq.s32.totalorder %s34, 1
      %p304 = scmp.ne.s32.totalorder %s299, %s301
      %p305 = scmp.eq.s32.totalorder %s34, 0
      %p306 = por %p304, %p305
      %p307 = scmp.ne.s32.totalorder %s299, %s301
      %p308 = scmp.eq.s32.totalorder %s39, 1
      %p309 = por %p307, %p308
      %p310 = scmp.ne.s32.totalorder %s301, %s302
      %p311 = scmp.eq.s32.totalorder %s39, 0
      %p312 = por %p310, %p311
      %p313 = scmp.ne.s32.totalorder %s301, %s302
      %p314 = scmp.eq.s32.totalorder %s40, 1
      %p315 = por %p313, %p314
      %p317 = scmp.ne.s32.totalorder %s302, %s316
      %p318 = scmp.eq.s32.totalorder %s40, 0
      %p319 = por %p317, %p318
      %s321 = sadd.s32 %s320, 1
      %p324 = scmp.eq.s32.totalorder %s34, 1
      %p325 = scmp.ne.s32.totalorder %s320, %s322
      %p326 = scmp.eq.s32.totalorder %s34, 0
      %p327 = por %p325, %p326
      %p328 = scmp.ne.s32.totalorder %s320, %s322
      %p329 = scmp.eq.s32.totalorder %s39, 1
      %p330 = por %p328, %p329
      %p331 = scmp.ne.s32.totalorder %s322, %s323
      %p332 = scmp.eq.s32.totalorder %s39, 0
      %p333 = por %p331, %p332
      %p334 = scmp.ne.s32.totalorder %s322, %s323
      %p335 = scmp.eq.s32.totalorder %s40, 1
      %p336 = por %p334, %p335
      %p338 = scmp.ne.s32.totalorder %s323, %s337
      %p339 = scmp.eq.s32.totalorder %s40, 0
      %p340 = por %p338, %p339
      %s342 = sadd.s32 %s341, 1
      %p345 = scmp.eq.s32.totalorder %s34, 1
      %p346 = scmp.ne.s32.totalorder %s341, %s343
      %p347 = scmp.eq.s32.totalorder %s34, 0
      %p348 = por %p346, %p347
      %p349 = scmp.ne.s32.totalorder %s341, %s343
      %p350 = scmp.eq.s32.totalorder %s39, 1
      %p351 = por %p349, %p350
      %p352 = scmp.ne.s32.totalorder %s343, %s344
      %p353 = scmp.eq.s32.totalorder %s39, 0
      %p354 = por %p352, %p353
      %p355 = scmp.ne.s32.totalorder %s343, %s344
      %p356 = scmp.eq.s32.totalorder %s40, 1
      %p357 = por %p355, %p356
      %p359 = scmp.ne.s32.totalorder %s344, %s358
      %p360 = scmp.eq.s32.totalorder %s40, 0
      %p361 = por %p359, %p360
      %s363 = sadd.s32 %s362, 1
      %p366 = scmp.eq.s32.totalorder %s34, 1
      %p367 = scmp.ne.s32.totalorder %s362, %s364
      %p368 = scmp.eq.s32.totalorder %s34, 0
      %p369 = por %p367, %p368
      %p370 = scmp.ne.s32.totalorder %s362, %s364
      %p371 = scmp.eq.s32.totalorder %s39, 1
      %p372 = por %p370, %p371
      %p373 = scmp.ne.s32.totalorder %s364, %s365
      %p374 = scmp.eq.s32.totalorder %s39, 0
      %p375 = por %p373, %p374
      %p376 = scmp.ne.s32.totalorder %s364, %s365
      %p377 = scmp.eq.s32.totalorder %s40, 1
      %p378 = por %p376, %p377
      %p380 = scmp.ne.s32.totalorder %s365, %s379
      %p381 = scmp.eq.s32.totalorder %s40, 0
      %p382 = por %p380, %p381
      %s384 = sadd.s32 %s383, 1
      %p387 = scmp.eq.s32.totalorder %s34, 1
      %p388 = scmp.ne.s32.totalorder %s383, %s385
      %p389 = scmp.eq.s32.totalorder %s34, 0
      %p390 = por %p388, %p389
      %p391 = scmp.ne.s32.totalorder %s383, %s385
      %p392 = scmp.eq.s32.totalorder %s39, 1
      %p393 = por %p391, %p392
      %p394 = scmp.ne.s32.totalorder %s385, %s386
      %p395 = scmp.eq.s32.totalorder %s39, 0
      %p396 = por %p394, %p395
      %p397 = scmp.ne.s32.totalorder %s385, %s386
      %p398 = scmp.eq.s32.totalorder %s40, 1
      %p399 = por %p397, %p398
      %p401 = scmp.ne.s32.totalorder %s386, %s400
      %p402 = scmp.eq.s32.totalorder %s40, 0
      %p403 = por %p401, %p402
      %s405 = sadd.s32 %s404, 1
      %p408 = scmp.eq.s32.totalorder %s34, 1
      %p409 = scmp.ne.s32.totalorder %s404, %s406
      %p410 = scmp.eq.s32.totalorder %s34, 0
      %p411 = por %p409, %p410
      %p412 = scmp.ne.s32.totalorder %s404, %s406
      %p413 = scmp.eq.s32.totalorder %s39, 1
      %p414 = por %p412, %p413
      %p415 = scmp.ne.s32.totalorder %s406, %s407
      %p416 = scmp.eq.s32.totalorder %s39, 0
      %p417 = por %p415, %p416
      %p418 = scmp.ne.s32.totalorder %s406, %s407
      %p419 = scmp.eq.s32.totalorder %s40, 1
      %p420 = por %p418, %p419
      %p422 = scmp.ne.s32.totalorder %s407, %s421
      %p423 = scmp.eq.s32.totalorder %s40, 0
      %p424 = por %p422, %p423
      %s426 = sadd.s32 %s425, 1
      %p429 = scmp.eq.s32.totalorder %s34, 1
      %p430 = scmp.ne.s32.totalorder %s425, %s427
      %p431 = scmp.eq.s32.totalorder %s34, 0
      %p432 = por %p430, %p431
      %p433 = scmp.ne.s32.totalorder %s425, %s427
      %p434 = scmp.eq.s32.totalorder %s39, 1
      %p435 = por %p433, %p434
      %p436 = scmp.ne.s32.totalorder %s427, %s428
      %p437 = scmp.eq.s32.totalorder %s39, 0
      %p438 = por %p436, %p437
      %p439 = scmp.ne.s32.totalorder %s427, %s428
      %p440 = scmp.eq.s32.totalorder %s40, 1
      %p441 = por %p439, %p440
      %p443 = scmp.ne.s32.totalorder %s428, %s442
      %p444 = scmp.eq.s32.totalorder %s40, 0
      %p445 = por %p443, %p444
      %s447 = sadd.s32 %s446, 1
      %p450 = scmp.eq.s32.totalorder %s34, 1
      %p451 = scmp.ne.s32.totalorder %s446, %s448
      %p452 = scmp.eq.s32.totalorder %s34, 0
      %p453 = por %p451, %p452
      %p454 = scmp.ne.s32.totalorder %s446, %s448
      %p455 = scmp.eq.s32.totalorder %s39, 1
      %p456 = por %p454, %p455
      %p457 = scmp.ne.s32.totalorder %s448, %s449
      %p458 = scmp.eq.s32.totalorder %s39, 0
      %p459 = por %p457, %p458
      %p460 = scmp.ne.s32.totalorder %s448, %s449
      %p461 = scmp.eq.s32.totalorder %s40, 1
      %p462 = por %p460, %p461
      %p464 = scmp.ne.s32.totalorder %s449, %s463
      %p465 = scmp.eq.s32.totalorder %s40, 0
      %p466 = por %p464, %p465
      %s468 = sadd.s32 %s467, 1
      %p471 = scmp.eq.s32.totalorder %s34, 1
      %p472 = scmp.ne.s32.totalorder %s467, %s469
      %p473 = scmp.eq.s32.totalorder %s34, 0
      %p474 = por %p472, %p473
      %p475 = scmp.ne.s32.totalorder %s467, %s469
      %p476 = scmp.eq.s32.totalorder %s39, 1
      %p477 = por %p475, %p476
      %p478 = scmp.ne.s32.totalorder %s469, %s470
      %p479 = scmp.eq.s32.totalorder %s39, 0
      %p480 = por %p478, %p479
      %p481 = scmp.ne.s32.totalorder %s469, %s470
      %p482 = scmp.eq.s32.totalorder %s40, 1
      %p483 = por %p481, %p482
      %p485 = scmp.ne.s32.totalorder %s470, %s484
      %p486 = scmp.eq.s32.totalorder %s40, 0
      %p487 = por %p485, %p486
      %s488 = ssub.s32 %s34, %s41
      %p489 = scmp.eq.s32.totalorder %s488, 0
      %s491 = sadd.s32 %s490, 1
      %s492 = scalar_select %p489, %s490, %s491
      %p495 = pneg %p489
      %p496 = scmp.eq.s32.totalorder %s34, 1
      %p497 = por %p495, %p496
      %p498 = scmp.ne.s32.totalorder %s490, %s493
      %p499 = scmp.eq.s32.totalorder %s34, 0
      %p500 = por %p498, %p499
      %p501 = scmp.ne.s32.totalorder %s490, %s493
      %p502 = scmp.eq.s32.totalorder %s39, 1
      %p503 = por %p501, %p502
      %p504 = scmp.ne.s32.totalorder %s493, %s494
      %p505 = scmp.eq.s32.totalorder %s39, 0
      %p506 = por %p504, %p505
      %p507 = scmp.ne.s32.totalorder %s493, %s494
      %p508 = scmp.eq.s32.totalorder %s40, 1
      %p509 = por %p507, %p508
      %p511 = scmp.ne.s32.totalorder %s494, %s510
      %p512 = scmp.eq.s32.totalorder %s40, 0
      %p513 = por %p511, %p512
      %s514 = ssub.s32 %s34, %s41
      %p515 = scmp.eq.s32.totalorder %s514, 0
      %s517 = sadd.s32 %s516, 1
      %s518 = scalar_select %p515, %s516, %s517
      %p521 = pneg %p515
      %p522 = scmp.eq.s32.totalorder %s34, 1
      %p523 = por %p521, %p522
      %p524 = scmp.ne.s32.totalorder %s516, %s519
      %p525 = scmp.eq.s32.totalorder %s34, 0
      %p526 = por %p524, %p525
      %p527 = scmp.ne.s32.totalorder %s516, %s519
      %p528 = scmp.eq.s32.totalorder %s39, 1
      %p529 = por %p527, %p528
      %p530 = scmp.ne.s32.totalorder %s519, %s520
      %p531 = scmp.eq.s32.totalorder %s39, 0
      %p532 = por %p530, %p531
      %p533 = scmp.ne.s32.totalorder %s519, %s520
      %p534 = scmp.eq.s32.totalorder %s40, 1
      %p535 = por %p533, %p534
      %p537 = scmp.ne.s32.totalorder %s520, %s536
      %p538 = scmp.eq.s32.totalorder %s40, 0
      %p539 = por %p537, %p538
      %p540 = scmp.le.s32.totalorder 1, %s34
      %p541 = scmp.lt.s32.totalorder %s34, 3
      %p542 = pnand %p540, %p541
      %p543 = pneg %p542
      // Predicated region
      $region9: #{forward.1} parent=5 // pred_check
        _
      $region10: #{forward.1} parent=5 // pred_check_branch
        %545 = sbr.rel (%p542) target = $region12
      $region11: #{forward.1} parent=5 // pred_region
        %s546 = ssub.s32 %s34, 1
        // Predicated region
        $region13: #{forward.1} parent=11 // pred_check
          %p547 = pneg %p55
        $region14: #{forward.1} parent=11 // pred_check_branch
          %549 = sbr.rel (%p547) target = $region16
        $region15: #{forward.1} parent=11 // pred_region
          %s551 = ssub.s32 32, 32
          %552 = vsyncadd [#allocation4], %s551
          %s554 = sshll.u32 %s0, 4
          %s555 = int_to_ptr.vmem [resolvable:$true] %s554
          %557 = dma.vmem_to_smem %s555, 32, [#allocation2], [#allocation4]
        $region16: #{forward.1} parent=11 // pred_fallthru
          _
        // Predicated region
        $region17: #{forward.1} parent=11 // pred_check
          %p558 = pneg %p76
        $region18: #{forward.1} parent=11 // pred_check_branch
          %560 = sbr.rel (%p558) target = $region20
        $region19: #{forward.1} parent=11 // pred_region
          %s562 = ssub.s32 32, 32
          %563 = vsyncadd [#allocation6], %s562
          %s565 = sshll.u32 %s1, 4
          %s566 = int_to_ptr.vmem [resolvable:$true] %s565
          %568 = dma.vmem_to_smem %s566, 32, [#allocation5], [#allocation6]
        $region20: #{forward.1} parent=11 // pred_fallthru
          _
        // Predicated region
        $region21: #{forward.1} parent=11 // pred_check
          %p569 = pneg %p123
        $region22: #{forward.1} parent=11 // pred_check_branch
          %571 = sbr.rel (%p569) target = $region24
        $region23: #{forward.1} parent=11 // pred_region
          _
        $region24: #{forward.1} parent=11 // pred_fallthru
          _
        // Predicated region
        $region25: #{forward.1} parent=11 // pred_check
          %p572 = pneg %p144
        $region26: #{forward.1} parent=11 // pred_check_branch
          %574 = sbr.rel (%p572) target = $region28
        $region27: #{forward.1} parent=11 // pred_region
          _
        $region28: #{forward.1} parent=11 // pred_fallthru
          _
        // Predicated region
        $region29: #{forward.1} parent=11 // pred_check
          %p575 = pneg %p165
        $region30: #{forward.1} parent=11 // pred_check_branch
          %577 = sbr.rel (%p575) target = $region32
        $region31: #{forward.1} parent=11 // pred_region
          _
        $region32: #{forward.1} parent=11 // pred_fallthru
          _
        // Predicated region
        $region33: #{forward.1} parent=11 // pred_check
          %p578 = pneg %p186
        $region34: #{forward.1} parent=11 // pred_check_branch
          %580 = sbr.rel (%p578) target = $region36
        $region35: #{forward.1} parent=11 // pred_region
          _
        $region36: #{forward.1} parent=11 // pred_fallthru
          _
        // Predicated region
        $region37: #{forward.1} parent=11 // pred_check
          %p581 = pneg %p207
        $region38: #{forward.1} parent=11 // pred_check_branch
          %583 = sbr.rel (%p581) target = $region40
        $region39: #{forward.1} parent=11 // pred_region
          _
        $region40: #{forward.1} parent=11 // pred_fallthru
          _
        // Predicated region
        $region41: #{forward.1} parent=11 // pred_check
          %p584 = pneg %p228
        $region42: #{forward.1} parent=11 // pred_check_branch
          %586 = sbr.rel (%p584) target = $region44
        $region43: #{forward.1} parent=11 // pred_region
          _
        $region44: #{forward.1} parent=11 // pred_fallthru
          _
        // Predicated region
        $region45: #{forward.1} parent=11 // pred_check
          %p587 = pneg %p249
        $region46: #{forward.1} parent=11 // pred_check_branch
          %589 = sbr.rel (%p587) target = $region48
        $region47: #{forward.1} parent=11 // pred_region
          _
        $region48: #{forward.1} parent=11 // pred_fallthru
          _
        // Predicated region
        $region49: #{forward.1} parent=11 // pred_check
          %p590 = pneg %p270
        $region50: #{forward.1} parent=11 // pred_check_branch
          %592 = sbr.rel (%p590) target = $region52
        $region51: #{forward.1} parent=11 // pred_region
          _
        $region52: #{forward.1} parent=11 // pred_fallthru
          _
        // Predicated region
        $region53: #{forward.1} parent=11 // pred_check
          %p593 = pneg %p291
        $region54: #{forward.1} parent=11 // pred_check_branch
          %595 = sbr.rel (%p593) target = $region56
        $region55: #{forward.1} parent=11 // pred_region
          _
        $region56: #{forward.1} parent=11 // pred_fallthru
          _
        // Predicated region
        $region57: #{forward.1} parent=11 // pred_check
          %p596 = pneg %p312
        $region58: #{forward.1} parent=11 // pred_check_branch
          %598 = sbr.rel (%p596) target = $region60
        $region59: #{forward.1} parent=11 // pred_region
          _
        $region60: #{forward.1} parent=11 // pred_fallthru
          _
        // Predicated region
        $region61: #{forward.1} parent=11 // pred_check
          %p599 = pneg %p333
        $region62: #{forward.1} parent=11 // pred_check_branch
          %601 = sbr.rel (%p599) target = $region64
        $region63: #{forward.1} parent=11 // pred_region
          _
        $region64: #{forward.1} parent=11 // pred_fallthru
          _
        // Predicated region
        $region65: #{forward.1} parent=11 // pred_check
          %p602 = pneg %p354
        $region66: #{forward.1} parent=11 // pred_check_branch
          %604 = sbr.rel (%p602) target = $region68
        $region67: #{forward.1} parent=11 // pred_region
          _
        $region68: #{forward.1} parent=11 // pred_fallthru
          _
        // Predicated region
        $region69: #{forward.1} parent=11 // pred_check
          %p605 = pneg %p375
        $region70: #{forward.1} parent=11 // pred_check_branch
          %607 = sbr.rel (%p605) target = $region72
        $region71: #{forward.1} parent=11 // pred_region
          _
        $region72: #{forward.1} parent=11 // pred_fallthru
          _
        // Predicated region
        $region73: #{forward.1} parent=11 // pred_check
          %p608 = pneg %p396
        $region74: #{forward.1} parent=11 // pred_check_branch
          %610 = sbr.rel (%p608) target = $region76
        $region75: #{forward.1} parent=11 // pred_region
          _
        $region76: #{forward.1} parent=11 // pred_fallthru
          _
        // Predicated region
        $region77: #{forward.1} parent=11 // pred_check
          %p611 = pneg %p417
        $region78: #{forward.1} parent=11 // pred_check_branch
          %613 = sbr.rel (%p611) target = $region80
        $region79: #{forward.1} parent=11 // pred_region
          _
        $region80: #{forward.1} parent=11 // pred_fallthru
          _
        // Predicated region
        $region81: #{forward.1} parent=11 // pred_check
          %p614 = pneg %p438
        $region82: #{forward.1} parent=11 // pred_check_branch
          %616 = sbr.rel (%p614) target = $region84
        $region83: #{forward.1} parent=11 // pred_region
          _
        $region84: #{forward.1} parent=11 // pred_fallthru
          _
        // Predicated region
        $region85: #{forward.1} parent=11 // pred_check
          %p617 = pneg %p459
        $region86: #{forward.1} parent=11 // pred_check_branch
          %619 = sbr.rel (%p617) target = $region88
        $region87: #{forward.1} parent=11 // pred_region
          _
        $region88: #{forward.1} parent=11 // pred_fallthru
          _
        // Predicated region
        $region89: #{forward.1} parent=11 // pred_check
          %p620 = pneg %p480
        $region90: #{forward.1} parent=11 // pred_check_branch
          %622 = sbr.rel (%p620) target = $region92
        $region91: #{forward.1} parent=11 // pred_region
          _
        $region92: #{forward.1} parent=11 // pred_fallthru
          _
      $region12: #{forward.1} parent=5 // pred_fallthru
        _
      %p623 = scmp.lt.s32.totalorder %s34, 2
      // Predicated region
      $region93: #{forward.1} parent=5 // pred_check
        %p624 = pneg %p623
      $region94: #{forward.1} parent=5 // pred_check_branch
        %626 = sbr.rel (%p624) target = $region96
      $region95: #{forward.1} parent=5 // pred_region
        // Predicated region
        $region97: #{forward.1} parent=95 // pred_check
          %p627 = pneg %p96
        $region98: #{forward.1} parent=95 // pred_check_branch
          %629 = sbr.rel (%p627) target = $region100
        $region99: #{forward.1} parent=95 // pred_region
          %p630 = scmp.lt.s32.totalorder %s34, 1
          %s631 = scalar_select %p630, %s34, 1
          %s632 = scalar_lea.vmem %s2, %s631
        $region100: #{forward.1} parent=95 // pred_fallthru
          _
      $region96: #{forward.1} parent=5 // pred_fallthru
        _
      %p633 = scmp.le.s32.totalorder 1, %s34
      %p634 = scmp.lt.s32.totalorder %s34, 3
      %p635 = pnand %p633, %p634
      %p636 = pneg %p635
      // Predicated region
      $region101: #{forward.1} parent=5 // pred_check
        _
      $region102: #{forward.1} parent=5 // pred_check_branch
        %638 = sbr.rel (%p635) target = $region104
      $region103: #{forward.1} parent=5 // pred_region
        %s639 = ssub.s32 %s34, 1
        // Predicated region
        $region105: #{forward.1} parent=103 // pred_check
          %p640 = pneg %p55
        $region106: #{forward.1} parent=103 // pred_check_branch
          %642 = sbr.rel (%p640) target = $region108
        $region107: #{forward.1} parent=103 // pred_region
          %643 = dma.done [#allocation4], 32
        $region108: #{forward.1} parent=103 // pred_fallthru
          _
        // Predicated region
        $region109: #{forward.1} parent=103 // pred_check
          %p644 = pneg %p76
        $region110: #{forward.1} parent=103 // pred_check_branch
          %646 = sbr.rel (%p644) target = $region112
        $region111: #{forward.1} parent=103 // pred_region
          %647 = dma.done [#allocation6], 32
        $region112: #{forward.1} parent=103 // pred_fallthru
          _
        %648 = sfence
        %p649 = pneg %p55
        %p650 = pneg %p52
        %p651 = pneg %p76
        %p652 = pneg %p73
        %p653 = scmp.lt.s32.totalorder %s39, 1
        %s654 = scalar_select %p653, %s39, 1
        %s655 = scalar_lea.vmem %s2, %s654
        %p656 = pneg %p102
        %p657 = pneg %p99
        %p658 = pneg %p123
        %p659 = pneg %p120
        %p660 = pneg %p144
        %p661 = pneg %p141
        %p662 = pneg %p165
        %p663 = pneg %p162
        %p664 = pneg %p186
        %p665 = pneg %p183
        %p666 = pneg %p207
        %p667 = pneg %p204
        %p668 = pneg %p228
        %p669 = pneg %p225
        %p670 = pneg %p249
        %p671 = pneg %p246
        %p672 = pneg %p270
        %p673 = pneg %p267
        %p674 = pneg %p291
        %p675 = pneg %p288
        %p676 = pneg %p312
        %p677 = pneg %p309
        %p678 = pneg %p333
        %p679 = pneg %p330
        %p680 = pneg %p354
        %p681 = pneg %p351
        %p682 = pneg %p375
        %p683 = pneg %p372
        %p684 = pneg %p396
        %p685 = pneg %p393
        %p686 = pneg %p417
        %p687 = pneg %p414
        %p688 = pneg %p438
        %p689 = pneg %p435
        %p690 = pneg %p459
        %p691 = pneg %p456
        %p692 = pneg %p480
        %p693 = pneg %p477
        %p694 = pneg %p506
        %p695 = pneg %p503
        %s696 = sand.u32 %s493, 1
        %s697 = scalar_lea.sflag [#allocation3], %s696
        %s698 = sand.u32 %s493, 1
        %s699 = smul.addr %s698, 16
        %s700 = scalar_lea.vmem [#allocation7], %s699
        %p701 = pneg %p532
        %p702 = pneg %p529
        %p703 = scmp.lt.s32.totalorder %s39, 1
        %s704 = scalar_select %p703, %s39, 1
        %s705 = scalar_lea.vmem %s22, %s704
        %p706 = scmp.lt.s32.totalorder %s39, 1
        %s707 = scalar_select %p706, %s39, 1
        %s708 = scalar_lea.vmem %s2, %s707
        %p709 = scmp.lt.s32.totalorder %s39, 1
        %s710 = scalar_select %p709, %s39, 1
        %s711 = scalar_lea.vmem %s22, %s710
        %v713 = vlaneseq
        %v714 = vshrl.u32 %v713, 7
        %s715 = smul.u32 %s39, 128
        %s716 = sld [smem:[#allocation5 + %s715]]
        %vm717 = vcmp.eq.s32.totalorder %v714, 0
        %v718 = vstv %s716
        %v719 = vsel %vm717, %v718, 0
        %s720 = sadd.s32 %s715, 1
        %s721 = sld [smem:[#allocation5 + %s720]]
        %vm722 = vcmp.eq.s32.totalorder %v714, 1
        %v723 = vstv %s721
        %v724 = vsel %vm722, %v723, %v719
        %v725 = vsel %vm717, %v723, 0
        %s726 = sadd.s32 %s715, 2
        %s727 = sld [smem:[#allocation5 + %s726]]
        %vm728 = vcmp.eq.s32.totalorder %v714, 2
        %v729 = vstv %s727
        %v730 = vsel %vm728, %v729, %v724
        %v731 = vsel %vm722, %v729, %v725
        %s732 = sadd.s32 %s715, 3
        %s733 = sld [smem:[#allocation5 + %s732]]
        %vm734 = vcmp.eq.s32.totalorder %v714, 3
        %v735 = vstv %s733
        %v736 = vsel %vm734, %v735, %v730
        %v737 = vsel %vm728, %v735, %v731
        %s738 = sadd.s32 %s715, 4
        %s739 = sld [smem:[#allocation5 + %s738]]
        %vm740 = vcmp.eq.s32.totalorder %v714, 4
        %v741 = vstv %s739
        %v742 = vsel %vm740, %v741, %v736
        %v743 = vsel %vm734, %v741, %v737
        %s744 = sadd.s32 %s715, 5
        %s745 = sld [smem:[#allocation5 + %s744]]
        %vm746 = vcmp.eq.s32.totalorder %v714, 5
        %v747 = vstv %s745
        %v748 = vsel %vm746, %v747, %v742
        %v749 = vsel %vm740, %v747, %v743
        %s750 = sadd.s32 %s715, 6
        %s751 = sld [smem:[#allocation5 + %s750]]
        %vm752 = vcmp.eq.s32.totalorder %v714, 6
        %v753 = vstv %s751
        %v754 = vsel %vm752, %v753, %v748
        %v755 = vsel %vm746, %v753, %v749
        %s756 = sadd.s32 %s715, 7
        %s757 = sld [smem:[#allocation5 + %s756]]
        %vm758 = vcmp.eq.s32.totalorder %v714, 7
        %v759 = vstv %s757
        %v760 = vsel %vm758, %v759, %v754
        %v761 = vsel %vm752, %v759, %v755
        %v762 = vlaneseq
        %v763 = vand.u32 %v762, 127
        %v764 = vadd.s32 %v763, 128
        %vm765 = vcmp.eq.s32.totalorder %v763, %v760
        %vm766 = vcmp.eq.s32.totalorder %v764, %v760
        %v767 = vsel %vm765, 1, 0
        %v768 = vsel %vm766, 1, 0
        %v769 = vcvt.s32.f32 %v767
        %v770 = vcvt.s32.f32 %v768
        %v771 = vld [vmem:[%s3] sm:$0xff]
        %v772 = vld [vmem:[%s3 + $0x8] sm:$0xff]
        %v773 = vld [vmem:[%s3 + $0x10] sm:$0xff]
        %v774 = vld [vmem:[%s3 + $0x18] sm:$0xff]
        %v775 = vld [vmem:[%s3 + $0x20] sm:$0xff]
        %v776 = vld [vmem:[%s3 + $0x28] sm:$0xff]
        %v777 = vld [vmem:[%s3 + $0x30] sm:$0xff]
        %v778 = vld [vmem:[%s3 + $0x38] sm:$0xff]
        %v779 = vld [vmem:[%s3 + $0x40] sm:$0xff]
        %v780 = vld [vmem:[%s3 + $0x48] sm:$0xff]
        %v781 = vld [vmem:[%s3 + $0x50] sm:$0xff]
        %v782 = vld [vmem:[%s3 + $0x58] sm:$0xff]
        %v783 = vld [vmem:[%s3 + $0x60] sm:$0xff]
        %v784 = vld [vmem:[%s3 + $0x68] sm:$0xff]
        %v785 = vld [vmem:[%s3 + $0x70] sm:$0xff]
        %v786 = vld [vmem:[%s3 + $0x78] sm:$0xff]
        %v787 = vld [vmem:[%s3 + $0x80] sm:$0xff]
        %v788 = vld [vmem:[%s3 + $0x88] sm:$0xff]
        %v789 = vld [vmem:[%s3 + $0x90] sm:$0xff]
        %v790 = vld [vmem:[%s3 + $0x98] sm:$0xff]
        %v791 = vld [vmem:[%s3 + $0xa0] sm:$0xff]
        %v792 = vld [vmem:[%s3 + $0xa8] sm:$0xff]
        %v793 = vld [vmem:[%s3 + $0xb0] sm:$0xff]
        %v794 = vld [vmem:[%s3 + $0xb8] sm:$0xff]
        %v795 = vld [vmem:[%s3 + $0xc0] sm:$0xff]
        %v796 = vld [vmem:[%s3 + $0xc8] sm:$0xff]
        %v797 = vld [vmem:[%s3 + $0xd0] sm:$0xff]
        %v798 = vld [vmem:[%s3 + $0xd8] sm:$0xff]
        %v799 = vld [vmem:[%s3 + $0xe0] sm:$0xff]
        %v800 = vld [vmem:[%s3 + $0xe8] sm:$0xff]
        %v801 = vld [vmem:[%s3 + $0xf0] sm:$0xff]
        %v802 = vld [vmem:[%s3 + $0xf8] sm:$0xff]
        %v803 = vld [vmem:[%s4] sm:$0xff]
        %804 = vmatprep.subr.mxu0 0.0
        %805 = vmatpush1.msra.mxu0 %v771
        %806 = vmatprep.subr.mxu0 0.0
        %807 = vmatpush1.msra.mxu0 %v772
        %808 = vmatprep.subr.mxu0 0.0
        %809 = vmatpush1.msra.mxu0 %v773
        %810 = vmatprep.subr.mxu0 0.0
        %811 = vmatpush1.msra.mxu0 %v774
        %812 = vmatprep.subr.mxu0 0.0
        %813 = vmatpush1.msra.mxu0 %v775
        %814 = vmatprep.subr.mxu0 0.0
        %815 = vmatpush1.msra.mxu0 %v776
        %816 = vmatprep.subr.mxu0 0.0
        %817 = vmatpush1.msra.mxu0 %v777
        %818 = vmatprep.subr.mxu0 0.0
        %819 = vmatpush1.msra.mxu0 %v778
        %820 = vmatprep.subr.mxu0 0.0
        %821 = vmatpush1.msra.mxu0 %v779
        %822 = vmatprep.subr.mxu0 0.0
        %823 = vmatpush1.msra.mxu0 %v780
        %824 = vmatprep.subr.mxu0 0.0
        %825 = vmatpush1.msra.mxu0 %v781
        %826 = vmatprep.subr.mxu0 0.0
        %827 = vmatpush1.msra.mxu0 %v782
        %828 = vmatprep.subr.mxu0 0.0
        %829 = vmatpush1.msra.mxu0 %v783
        %830 = vmatprep.subr.mxu0 0.0
        %831 = vmatpush1.msra.mxu0 %v784
        %832 = vmatprep.subr.mxu0 0.0
        %833 = vmatpush1.msra.mxu0 %v785
        %834 = vmatprep.subr.mxu0 0.0
        %835 = vmatpush1.msra.mxu0 %v786
        %836 = vmatprep.subr.mxu0 0.0
        %837 = vmatpush1.msra.mxu0 %v787
        %838 = vmatprep.subr.mxu0 0.0
        %839 = vmatpush1.msra.mxu0 %v788
        %840 = vmatprep.subr.mxu0 0.0
        %841 = vmatpush1.msra.mxu0 %v789
        %842 = vmatprep.subr.mxu0 0.0
        %843 = vmatpush1.msra.mxu0 %v790
        %844 = vmatprep.subr.mxu0 0.0
        %845 = vmatpush1.msra.mxu0 %v791
        %846 = vmatprep.subr.mxu0 0.0
        %847 = vmatpush1.msra.mxu0 %v792
        %848 = vmatprep.subr.mxu0 0.0
        %849 = vmatpush1.msra.mxu0 %v793
        %850 = vmatprep.subr.mxu0 0.0
        %851 = vmatpush1.msra.mxu0 %v794
        %852 = vmatprep.subr.mxu0 0.0
        %853 = vmatpush1.msra.mxu0 %v795
        %854 = vmatprep.subr.mxu0 0.0
        %855 = vmatpush1.msra.mxu0 %v796
        %856 = vmatprep.subr.mxu0 0.0
        %857 = vmatpush1.msra.mxu0 %v797
        %858 = vmatprep.subr.mxu0 0.0
        %859 = vmatpush1.msra.mxu0 %v798
        %860 = vmatprep.subr.mxu0 0.0
        %861 = vmatpush1.msra.mxu0 %v799
        %862 = vmatprep.subr.mxu0 0.0
        %863 = vmatpush1.msra.mxu0 %v800
        %864 = vmatprep.subr.mxu0 0.0
        %865 = vmatpush1.msra.mxu0 %v801
        %866 = vmatprep.subr.mxu0 0.0
        %867 = vmatpush1.msra.mxu0 %v802
        %868 = vmatprep.mubr.f32.mxu0 %v770
        %869 = vmatmul.mubr.f32.gmra.mrb[0].mxu0 %v769
        %v870 = vpop.f32.mrb[0].mxu0
        %v871 = vadd.f32 %v803, %v870
        %v872 = vpop.f32.mrb[0].mxu0
        %873 = vdwg.mxu0
        %vm874 = vcmp.le.s32.totalorder %v763, %v714
        %v875 = vld [vmem:[%s708] sm:$0x1]
        %v876 = vlaneseq
        %v877 = vshrl.u32 %v876, 7
        %v878 = vsub.s32 0, %v877
        %v879 = vrot.slane %v875, %v878
        %vm880 = vcmp.gt.s32.totalorder %v879, 0
        %vm881 = vmand %vm874, %vm880
        %v882 = vld [vmem:[%s5] sm:$0x1]
        %v883 = vld [vmem:[%s6] sm:$0x1]
        %vm884 = vcmask 523264
        %v885 = vsel %vm884, %v871, 0.0
        %886 = vadd.xlane.f32.xlu0 %v885
        %v887 = vpop.xlane.xlu0 %886
        %v888 = vrcp.pop 64.0
        %v889 = vmul.f32 %v887, %v888
        %v890 = vsub.f32 %v871, %v889
        %v891 = vmul.f32 %v890, %v890
        %v892 = vsel %vm884, %v891, 0.0
        %893 = vadd.xlane.f32.xlu0 %v892
        %v894 = vpop.xlane.xlu0 %893
        %v895 = vmul.f32 %v894, %v888
        %v896 = vadd.f32 %v895, 1e-05
        %v897 = vrsqrt.pop %v896
        %v898 = vmul.f32 %v890, %v897
        %v900 = vlaneseq
        %v901 = vshrl.u32 %v900, 7
        %v902 = vsub.s32 0, %v901
        %v903 = vrot.slane %v882, %v902
        %v905 = vmul.f32 %v898, %v903
        %v907 = vlaneseq
        %v908 = vshrl.u32 %v907, 7
        %v909 = vsub.s32 0, %v908
        %v910 = vrot.slane %v883, %v909
        %v912 = vadd.f32 %v905, %v910
        %v913 = vld [vmem:[%s7] sm:$0xff]
        %v914 = vld [vmem:[%s7 + $0x8] sm:$0xff]
        %v915 = vld [vmem:[%s7 + $0x10] sm:$0xff]
        %v916 = vld [vmem:[%s7 + $0x18] sm:$0xff]
        %v917 = vld [vmem:[%s7 + $0x20] sm:$0xff]
        %v918 = vld [vmem:[%s7 + $0x28] sm:$0xff]
        %v919 = vld [vmem:[%s7 + $0x30] sm:$0xff]
        %v920 = vld [vmem:[%s7 + $0x38] sm:$0xff]
        %v921 = vpack.c.bf16 %v912, %v912
        %v930 = vunpack.c.l.b16 %v913
        %v931 = vunpack.c.h.b16 %v913
        %v932 = vunpack.c.l.b16 %v914
        %v933 = vunpack.c.h.b16 %v914
        %v934 = vunpack.c.l.b16 %v915
        %v935 = vunpack.c.h.b16 %v915
        %v936 = vunpack.c.l.b16 %v916
        %v937 = vunpack.c.h.b16 %v916
        %v938 = vunpack.c.l.b16 %v917
        %v939 = vunpack.c.h.b16 %v917
        %v940 = vunpack.c.l.b16 %v918
        %v941 = vunpack.c.h.b16 %v918
        %v942 = vunpack.c.l.b16 %v919
        %v943 = vunpack.c.h.b16 %v919
        %v944 = vunpack.c.l.b16 %v920
        %v945 = vunpack.c.h.b16 %v920
        %v946 = vpack.c.b16 %v932, %v930
        %v947 = vpack.c.b16 %v933, %v931
        %v948 = vpack.c.b16 %v936, %v934
        %v949 = vpack.c.b16 %v937, %v935
        %v950 = vpack.c.b16 %v940, %v938
        %v951 = vpack.c.b16 %v941, %v939
        %v952 = vpack.c.b16 %v944, %v942
        %v953 = vpack.c.b16 %v945, %v943
        %v963 = vsel %vm884, %v921, 0
        %965 = vmatprep.subr.bf16.mxu0 %v947
        %966 = vmatpush1.bf16.msra.mxu0 %v946
        %967 = vmatprep.subr.bf16.mxu0 %v949
        %968 = vmatpush1.bf16.msra.mxu0 %v948
        %969 = vmatprep.subr.bf16.mxu0 %v951
        %970 = vmatpush1.bf16.msra.mxu0 %v950
        %971 = vmatprep.subr.bf16.mxu0 %v953
        %972 = vmatpush1.bf16.msra.mxu0 %v952
        %973 = vmatprep.subr.bf16.mxu0 0
        %974 = vmatpush1.bf16.msra.mxu0 0
        %975 = vmatprep.subr.bf16.mxu0 0
        %976 = vmatpush1.bf16.msra.mxu0 0
        %977 = vmatprep.subr.bf16.mxu0 0
        %978 = vmatpush1.bf16.msra.mxu0 0
        %979 = vmatprep.subr.bf16.mxu0 0
        %980 = vmatpush1.bf16.msra.mxu0 0
        %981 = vmatprep.subr.bf16.mxu0 0
        %982 = vmatpush1.bf16.msra.mxu0 0
        %983 = vmatprep.subr.bf16.mxu0 0
        %984 = vmatpush1.bf16.msra.mxu0 0
        %985 = vmatprep.subr.bf16.mxu0 0
        %986 = vmatpush1.bf16.msra.mxu0 0
        %987 = vmatprep.subr.bf16.mxu0 0
        %988 = vmatpush1.bf16.msra.mxu0 0
        %989 = vmatprep.subr.bf16.mxu0 0
        %990 = vmatpush1.bf16.msra.mxu0 0
        %991 = vmatprep.subr.bf16.mxu0 0
        %992 = vmatpush1.bf16.msra.mxu0 0
        %993 = vmatprep.subr.bf16.mxu0 0
        %994 = vmatpush1.bf16.msra.mxu0 0
        %995 = vmatprep.subr.bf16.mxu0 0
        %996 = vmatpush1.bf16.msra.mxu0 0
        %997 = vmatprep.mubr.bf16.mxu0 0
        %998 = vmatmul.mubr.bf16.gmra.mrb[0].mxu0 %v963
        %v999 = vpop.f32.mrb[0].mxu0
        %v1000 = vadd.f32 0.0, %v999
        %v1001 = vpop.f32.mrb[0].mxu0
        %v1002 = vadd.f32 0.0, %v1001
        %v1003 = vpop.f32.mrb[0].mxu0
        %v1004 = vpop.f32.mrb[0].mxu0
        %1005 = vdwg.mxu0
        %v1006 = vld [vmem:[%s8] sm:$0xf]
        %v1007 = vld [vmem:[%s8 + $0x4] sm:$0xf]
        %v1008 = vld [vmem:[%s8 + $0x8] sm:$0xf]
        %v1009 = vld [vmem:[%s8 + $0xc] sm:$0xf]
        %v1010 = vld [vmem:[%s8 + $0x10] sm:$0xf]
        %v1011 = vld [vmem:[%s8 + $0x14] sm:$0xf]
        %v1012 = vld [vmem:[%s8 + $0x18] sm:$0xf]
        %v1013 = vld [vmem:[%s8 + $0x1c] sm:$0xf]
        %v1014 = vld [vmem:[%s9] sm:$0x1]
        %v1016 = vlaneseq
        %v1017 = vshrl.u32 %v1016, 7
        %v1018 = vsub.s32 0, %v1017
        %v1019 = vrot.slane %v1014, %v1018
        %1022 = vrot.lane.b32.xlu0 %v1000, 64
        %v1023 = vpop.permute.xlu0 %1022
        %vm1024 = vcmask 261120
        %v1025 = vsel %vm1024, %v1000, 0
        %v1027 = vsel %vm1024, %v1023, 0
        %1029 = vmatprep.subr.mxu0 0.0
        %1030 = vmatpush1.xpose.msra.mxu0 %v1027
        %1031 = vmatprep.subr.mxu0 0.0
        %1032 = vmatpush1.xpose.msra.mxu0 0.0
        %1033 = vmatprep.subr.mxu0 0.0
        %1034 = vmatpush1.xpose.msra.mxu0 0.0
        %1035 = vmatprep.subr.mxu0 0.0
        %1036 = vmatpush1.xpose.msra.mxu0 0.0
        %1037 = vmatprep.subr.mxu0 0.0
        %1038 = vmatpush1.xpose.msra.mxu0 0.0
        %1039 = vmatprep.subr.mxu0 0.0
        %1040 = vmatpush1.xpose.msra.mxu0 0.0
        %1041 = vmatprep.subr.mxu0 0.0
        %1042 = vmatpush1.xpose.msra.mxu0 0.0
        %1043 = vmatprep.subr.mxu0 0.0
        %1044 = vmatpush1.xpose.msra.mxu0 0.0
        %1045 = vmatprep.subr.mxu0 0.0
        %1046 = vmatpush1.xpose.msra.mxu0 0.0
        %1047 = vmatprep.subr.mxu0 0.0
        %1048 = vmatpush1.xpose.msra.mxu0 0.0
        %1049 = vmatprep.subr.mxu0 0.0
        %1050 = vmatpush1.xpose.msra.mxu0 0.0
        %1051 = vmatprep.subr.mxu0 0.0
        %1052 = vmatpush1.xpose.msra.mxu0 0.0
        %1053 = vmatprep.subr.mxu0 0.0
        %1054 = vmatpush1.xpose.msra.mxu0 0.0
        %1055 = vmatprep.subr.mxu0 0.0
        %1056 = vmatpush1.xpose.msra.mxu0 0.0
        %1057 = vmatprep.subr.mxu0 0.0
        %1058 = vmatpush1.xpose.msra.mxu0 0.0
        %1059 = vmatprep.subr.mxu0 0.0
        %1060 = vmatpush1.xpose.msra.mxu0 0.0
        %1061 = vmatprep.subr.mxu0 0.0
        %1062 = vmatpush1.xpose.msra.mxu0 0.0
        %1063 = vmatprep.subr.mxu0 0.0
        %1064 = vmatpush1.xpose.msra.mxu0 0.0
        %1065 = vmatprep.subr.mxu0 0.0
        %1066 = vmatpush1.xpose.msra.mxu0 0.0
        %1067 = vmatprep.subr.mxu0 0.0
        %1068 = vmatpush1.xpose.msra.mxu0 0.0
        %1069 = vmatprep.subr.mxu0 0.0
        %1070 = vmatpush1.xpose.msra.mxu0 0.0
        %1071 = vmatprep.subr.mxu0 0.0
        %1072 = vmatpush1.xpose.msra.mxu0 0.0
        %1073 = vmatprep.subr.mxu0 0.0
        %1074 = vmatpush1.xpose.msra.mxu0 0.0
        %1075 = vmatprep.subr.mxu0 0.0
        %1076 = vmatpush1.xpose.msra.mxu0 0.0
        %1077 = vmatprep.subr.mxu0 0.0
        %1078 = vmatpush1.xpose.msra.mxu0 0.0
        %1079 = vmatprep.subr.mxu0 0.0
        %1080 = vmatpush1.xpose.msra.mxu0 0.0
        %1081 = vmatprep.subr.mxu0 0.0
        %1082 = vmatpush1.xpose.msra.mxu0 0.0
        %1083 = vmatprep.subr.mxu0 0.0
        %1084 = vmatpush1.xpose.msra.mxu0 0.0
        %1085 = vmatprep.subr.mxu0 0.0
        %1086 = vmatpush1.xpose.msra.mxu0 0.0
        %1087 = vmatprep.subr.mxu0 0.0
        %1088 = vmatpush1.xpose.msra.mxu0 0.0
        %1089 = vmatprep.subr.mxu0 0.0
        %1090 = vmatpush1.xpose.msra.mxu0 0.0
        %1091 = vmatprep.subr.mxu0 0.0
        %1092 = vmatpush1.xpose.msra.mxu0 0.0
        %1093 = vmatprep.mubr.f32.mxu0 0.0
        %1094 = vmatmul.mubr.f32.gmra.mrb[0].mxu0 %v1025
        %v1095 = vpop.f32.mrb[0].mxu0
        %v1096 = vadd.f32 0.0, %v1095
        %v1097 = vpop.f32.mrb[0].mxu0
        %1098 = vdwg.mxu0
        %v1099 = vsel %vm881, %v1096, -1e+09
        %vm1100 = vcmask 64512
        %v1101 = vsel %vm1100, %v1099, -inf
        %1102 = vmax.xlane.f32.xlu0 %v1101
        %v1103 = vpop.xlane.xlu0 %1102
        %v1104 = vsub.f32 %v1099, %v1103
        %v1105 = vmul.f32 %v1104, 1.442695
        %v1106 = vpow.pop %v1105
        %v1107 = vsel %vm1100, %v1106, 0.0
        %1108 = vadd.xlane.f32.xlu0 %v1107
        %v1109 = vpop.xlane.xlu0 %1108
        %v1110 = vrcp.pop %v1109
        %v1111 = vmul.f32 %v1106, %v1110
        %v1113 = vsel %vm1100, %v1111, 0
        %1115 = vmatprep.subr.mxu0 0.0
        %1116 = vmatpush1.msra.mxu0 %v1002
        %1117 = vmatprep.subr.mxu0 0.0
        %1118 = vmatpush1.msra.mxu0 0.0
        %1119 = vmatprep.subr.mxu0 0.0
        %1120 = vmatpush1.msra.mxu0 0.0
        %1121 = vmatprep.subr.mxu0 0.0
        %1122 = vmatpush1.msra.mxu0 0.0
        %1123 = vmatprep.subr.mxu0 0.0
        %1124 = vmatpush1.msra.mxu0 0.0
        %1125 = vmatprep.subr.mxu0 0.0
        %1126 = vmatpush1.msra.mxu0 0.0
        %1127 = vmatprep.subr.mxu0 0.0
        %1128 = vmatpush1.msra.mxu0 0.0
        %1129 = vmatprep.subr.mxu0 0.0
        %1130 = vmatpush1.msra.mxu0 0.0
        %1131 = vmatprep.subr.mxu0 0.0
        %1132 = vmatpush1.msra.mxu0 0.0
        %1133 = vmatprep.subr.mxu0 0.0
        %1134 = vmatpush1.msra.mxu0 0.0
        %1135 = vmatprep.subr.mxu0 0.0
        %1136 = vmatpush1.msra.mxu0 0.0
        %1137 = vmatprep.subr.mxu0 0.0
        %1138 = vmatpush1.msra.mxu0 0.0
        %1139 = vmatprep.subr.mxu0 0.0
        %1140 = vmatpush1.msra.mxu0 0.0
        %1141 = vmatprep.subr.mxu0 0.0
        %1142 = vmatpush1.msra.mxu0 0.0
        %1143 = vmatprep.subr.mxu0 0.0
        %1144 = vmatpush1.msra.mxu0 0.0
        %1145 = vmatprep.subr.mxu0 0.0
        %1146 = vmatpush1.msra.mxu0 0.0
        %1147 = vmatprep.subr.mxu0 0.0
        %1148 = vmatpush1.msra.mxu0 0.0
        %1149 = vmatprep.subr.mxu0 0.0
        %1150 = vmatpush1.msra.mxu0 0.0
        %1151 = vmatprep.subr.mxu0 0.0
        %1152 = vmatpush1.msra.mxu0 0.0
        %1153 = vmatprep.subr.mxu0 0.0
        %1154 = vmatpush1.msra.mxu0 0.0
        %1155 = vmatprep.subr.mxu0 0.0
        %1156 = vmatpush1.msra.mxu0 0.0
        %1157 = vmatprep.subr.mxu0 0.0
        %1158 = vmatpush1.msra.mxu0 0.0
        %1159 = vmatprep.subr.mxu0 0.0
        %1160 = vmatpush1.msra.mxu0 0.0
        %1161 = vmatprep.subr.mxu0 0.0
        %1162 = vmatpush1.msra.mxu0 0.0
        %1163 = vmatprep.subr.mxu0 0.0
        %1164 = vmatpush1.msra.mxu0 0.0
        %1165 = vmatprep.subr.mxu0 0.0
        %1166 = vmatpush1.msra.mxu0 0.0
        %1167 = vmatprep.subr.mxu0 0.0
        %1168 = vmatpush1.msra.mxu0 0.0
        %1169 = vmatprep.subr.mxu0 0.0
        %1170 = vmatpush1.msra.mxu0 0.0
        %1171 = vmatprep.subr.mxu0 0.0
        %1172 = vmatpush1.msra.mxu0 0.0
        %1173 = vmatprep.subr.mxu0 0.0
        %1174 = vmatpush1.msra.mxu0 0.0
        %1175 = vmatprep.subr.mxu0 0.0
        %1176 = vmatpush1.msra.mxu0 0.0
        %1177 = vmatprep.subr.mxu0 0.0
        %1178 = vmatpush1.msra.mxu0 0.0
        %1179 = vmatprep.mubr.f32.mxu0 0.0
        %1180 = vmatmul.mubr.f32.gmra.mrb[0].mxu0 %v1113
        %v1181 = vpop.f32.mrb[0].mxu0
        %v1182 = vadd.f32 0.0, %v1181
        %v1183 = vpop.f32.mrb[0].mxu0
        %1184 = vdwg.mxu0
        %v1185 = vpack.c.bf16 %v1182, %v1182
        %v1190 = vunpack.c.l.b16 %v1006
        %v1191 = vunpack.c.l.b16 %v1007
        %v1192 = vunpack.c.l.b16 %v1008
        %v1193 = vunpack.c.l.b16 %v1009
        %v1194 = vpack.c.b16 %v1191, %v1190
        %v1195 = vpack.c.b16 %v1193, %v1192
        %v1199 = vsel %vm1024, %v1185, 0
        %1201 = vmatprep.subr.bf16.mxu0 0
        %1202 = vmatpush1.bf16.msra.mxu0 %v1194
        %1203 = vmatprep.subr.bf16.mxu0 0
        %1204 = vmatpush1.bf16.msra.mxu0 %v1195
        %1205 = vmatprep.subr.bf16.mxu0 0
        %1206 = vmatpush1.bf16.msra.mxu0 0
        %1207 = vmatprep.subr.bf16.mxu0 0
        %1208 = vmatpush1.bf16.msra.mxu0 0
        %1209 = vmatprep.subr.bf16.mxu0 0
        %1210 = vmatpush1.bf16.msra.mxu0 0
        %1211 = vmatprep.subr.bf16.mxu0 0
        %1212 = vmatpush1.bf16.msra.mxu0 0
        %1213 = vmatprep.subr.bf16.mxu0 0
        %1214 = vmatpush1.bf16.msra.mxu0 0
        %1215 = vmatprep.subr.bf16.mxu0 0
        %1216 = vmatpush1.bf16.msra.mxu0 0
        %1217 = vmatprep.subr.bf16.mxu0 0
        %1218 = vmatpush1.bf16.msra.mxu0 0
        %1219 = vmatprep.subr.bf16.mxu0 0
        %1220 = vmatpush1.bf16.msra.mxu0 0
        %1221 = vmatprep.subr.bf16.mxu0 0
        %1222 = vmatpush1.bf16.msra.mxu0 0
        %1223 = vmatprep.subr.bf16.mxu0 0
        %1224 = vmatpush1.bf16.msra.mxu0 0
        %1225 = vmatprep.subr.bf16.mxu0 0
        %1226 = vmatpush1.bf16.msra.mxu0 0
        %1227 = vmatprep.subr.bf16.mxu0 0
        %1228 = vmatpush1.bf16.msra.mxu0 0
        %1229 = vmatprep.subr.bf16.mxu0 0
        %1230 = vmatpush1.bf16.msra.mxu0 0
        %1231 = vmatprep.subr.bf16.mxu0 0
        %1232 = vmatpush1.bf16.msra.mxu0 0
        %1233 = vmatprep.mubr.bf16.mxu0 0
        %1234 = vmatmul.mubr.bf16.gmra.mrb[0].mxu0 %v1199
        %v1235 = vpop.f32.mrb[0].mxu0
        %v1236 = vadd.f32 0.0, %v1235
        %v1237 = vpop.f32.mrb[0].mxu0
        %v1238 = vpop.f32.mrb[0].mxu0
        %v1239 = vpop.f32.mrb[0].mxu0
        %1240 = vdwg.mxu0
        %v1241 = vadd.f32 %v1019, %v1236
        %1242 = vrot.lane.b32.xlu0 %v1000, 96
        %v1243 = vpop.permute.xlu0 %1242
        %1244 = vrot.lane.b32.xlu0 %v1000, 32
        %v1245 = vpop.permute.xlu0 %1244
        %v1246 = vsel %vm1024, %v1243, 0
        %v1248 = vsel %vm1024, %v1245, 0
        %1250 = vmatprep.subr.mxu0 0.0
        %1251 = vmatpush1.xpose.msra.mxu0 %v1248
        %1252 = vmatprep.subr.mxu0 0.0
        %1253 = vmatpush1.xpose.msra.mxu0 0.0
        %1254 = vmatprep.subr.mxu0 0.0
        %1255 = vmatpush1.xpose.msra.mxu0 0.0
        %1256 = vmatprep.subr.mxu0 0.0
        %1257 = vmatpush1.xpose.msra.mxu0 0.0
        %1258 = vmatprep.subr.mxu0 0.0
        %1259 = vmatpush1.xpose.msra.mxu0 0.0
        %1260 = vmatprep.subr.mxu0 0.0
        %1261 = vmatpush1.xpose.msra.mxu0 0.0
        %1262 = vmatprep.subr.mxu0 0.0
        %1263 = vmatpush1.xpose.msra.mxu0 0.0
        %1264 = vmatprep.subr.mxu0 0.0
        %1265 = vmatpush1.xpose.msra.mxu0 0.0
        %1266 = vmatprep.subr.mxu0 0.0
        %1267 = vmatpush1.xpose.msra.mxu0 0.0
        %1268 = vmatprep.subr.mxu0 0.0
        %1269 = vmatpush1.xpose.msra.mxu0 0.0
        %1270 = vmatprep.subr.mxu0 0.0
        %1271 = vmatpush1.xpose.msra.mxu0 0.0
        %1272 = vmatprep.subr.mxu0 0.0
        %1273 = vmatpush1.xpose.msra.mxu0 0.0
        %1274 = vmatprep.subr.mxu0 0.0
        %1275 = vmatpush1.xpose.msra.mxu0 0.0
        %1276 = vmatprep.subr.mxu0 0.0
        %1277 = vmatpush1.xpose.msra.mxu0 0.0
        %1278 = vmatprep.subr.mxu0 0.0
        %1279 = vmatpush1.xpose.msra.mxu0 0.0
        %1280 = vmatprep.subr.mxu0 0.0
        %1281 = vmatpush1.xpose.msra.mxu0 0.0
        %1282 = vmatprep.subr.mxu0 0.0
        %1283 = vmatpush1.xpose.msra.mxu0 0.0
        %1284 = vmatprep.subr.mxu0 0.0
        %1285 = vmatpush1.xpose.msra.mxu0 0.0
        %1286 = vmatprep.subr.mxu0 0.0
        %1287 = vmatpush1.xpose.msra.mxu0 0.0
        %1288 = vmatprep.subr.mxu0 0.0
        %1289 = vmatpush1.xpose.msra.mxu0 0.0
        %1290 = vmatprep.subr.mxu0 0.0
        %1291 = vmatpush1.xpose.msra.mxu0 0.0
        %1292 = vmatprep.subr.mxu0 0.0
        %1293 = vmatpush1.xpose.msra.mxu0 0.0
        %1294 = vmatprep.subr.mxu0 0.0
        %1295 = vmatpush1.xpose.msra.mxu0 0.0
        %1296 = vmatprep.subr.mxu0 0.0
        %1297 = vmatpush1.xpose.msra.mxu0 0.0
        %1298 = vmatprep.subr.mxu0 0.0
        %1299 = vmatpush1.xpose.msra.mxu0 0.0
        %1300 = vmatprep.subr.mxu0 0.0
        %1301 = vmatpush1.xpose.msra.mxu0 0.0
        %1302 = vmatprep.subr.mxu0 0.0
        %1303 = vmatpush1.xpose.msra.mxu0 0.0
        %1304 = vmatprep.subr.mxu0 0.0
        %1305 = vmatpush1.xpose.msra.mxu0 0.0
        %1306 = vmatprep.subr.mxu0 0.0
        %1307 = vmatpush1.xpose.msra.mxu0 0.0
        %1308 = vmatprep.subr.mxu0 0.0
        %1309 = vmatpush1.xpose.msra.mxu0 0.0
        %1310 = vmatprep.subr.mxu0 0.0
        %1311 = vmatpush1.xpose.msra.mxu0 0.0
        %1312 = vmatprep.subr.mxu0 0.0
        %1313 = vmatpush1.xpose.msra.mxu0 0.0
        %1314 = vmatprep.mubr.f32.mxu0 0.0
        %1315 = vmatmul.mubr.f32.gmra.mrb[0].mxu0 %v1246
        %v1316 = vpop.f32.mrb[0].mxu0
        %v1317 = vadd.f32 0.0, %v1316
        %v1318 = vpop.f32.mrb[0].mxu0
        %1319 = vdwg.mxu0
        %v1320 = vsel %vm881, %v1317, -1e+09
        %v1321 = vsel %vm1100, %v1320, -inf
        %1322 = vmax.xlane.f32.xlu0 %v1321
        %v1323 = vpop.xlane.xlu0 %1322
        %v1324 = vsub.f32 %v1320, %v1323
        %v1325 = vmul.f32 %v1324, 1.442695
        %v1326 = vpow.pop %v1325
        %v1327 = vsel %vm1100, %v1326, 0.0
        %1328 = vadd.xlane.f32.xlu0 %v1327
        %v1329 = vpop.xlane.xlu0 %1328
        %v1330 = vrcp.pop %v1329
        %v1331 = vmul.f32 %v1326, %v1330
        %1333 = vrot.lane.b32.xlu0 %v1002, 96
        %v1334 = vpop.permute.xlu0 %1333
        %v1337 = vsel %vm1100, %v1331, 0
        %1339 = vmatprep.subr.mxu0 0.0
        %1340 = vmatpush1.msra.mxu0 %v1334
        %1341 = vmatprep.subr.mxu0 0.0
        %1342 = vmatpush1.msra.mxu0 0.0
        %1343 = vmatprep.subr.mxu0 0.0
        %1344 = vmatpush1.msra.mxu0 0.0
        %1345 = vmatprep.subr.mxu0 0.0
        %1346 = vmatpush1.msra.mxu0 0.0
        %1347 = vmatprep.subr.mxu0 0.0
        %1348 = vmatpush1.msra.mxu0 0.0
        %1349 = vmatprep.subr.mxu0 0.0
        %1350 = vmatpush1.msra.mxu0 0.0
        %1351 = vmatprep.subr.mxu0 0.0
        %1352 = vmatpush1.msra.mxu0 0.0
        %1353 = vmatprep.subr.mxu0 0.0
        %1354 = vmatpush1.msra.mxu0 0.0
        %1355 = vmatprep.subr.mxu0 0.0
        %1356 = vmatpush1.msra.mxu0 0.0
        %1357 = vmatprep.subr.mxu0 0.0
        %1358 = vmatpush1.msra.mxu0 0.0
        %1359 = vmatprep.subr.mxu0 0.0
        %1360 = vmatpush1.msra.mxu0 0.0
        %1361 = vmatprep.subr.mxu0 0.0
        %1362 = vmatpush1.msra.mxu0 0.0
        %1363 = vmatprep.subr.mxu0 0.0
        %1364 = vmatpush1.msra.mxu0 0.0
        %1365 = vmatprep.subr.mxu0 0.0
        %1366 = vmatpush1.msra.mxu0 0.0
        %1367 = vmatprep.subr.mxu0 0.0
        %1368 = vmatpush1.msra.mxu0 0.0
        %1369 = vmatprep.subr.mxu0 0.0
        %1370 = vmatpush1.msra.mxu0 0.0
        %1371 = vmatprep.subr.mxu0 0.0
        %1372 = vmatpush1.msra.mxu0 0.0
        %1373 = vmatprep.subr.mxu0 0.0
        %1374 = vmatpush1.msra.mxu0 0.0
        %1375 = vmatprep.subr.mxu0 0.0
        %1376 = vmatpush1.msra.mxu0 0.0
        %1377 = vmatprep.subr.mxu0 0.0
        %1378 = vmatpush1.msra.mxu0 0.0
        %1379 = vmatprep.subr.mxu0 0.0
        %1380 = vmatpush1.msra.mxu0 0.0
        %1381 = vmatprep.subr.mxu0 0.0
        %1382 = vmatpush1.msra.mxu0 0.0
        %1383 = vmatprep.subr.mxu0 0.0
        %1384 = vmatpush1.msra.mxu0 0.0
        %1385 = vmatprep.subr.mxu0 0.0
        %1386 = vmatpush1.msra.mxu0 0.0
        %1387 = vmatprep.subr.mxu0 0.0
        %1388 = vmatpush1.msra.mxu0 0.0
        %1389 = vmatprep.subr.mxu0 0.0
        %1390 = vmatpush1.msra.mxu0 0.0
        %1391 = vmatprep.subr.mxu0 0.0
        %1392 = vmatpush1.msra.mxu0 0.0
        %1393 = vmatprep.subr.mxu0 0.0
        %1394 = vmatpush1.msra.mxu0 0.0
        %1395 = vmatprep.subr.mxu0 0.0
        %1396 = vmatpush1.msra.mxu0 0.0
        %1397 = vmatprep.subr.mxu0 0.0
        %1398 = vmatpush1.msra.mxu0 0.0
        %1399 = vmatprep.subr.mxu0 0.0
        %1400 = vmatpush1.msra.mxu0 0.0
        %1401 = vmatprep.subr.mxu0 0.0
        %1402 = vmatpush1.msra.mxu0 0.0
        %1403 = vmatprep.mubr.f32.mxu0 0.0
        %1404 = vmatmul.mubr.f32.gmra.mrb[0].mxu0 %v1337
        %v1405 = vpop.f32.mrb[0].mxu0
        %v1406 = vadd.f32 0.0, %v1405
        %v1407 = vpop.f32.mrb[0].mxu0
        %1408 = vdwg.mxu0
        %v1409 = vpack.c.bf16 %v1406, %v1406
        %v1414 = vunpack.c.l.b16 %v1010
        %v1415 = vunpack.c.l.b16 %v1011
        %v1416 = vunpack.c.l.b16 %v1012
        %v1417 = vunpack.c.l.b16 %v1013
        %v1418 = vpack.c.b16 %v1415, %v1414
        %v1419 = vpack.c.b16 %v1417, %v1416
        %v1423 = vsel %vm1024, %v1409, 0
        %1425 = vmatprep.subr.bf16.mxu0 0
        %1426 = vmatpush1.bf16.msra.mxu0 %v1418
        %1427 = vmatprep.subr.bf16.mxu0 0
        %1428 = vmatpush1.bf16.msra.mxu0 %v1419
        %1429 = vmatprep.subr.bf16.mxu0 0
        %1430 = vmatpush1.bf16.msra.mxu0 0
        %1431 = vmatprep.subr.bf16.mxu0 0
        %1432 = vmatpush1.bf16.msra.mxu0 0
        %1433 = vmatprep.subr.bf16.mxu0 0
        %1434 = vmatpush1.bf16.msra.mxu0 0
        %1435 = vmatprep.subr.bf16.mxu0 0
        %1436 = vmatpush1.bf16.msra.mxu0 0
        %1437 = vmatprep.subr.bf16.mxu0 0
        %1438 = vmatpush1.bf16.msra.mxu0 0
        %1439 = vmatprep.subr.bf16.mxu0 0
        %1440 = vmatpush1.bf16.msra.mxu0 0
        %1441 = vmatprep.subr.bf16.mxu0 0
        %1442 = vmatpush1.bf16.msra.mxu0 0
        %1443 = vmatprep.subr.bf16.mxu0 0
        %1444 = vmatpush1.bf16.msra.mxu0 0
        %1445 = vmatprep.subr.bf16.mxu0 0
        %1446 = vmatpush1.bf16.msra.mxu0 0
        %1447 = vmatprep.subr.bf16.mxu0 0
        %1448 = vmatpush1.bf16.msra.mxu0 0
        %1449 = vmatprep.subr.bf16.mxu0 0
        %1450 = vmatpush1.bf16.msra.mxu0 0
        %1451 = vmatprep.subr.bf16.mxu0 0
        %1452 = vmatpush1.bf16.msra.mxu0 0
        %1453 = vmatprep.subr.bf16.mxu0 0
        %1454 = vmatpush1.bf16.msra.mxu0 0
        %1455 = vmatprep.subr.bf16.mxu0 0
        %1456 = vmatpush1.bf16.msra.mxu0 0
        %1457 = vmatprep.mubr.bf16.mxu0 0
        %1458 = vmatmul.mubr.bf16.gmra.mrb[0].mxu0 %v1423
        %v1459 = vpop.f32.mrb[0].mxu0
        %v1460 = vadd.f32 0.0, %v1459
        %v1461 = vpop.f32.mrb[0].mxu0
        %v1462 = vpop.f32.mrb[0].mxu0
        %v1463 = vpop.f32.mrb[0].mxu0
        %1464 = vdwg.mxu0
        %v1465 = vadd.f32 %v1241, %v1460
        %v1466 = vadd.f32 %v871, %v1465
        %v1467 = vld [vmem:[%s10] sm:$0x1]
        %v1468 = vld [vmem:[%s11] sm:$0x1]
        %v1469 = vsel %vm884, %v1466, 0.0
        %1470 = vadd.xlane.f32.xlu0 %v1469
        %v1471 = vpop.xlane.xlu0 %1470
        %v1472 = vmul.f32 %v1471, %v888
        %v1473 = vsub.f32 %v1466, %v1472
        %v1474 = vmul.f32 %v1473, %v1473
        %v1475 = vsel %vm884, %v1474, 0.0
        %1476 = vadd.xlane.f32.xlu0 %v1475
        %v1477 = vpop.xlane.xlu0 %1476
        %v1478 = vmul.f32 %v1477, %v888
        %v1479 = vadd.f32 %v1478, 1e-05
        %v1480 = vrsqrt.pop %v1479
        %v1481 = vmul.f32 %v1473, %v1480
        %v1483 = vlaneseq
        %v1484 = vshrl.u32 %v1483, 7
        %v1485 = vsub.s32 0, %v1484
        %v1486 = vrot.slane %v1467, %v1485
        %v1488 = vmul.f32 %v1481, %v1486
        %v1490 = vlaneseq
        %v1491 = vshrl.u32 %v1490, 7
        %v1492 = vsub.s32 0, %v1491
        %v1493 = vrot.slane %v1468, %v1492
        %v1495 = vadd.f32 %v1488, %v1493
        %v1496 = vld [vmem:[%s12] sm:$0xff]
        %v1497 = vld [vmem:[%s12 + $0x8] sm:$0xff]
        %v1498 = vld [vmem:[%s12 + $0x10] sm:$0xff]
        %v1499 = vld [vmem:[%s12 + $0x18] sm:$0xff]
        %v1500 = vld [vmem:[%s12 + $0x20] sm:$0xff]
        %v1501 = vld [vmem:[%s12 + $0x28] sm:$0xff]
        %v1502 = vld [vmem:[%s12 + $0x30] sm:$0xff]
        %v1503 = vld [vmem:[%s12 + $0x38] sm:$0xff]
        %v1504 = vpack.c.bf16 %v1495, %v1495
        %v1505 = vld [vmem:[%s13] sm:$0x3]
        %v1507 = vlaneseq
        %v1508 = vshrl.u32 %v1507, 7
        %v1509 = vsub.s32 0, %v1508
        %v1510 = vrot.slane %v1505, %v1509
        %v1511 = vlaneseq
        %v1512 = vshrl.u32 %v1511, 7
        %v1513 = vsub.s32 1, %v1512
        %v1514 = vrot.slane %v1505, %v1513
        %v1525 = vunpack.c.l.b16 %v1496
        %v1526 = vunpack.c.h.b16 %v1496
        %v1527 = vunpack.c.l.b16 %v1497
        %v1528 = vunpack.c.h.b16 %v1497
        %v1529 = vunpack.c.l.b16 %v1498
        %v1530 = vunpack.c.h.b16 %v1498
        %v1531 = vunpack.c.l.b16 %v1499
        %v1532 = vunpack.c.h.b16 %v1499
        %v1533 = vunpack.c.l.b16 %v1500
        %v1534 = vunpack.c.h.b16 %v1500
        %v1535 = vunpack.c.l.b16 %v1501
        %v1536 = vunpack.c.h.b16 %v1501
        %v1537 = vunpack.c.l.b16 %v1502
        %v1538 = vunpack.c.h.b16 %v1502
        %v1539 = vunpack.c.l.b16 %v1503
        %v1540 = vunpack.c.h.b16 %v1503
        %v1541 = vpack.c.b16 %v1527, %v1525
        %v1542 = vpack.c.b16 %v1528, %v1526
        %v1543 = vpack.c.b16 %v1531, %v1529
        %v1544 = vpack.c.b16 %v1532, %v1530
        %v1545 = vpack.c.b16 %v1535, %v1533
        %v1546 = vpack.c.b16 %v1536, %v1534
        %v1547 = vpack.c.b16 %v1539, %v1537
        %v1548 = vpack.c.b16 %v1540, %v1538
        %v1558 = vsel %vm884, %v1504, 0
        %1560 = vmatprep.subr.bf16.mxu0 %v1542
        %1561 = vmatpush1.bf16.msra.mxu0 %v1541
        %1562 = vmatprep.subr.bf16.mxu0 %v1544
        %1563 = vmatpush1.bf16.msra.mxu0 %v1543
        %1564 = vmatprep.subr.bf16.mxu0 %v1546
        %1565 = vmatpush1.bf16.msra.mxu0 %v1545
        %1566 = vmatprep.subr.bf16.mxu0 %v1548
        %1567 = vmatpush1.bf16.msra.mxu0 %v1547
        %1568 = vmatprep.subr.bf16.mxu0 0
        %1569 = vmatpush1.bf16.msra.mxu0 0
        %1570 = vmatprep.subr.bf16.mxu0 0
        %1571 = vmatpush1.bf16.msra.mxu0 0
        %1572 = vmatprep.subr.bf16.mxu0 0
        %1573 = vmatpush1.bf16.msra.mxu0 0
        %1574 = vmatprep.subr.bf16.mxu0 0
        %1575 = vmatpush1.bf16.msra.mxu0 0
        %1576 = vmatprep.subr.bf16.mxu0 0
        %1577 = vmatpush1.bf16.msra.mxu0 0
        %1578 = vmatprep.subr.bf16.mxu0 0
        %1579 = vmatpush1.bf16.msra.mxu0 0
        %1580 = vmatprep.subr.bf16.mxu0 0
        %1581 = vmatpush1.bf16.msra.mxu0 0
        %1582 = vmatprep.subr.bf16.mxu0 0
        %1583 = vmatpush1.bf16.msra.mxu0 0
        %1584 = vmatprep.subr.bf16.mxu0 0
        %1585 = vmatpush1.bf16.msra.mxu0 0
        %1586 = vmatprep.subr.bf16.mxu0 0
        %1587 = vmatpush1.bf16.msra.mxu0 0
        %1588 = vmatprep.subr.bf16.mxu0 0
        %1589 = vmatpush1.bf16.msra.mxu0 0
        %1590 = vmatprep.subr.bf16.mxu0 0
        %1591 = vmatpush1.bf16.msra.mxu0 0
        %1592 = vmatprep.mubr.bf16.mxu0 0
        %1593 = vmatmul.mubr.bf16.gmra.mrb[0].mxu0 %v1558
        %v1594 = vpop.f32.mrb[0].mxu0
        %v1595 = vadd.f32 %v1510, %v1594
        %v1596 = vpop.f32.mrb[0].mxu0
        %v1597 = vadd.f32 %v1514, %v1596
        %v1598 = vpop.f32.mrb[0].mxu0
        %v1599 = vpop.f32.mrb[0].mxu0
        %1600 = vdwg.mxu0
        %v1601 = vmul.f32 %v1595, 0.5
        %v1602 = vmul.f32 %v1597, 0.5
        %v1603 = vmul.f32 %v1595, 0.044715
        %v1604 = vmul.f32 %v1597, 0.044715
        %v1605 = vmul.f32 %v1603, %v1595
        %v1606 = vmul.f32 %v1604, %v1597
        %v1607 = vmul.f32 %v1605, %v1595
        %v1608 = vmul.f32 %v1606, %v1597
        %v1609 = vadd.f32 %v1595, %v1607
        %v1610 = vadd.f32 %v1597, %v1608
        %v1611 = vmul.f32 %v1609, 0.7978846
        %v1612 = vmul.f32 %v1610, 0.7978846
        %v1613 = vtanh.pop %v1611
        %v1614 = vtanh.pop %v1612
        %v1615 = vadd.f32 %v1613, 1.0
        %v1616 = vadd.f32 %v1614, 1.0
        %v1617 = vmul.f32 %v1601, %v1615
        %v1618 = vmul.f32 %v1602, %v1616
        %v1619 = vld [vmem:[%s14] sm:$0xf]
        %v1620 = vld [vmem:[%s14 + $0x4] sm:$0xf]
        %v1621 = vld [vmem:[%s14 + $0x8] sm:$0xf]
        %v1622 = vld [vmem:[%s14 + $0xc] sm:$0xf]
        %v1623 = vld [vmem:[%s14 + $0x10] sm:$0xf]
        %v1624 = vld [vmem:[%s14 + $0x14] sm:$0xf]
        %v1625 = vld [vmem:[%s14 + $0x18] sm:$0xf]
        %v1626 = vld [vmem:[%s14 + $0x1c] sm:$0xf]
        %v1627 = vld [vmem:[%s14 + $0x20] sm:$0xf]
        %v1628 = vld [vmem:[%s14 + $0x24] sm:$0xf]
        %v1629 = vld [vmem:[%s14 + $0x28] sm:$0xf]
        %v1630 = vld [vmem:[%s14 + $0x2c] sm:$0xf]
        %v1631 = vld [vmem:[%s14 + $0x30] sm:$0xf]
        %v1632 = vld [vmem:[%s14 + $0x34] sm:$0xf]
        %v1633 = vld [vmem:[%s14 + $0x38] sm:$0xf]
        %v1634 = vld [vmem:[%s14 + $0x3c] sm:$0xf]
        %v1635 = vld [vmem:[%s14 + $0x40] sm:$0xf]
        %v1636 = vld [vmem:[%s14 + $0x44] sm:$0xf]
        %v1637 = vld [vmem:[%s14 + $0x48] sm:$0xf]
        %v1638 = vld [vmem:[%s14 + $0x4c] sm:$0xf]
        %v1639 = vld [vmem:[%s14 + $0x50] sm:$0xf]
        %v1640 = vld [vmem:[%s14 + $0x54] sm:$0xf]
        %v1641 = vld [vmem:[%s14 + $0x58] sm:$0xf]
        %v1642 = vld [vmem:[%s14 + $0x5c] sm:$0xf]
        %v1643 = vld [vmem:[%s14 + $0x60] sm:$0xf]
        %v1644 = vld [vmem:[%s14 + $0x64] sm:$0xf]
        %v1645 = vld [vmem:[%s14 + $0x68] sm:$0xf]
        %v1646 = vld [vmem:[%s14 + $0x6c] sm:$0xf]
        %v1647 = vld [vmem:[%s14 + $0x70] sm:$0xf]
        %v1648 = vld [vmem:[%s14 + $0x74] sm:$0xf]
        %v1649 = vld [vmem:[%s14 + $0x78] sm:$0xf]
        %v1650 = vld [vmem:[%s14 + $0x7c] sm:$0xf]
        %v1651 = vpack.c.bf16 %v1617, %v1617
        %v1652 = vpack.c.bf16 %v1618, %v1618
        %v1685 = vunpack.c.l.b16 %v1619
        %v1686 = vunpack.c.l.b16 %v1620
        %v1687 = vunpack.c.l.b16 %v1621
        %v1688 = vunpack.c.l.b16 %v1622
        %v1689 = vunpack.c.l.b16 %v1623
        %v1690 = vunpack.c.l.b16 %v1624
        %v1691 = vunpack.c.l.b16 %v1625
        %v1692 = vunpack.c.l.b16 %v1626
        %v1693 = vunpack.c.l.b16 %v1627
        %v1694 = vunpack.c.l.b16 %v1628
        %v1695 = vunpack.c.l.b16 %v1629
        %v1696 = vunpack.c.l.b16 %v1630
        %v1697 = vunpack.c.l.b16 %v1631
        %v1698 = vunpack.c.l.b16 %v1632
        %v1699 = vunpack.c.l.b16 %v1633
        %v1700 = vunpack.c.l.b16 %v1634
        %v1701 = vunpack.c.l.b16 %v1635
        %v1702 = vunpack.c.l.b16 %v1636
        %v1703 = vunpack.c.l.b16 %v1637
        %v1704 = vunpack.c.l.b16 %v1638
        %v1705 = vunpack.c.l.b16 %v1639
        %v1706 = vunpack.c.l.b16 %v1640
        %v1707 = vunpack.c.l.b16 %v1641
        %v1708 = vunpack.c.l.b16 %v1642
        %v1709 = vunpack.c.l.b16 %v1643
        %v1710 = vunpack.c.l.b16 %v1644
        %v1711 = vunpack.c.l.b16 %v1645
        %v1712 = vunpack.c.l.b16 %v1646
        %v1713 = vunpack.c.l.b16 %v1647
        %v1714 = vunpack.c.l.b16 %v1648
        %v1715 = vunpack.c.l.b16 %v1649
        %v1716 = vunpack.c.l.b16 %v1650
        %v1717 = vpack.c.b16 %v1686, %v1685
        %v1718 = vpack.c.b16 %v1688, %v1687
        %v1719 = vpack.c.b16 %v1690, %v1689
        %v1720 = vpack.c.b16 %v1692, %v1691
        %v1721 = vpack.c.b16 %v1694, %v1693
        %v1722 = vpack.c.b16 %v1696, %v1695
        %v1723 = vpack.c.b16 %v1698, %v1697
        %v1724 = vpack.c.b16 %v1700, %v1699
        %v1725 = vpack.c.b16 %v1702, %v1701
        %v1726 = vpack.c.b16 %v1704, %v1703
        %v1727 = vpack.c.b16 %v1706, %v1705
        %v1728 = vpack.c.b16 %v1708, %v1707
        %v1729 = vpack.c.b16 %v1710, %v1709
        %v1730 = vpack.c.b16 %v1712, %v1711
        %v1731 = vpack.c.b16 %v1714, %v1713
        %v1732 = vpack.c.b16 %v1716, %v1715
        %1749 = vmatprep.subr.bf16.mxu0 0
        %1750 = vmatpush1.bf16.msra.mxu0 %v1717
        %1751 = vmatprep.subr.bf16.mxu0 0
        %1752 = vmatpush1.bf16.msra.mxu0 %v1718
        %1753 = vmatprep.subr.bf16.mxu0 0
        %1754 = vmatpush1.bf16.msra.mxu0 %v1719
        %1755 = vmatprep.subr.bf16.mxu0 0
        %1756 = vmatpush1.bf16.msra.mxu0 %v1720
        %1757 = vmatprep.subr.bf16.mxu0 0
        %1758 = vmatpush1.bf16.msra.mxu0 %v1721
        %1759 = vmatprep.subr.bf16.mxu0 0
        %1760 = vmatpush1.bf16.msra.mxu0 %v1722
        %1761 = vmatprep.subr.bf16.mxu0 0
        %1762 = vmatpush1.bf16.msra.mxu0 %v1723
        %1763 = vmatprep.subr.bf16.mxu0 0
        %1764 = vmatpush1.bf16.msra.mxu0 %v1724
        %1765 = vmatprep.subr.bf16.mxu0 0
        %1766 = vmatpush1.bf16.msra.mxu0 %v1725
        %1767 = vmatprep.subr.bf16.mxu0 0
        %1768 = vmatpush1.bf16.msra.mxu0 %v1726
        %1769 = vmatprep.subr.bf16.mxu0 0
        %1770 = vmatpush1.bf16.msra.mxu0 %v1727
        %1771 = vmatprep.subr.bf16.mxu0 0
        %1772 = vmatpush1.bf16.msra.mxu0 %v1728
        %1773 = vmatprep.subr.bf16.mxu0 0
        %1774 = vmatpush1.bf16.msra.mxu0 %v1729
        %1775 = vmatprep.subr.bf16.mxu0 0
        %1776 = vmatpush1.bf16.msra.mxu0 %v1730
        %1777 = vmatprep.subr.bf16.mxu0 0
        %1778 = vmatpush1.bf16.msra.mxu0 %v1731
        %1779 = vmatprep.subr.bf16.mxu0 0
        %1780 = vmatpush1.bf16.msra.mxu0 %v1732
        %1781 = vmatprep.mubr.bf16.mxu0 %v1652
        %1782 = vmatmul.mubr.bf16.gmra.mrb[0].mxu0 %v1651
        %v1783 = vpop.f32.mrb[0].mxu0
        %v1784 = vadd.f32 0.0, %v1783
        %v1785 = vpop.f32.mrb[0].mxu0
        %v1786 = vpop.f32.mrb[0].mxu0
        %v1787 = vpop.f32.mrb[0].mxu0
        %1788 = vdwg.mxu0
        %v1789 = vadd.f32 %v1466, %v1784
        %v1790 = vld [vmem:[%s15] sm:$0x1]
        %v1792 = vlaneseq
        %v1793 = vshrl.u32 %v1792, 7
        %v1794 = vsub.s32 0, %v1793
        %v1795 = vrot.slane %v1790, %v1794
        %v1797 = vadd.f32 %v1789, %v1795
        %s1798 = scalar_lea.vmem %s5, 1
        %v1799 = vld [vmem:[%s1798] sm:$0x1]
        %s1800 = scalar_lea.vmem %s6, 1
        %v1801 = vld [vmem:[%s1800] sm:$0x1]
        %v1802 = vsel %vm884, %v1797, 0.0
        %1803 = vadd.xlane.f32.xlu0 %v1802
        %v1804 = vpop.xlane.xlu0 %1803
        %v1805 = vmul.f32 %v1804, %v888
        %v1806 = vsub.f32 %v1797, %v1805
        %v1807 = vmul.f32 %v1806, %v1806
        %v1808 = vsel %vm884, %v1807, 0.0
        %1809 = vadd.xlane.f32.xlu0 %v1808
        %v1810 = vpop.xlane.xlu0 %1809
        %v1811 = vmul.f32 %v1810, %v888
        %v1812 = vadd.f32 %v1811, 1e-05
        %v1813 = vrsqrt.pop %v1812
        %v1814 = vmul.f32 %v1806, %v1813
        %v1816 = vlaneseq
        %v1817 = vshrl.u32 %v1816, 7
        %v1818 = vsub.s32 0, %v1817
        %v1819 = vrot.slane %v1799, %v1818
        %v1821 = vmul.f32 %v1814, %v1819
        %v1823 = vlaneseq
        %v1824 = vshrl.u32 %v1823, 7
        %v1825 = vsub.s32 0, %v1824
        %v1826 = vrot.slane %v1801, %v1825
        %v1828 = vadd.f32 %v1821, %v1826
        %s1829 = scalar_lea.vmem %s7, 64
        %v1830 = vld [vmem:[%s1829] sm:$0xff]
        %v1831 = vld [vmem:[%s1829 + $0x8] sm:$0xff]
        %v1832 = vld [vmem:[%s1829 + $0x10] sm:$0xff]
        %v1833 = vld [vmem:[%s1829 + $0x18] sm:$0xff]
        %v1834 = vld [vmem:[%s1829 + $0x20] sm:$0xff]
        %v1835 = vld [vmem:[%s1829 + $0x28] sm:$0xff]
        %v1836 = vld [vmem:[%s1829 + $0x30] sm:$0xff]
        %v1837 = vld [vmem:[%s1829 + $0x38] sm:$0xff]
        %v1838 = vpack.c.bf16 %v1828, %v1828
        %v1847 = vunpack.c.l.b16 %v1830
        %v1848 = vunpack.c.h.b16 %v1830
        %v1849 = vunpack.c.l.b16 %v1831
        %v1850 = vunpack.c.h.b16 %v1831
        %v1851 = vunpack.c.l.b16 %v1832
        %v1852 = vunpack.c.h.b16 %v1832
        %v1853 = vunpack.c.l.b16 %v1833
        %v1854 = vunpack.c.h.b16 %v1833
        %v1855 = vunpack.c.l.b16 %v1834
        %v1856 = vunpack.c.h.b16 %v1834
        %v1857 = vunpack.c.l.b16 %v1835
        %v1858 = vunpack.c.h.b16 %v1835
        %v1859 = vunpack.c.l.b16 %v1836
        %v1860 = vunpack.c.h.b16 %v1836
        %v1861 = vunpack.c.l.b16 %v1837
        %v1862 = vunpack.c.h.b16 %v1837
        %v1863 = vpack.c.b16 %v1849, %v1847
        %v1864 = vpack.c.b16 %v1850, %v1848
        %v1865 = vpack.c.b16 %v1853, %v1851
        %v1866 = vpack.c.b16 %v1854, %v1852
        %v1867 = vpack.c.b16 %v1857, %v1855
        %v1868 = vpack.c.b16 %v1858, %v1856
        %v1869 = vpack.c.b16 %v1861, %v1859
        %v1870 = vpack.c.b16 %v1862, %v1860
        %v1880 = vsel %vm884, %v1838, 0
        %1882 = vmatprep.subr.bf16.mxu0 %v1864
        %1883 = vmatpush1.bf16.msra.mxu0 %v1863
        %1884 = vmatprep.subr.bf16.mxu0 %v1866
        %1885 = vmatpush1.bf16.msra.mxu0 %v1865
        %1886 = vmatprep.subr.bf16.mxu0 %v1868
        %1887 = vmatpush1.bf16.msra.mxu0 %v1867
        %1888 = vmatprep.subr.bf16.mxu0 %v1870
        %1889 = vmatpush1.bf16.msra.mxu0 %v1869
        %1890 = vmatprep.subr.bf16.mxu0 0
        %1891 = vmatpush1.bf16.msra.mxu0 0
        %1892 = vmatprep.subr.bf16.mxu0 0
        %1893 = vmatpush1.bf16.msra.mxu0 0
        %1894 = vmatprep.subr.bf16.mxu0 0
        %1895 = vmatpush1.bf16.msra.mxu0 0
        %1896 = vmatprep.subr.bf16.mxu0 0
        %1897 = vmatpush1.bf16.msra.mxu0 0
        %1898 = vmatprep.subr.bf16.mxu0 0
        %1899 = vmatpush1.bf16.msra.mxu0 0
        %1900 = vmatprep.subr.bf16.mxu0 0
        %1901 = vmatpush1.bf16.msra.mxu0 0
        %1902 = vmatprep.subr.bf16.mxu0 0
        %1903 = vmatpush1.bf16.msra.mxu0 0
        %1904 = vmatprep.subr.bf16.mxu0 0
        %1905 = vmatpush1.bf16.msra.mxu0 0
        %1906 = vmatprep.subr.bf16.mxu0 0
        %1907 = vmatpush1.bf16.msra.mxu0 0
        %1908 = vmatprep.subr.bf16.mxu0 0
        %1909 = vmatpush1.bf16.msra.mxu0 0
        %1910 = vmatprep.subr.bf16.mxu0 0
        %1911 = vmatpush1.bf16.msra.mxu0 0
        %1912 = vmatprep.subr.bf16.mxu0 0
        %1913 = vmatpush1.bf16.msra.mxu0 0
        %1914 = vmatprep.mubr.bf16.mxu0 0
        %1915 = vmatmul.mubr.bf16.gmra.mrb[0].mxu0 %v1880
        %v1916 = vpop.f32.mrb[0].mxu0
        %v1917 = vadd.f32 0.0, %v1916
        %v1918 = vpop.f32.mrb[0].mxu0
        %v1919 = vadd.f32 0.0, %v1918
        %v1920 = vpop.f32.mrb[0].mxu0
        %v1921 = vpop.f32.mrb[0].mxu0
        %1922 = vdwg.mxu0
        %s1923 = scalar_lea.vmem %s8, 32
        %v1924 = vld [vmem:[%s1923] sm:$0xf]
        %v1925 = vld [vmem:[%s1923 + $0x4] sm:$0xf]
        %v1926 = vld [vmem:[%s1923 + $0x8] sm:$0xf]
        %v1927 = vld [vmem:[%s1923 + $0xc] sm:$0xf]
        %v1928 = vld [vmem:[%s1923 + $0x10] sm:$0xf]
        %v1929 = vld [vmem:[%s1923 + $0x14] sm:$0xf]
        %v1930 = vld [vmem:[%s1923 + $0x18] sm:$0xf]
        %v1931 = vld [vmem:[%s1923 + $0x1c] sm:$0xf]
        %s1932 = scalar_lea.vmem %s9, 1
        %v1933 = vld [vmem:[%s1932] sm:$0x1]
        %v1935 = vlaneseq
        %v1936 = vshrl.u32 %v1935, 7
        %v1937 = vsub.s32 0, %v1936
        %v1938 = vrot.slane %v1933, %v1937
        %1941 = vrot.lane.b32.xlu0 %v1917, 64
        %v1942 = vpop.permute.xlu0 %1941
        %v1943 = vsel %vm1024, %v1917, 0
        %v1945 = vsel %vm1024, %v1942, 0
        %1947 = vmatprep.subr.mxu0 0.0
        %1948 = vmatpush1.xpose.msra.mxu0 %v1945
        %1949 = vmatprep.subr.mxu0 0.0
        %1950 = vmatpush1.xpose.msra.mxu0 0.0
        %1951 = vmatprep.subr.mxu0 0.0
        %1952 = vmatpush1.xpose.msra.mxu0 0.0
        %1953 = vmatprep.subr.mxu0 0.0
        %1954 = vmatpush1.xpose.msra.mxu0 0.0
        %1955 = vmatprep.subr.mxu0 0.0
        %1956 = vmatpush1.xpose.msra.mxu0 0.0
        %1957 = vmatprep.subr.mxu0 0.0
        %1958 = vmatpush1.xpose.msra.mxu0 0.0
        %1959 = vmatprep.subr.mxu0 0.0
        %1960 = vmatpush1.xpose.msra.mxu0 0.0
        %1961 = vmatprep.subr.mxu0 0.0
        %1962 = vmatpush1.xpose.msra.mxu0 0.0
        %1963 = vmatprep.subr.mxu0 0.0
        %1964 = vmatpush1.xpose.msra.mxu0 0.0
        %1965 = vmatprep.subr.mxu0 0.0
        %1966 = vmatpush1.xpose.msra.mxu0 0.0
        %1967 = vmatprep.subr.mxu0 0.0
        %1968 = vmatpush1.xpose.msra.mxu0 0.0
        %1969 = vmatprep.subr.mxu0 0.0
        %1970 = vmatpush1.xpose.msra.mxu0 0.0
        %1971 = vmatprep.subr.mxu0 0.0
        %1972 = vmatpush1.xpose.msra.mxu0 0.0
        %1973 = vmatprep.subr.mxu0 0.0
        %1974 = vmatpush1.xpose.msra.mxu0 0.0
        %1975 = vmatprep.subr.mxu0 0.0
        %1976 = vmatpush1.xpose.msra.mxu0 0.0
        %1977 = vmatprep.subr.mxu0 0.0
        %1978 = vmatpush1.xpose.msra.mxu0 0.0
        %1979 = vmatprep.subr.mxu0 0.0
        %1980 = vmatpush1.xpose.msra.mxu0 0.0
        %1981 = vmatprep.subr.mxu0 0.0
        %1982 = vmatpush1.xpose.msra.mxu0 0.0
        %1983 = vmatprep.subr.mxu0 0.0
        %1984 = vmatpush1.xpose.msra.mxu0 0.0
        %1985 = vmatprep.subr.mxu0 0.0
        %1986 = vmatpush1.xpose.msra.mxu0 0.0
        %1987 = vmatprep.subr.mxu0 0.0
        %1988 = vmatpush1.xpose.msra.mxu0 0.0
        %1989 = vmatprep.subr.mxu0 0.0
        %1990 = vmatpush1.xpose.msra.mxu0 0.0
        %1991 = vmatprep.subr.mxu0 0.0
        %1992 = vmatpush1.xpose.msra.mxu0 0.0
        %1993 = vmatprep.subr.mxu0 0.0
        %1994 = vmatpush1.xpose.msra.mxu0 0.0
        %1995 = vmatprep.subr.mxu0 0.0
        %1996 = vmatpush1.xpose.msra.mxu0 0.0
        %1997 = vmatprep.subr.mxu0 0.0
        %1998 = vmatpush1.xpose.msra.mxu0 0.0
        %1999 = vmatprep.subr.mxu0 0.0
        %2000 = vmatpush1.xpose.msra.mxu0 0.0
        %2001 = vmatprep.subr.mxu0 0.0
        %2002 = vmatpush1.xpose.msra.mxu0 0.0
        %2003 = vmatprep.subr.mxu0 0.0
        %2004 = vmatpush1.xpose.msra.mxu0 0.0
        %2005 = vmatprep.subr.mxu0 0.0
        %2006 = vmatpush1.xpose.msra.mxu0 0.0
        %2007 = vmatprep.subr.mxu0 0.0
        %2008 = vmatpush1.xpose.msra.mxu0 0.0
        %2009 = vmatprep.subr.mxu0 0.0
        %2010 = vmatpush1.xpose.msra.mxu0 0.0
        %2011 = vmatprep.mubr.f32.mxu0 0.0
        %2012 = vmatmul.mubr.f32.gmra.mrb[0].mxu0 %v1943
        %v2013 = vpop.f32.mrb[0].mxu0
        %v2014 = vadd.f32 0.0, %v2013
        %v2015 = vpop.f32.mrb[0].mxu0
        %2016 = vdwg.mxu0
        %v2017 = vsel %vm881, %v2014, -1e+09
        %v2018 = vsel %vm1100, %v2017, -inf
        %2019 = vmax.xlane.f32.xlu0 %v2018
        %v2020 = vpop.xlane.xlu0 %2019
        %v2021 = vsub.f32 %v2017, %v2020
        %v2022 = vmul.f32 %v2021, 1.442695
        %v2023 = vpow.pop %v2022
        %v2024 = vsel %vm1100, %v2023, 0.0
        %2025 = vadd.xlane.f32.xlu0 %v2024
        %v2026 = vpop.xlane.xlu0 %2025
        %v2027 = vrcp.pop %v2026
        %v2028 = vmul.f32 %v2023, %v2027
        %v2030 = vsel %vm1100, %v2028, 0
        %2032 = vmatprep.subr.mxu0 0.0
        %2033 = vmatpush1.msra.mxu0 %v1919
        %2034 = vmatprep.subr.mxu0 0.0
        %2035 = vmatpush1.msra.mxu0 0.0
        %2036 = vmatprep.subr.mxu0 0.0
        %2037 = vmatpush1.msra.mxu0 0.0
        %2038 = vmatprep.subr.mxu0 0.0
        %2039 = vmatpush1.msra.mxu0 0.0
        %2040 = vmatprep.subr.mxu0 0.0
        %2041 = vmatpush1.msra.mxu0 0.0
        %2042 = vmatprep.subr.mxu0 0.0
        %2043 = vmatpush1.msra.mxu0 0.0
        %2044 = vmatprep.subr.mxu0 0.0
        %2045 = vmatpush1.msra.mxu0 0.0
        %2046 = vmatprep.subr.mxu0 0.0
        %2047 = vmatpush1.msra.mxu0 0.0
        %2048 = vmatprep.subr.mxu0 0.0
        %2049 = vmatpush1.msra.mxu0 0.0
        %2050 = vmatprep.subr.mxu0 0.0
        %2051 = vmatpush1.msra.mxu0 0.0
        %2052 = vmatprep.subr.mxu0 0.0
        %2053 = vmatpush1.msra.mxu0 0.0
        %2054 = vmatprep.subr.mxu0 0.0
        %2055 = vmatpush1.msra.mxu0 0.0
        %2056 = vmatprep.subr.mxu0 0.0
        %2057 = vmatpush1.msra.mxu0 0.0
        %2058 = vmatprep.subr.mxu0 0.0
        %2059 = vmatpush1.msra.mxu0 0.0
        %2060 = vmatprep.subr.mxu0 0.0
        %2061 = vmatpush1.msra.mxu0 0.0
        %2062 = vmatprep.subr.mxu0 0.0
        %2063 = vmatpush1.msra.mxu0 0.0
        %2064 = vmatprep.subr.mxu0 0.0
        %2065 = vmatpush1.msra.mxu0 0.0
        %2066 = vmatprep.subr.mxu0 0.0
        %2067 = vmatpush1.msra.mxu0 0.0
        %2068 = vmatprep.subr.mxu0 0.0
        %2069 = vmatpush1.msra.mxu0 0.0
        %2070 = vmatprep.subr.mxu0 0.0
        %2071 = vmatpush1.msra.mxu0 0.0
        %2072 = vmatprep.subr.mxu0 0.0
        %2073 = vmatpush1.msra.mxu0 0.0
        %2074 = vmatprep.subr.mxu0 0.0
        %2075 = vmatpush1.msra.mxu0 0.0
        %2076 = vmatprep.subr.mxu0 0.0
        %2077 = vmatpush1.msra.mxu0 0.0
        %2078 = vmatprep.subr.mxu0 0.0
        %2079 = vmatpush1.msra.mxu0 0.0
        %2080 = vmatprep.subr.mxu0 0.0
        %2081 = vmatpush1.msra.mxu0 0.0
        %2082 = vmatprep.subr.mxu0 0.0
        %2083 = vmatpush1.msra.mxu0 0.0
        %2084 = vmatprep.subr.mxu0 0.0
        %2085 = vmatpush1.msra.mxu0 0.0
        %2086 = vmatprep.subr.mxu0 0.0
        %2087 = vmatpush1.msra.mxu0 0.0
        %2088 = vmatprep.subr.mxu0 0.0
        %2089 = vmatpush1.msra.mxu0 0.0
        %2090 = vmatprep.subr.mxu0 0.0
        %2091 = vmatpush1.msra.mxu0 0.0
        %2092 = vmatprep.subr.mxu0 0.0
        %2093 = vmatpush1.msra.mxu0 0.0
        %2094 = vmatprep.subr.mxu0 0.0
        %2095 = vmatpush1.msra.mxu0 0.0
        %2096 = vmatprep.mubr.f32.mxu0 0.0
        %2097 = vmatmul.mubr.f32.gmra.mrb[0].mxu0 %v2030
        %v2098 = vpop.f32.mrb[0].mxu0
        %v2099 = vadd.f32 0.0, %v2098
        %v2100 = vpop.f32.mrb[0].mxu0
        %2101 = vdwg.mxu0
        %v2102 = vpack.c.bf16 %v2099, %v2099
        %v2107 = vunpack.c.l.b16 %v1924
        %v2108 = vunpack.c.l.b16 %v1925
        %v2109 = vunpack.c.l.b16 %v1926
        %v2110 = vunpack.c.l.b16 %v1927
        %v2111 = vpack.c.b16 %v2108, %v2107
        %v2112 = vpack.c.b16 %v2110, %v2109
        %v2116 = vsel %vm1024, %v2102, 0
        %2118 = vmatprep.subr.bf16.mxu0 0
        %2119 = vmatpush1.bf16.msra.mxu0 %v2111
        %2120 = vmatprep.subr.bf16.mxu0 0
        %2121 = vmatpush1.bf16.msra.mxu0 %v2112
        %2122 = vmatprep.subr.bf16.mxu0 0
        %2123 = vmatpush1.bf16.msra.mxu0 0
        %2124 = vmatprep.subr.bf16.mxu0 0
        %2125 = vmatpush1.bf16.msra.mxu0 0
        %2126 = vmatprep.subr.bf16.mxu0 0
        %2127 = vmatpush1.bf16.msra.mxu0 0
        %2128 = vmatprep.subr.bf16.mxu0 0
        %2129 = vmatpush1.bf16.msra.mxu0 0
        %2130 = vmatprep.subr.bf16.mxu0 0
        %2131 = vmatpush1.bf16.msra.mxu0 0
        %2132 = vmatprep.subr.bf16.mxu0 0
        %2133 = vmatpush1.bf16.msra.mxu0 0
        %2134 = vmatprep.subr.bf16.mxu0 0
        %2135 = vmatpush1.bf16.msra.mxu0 0
        %2136 = vmatprep.subr.bf16.mxu0 0
        %2137 = vmatpush1.bf16.msra.mxu0 0
        %2138 = vmatprep.subr.bf16.mxu0 0
        %2139 = vmatpush1.bf16.msra.mxu0 0
        %2140 = vmatprep.subr.bf16.mxu0 0
        %2141 = vmatpush1.bf16.msra.mxu0 0
        %2142 = vmatprep.subr.bf16.mxu0 0
        %2143 = vmatpush1.bf16.msra.mxu0 0
        %2144 = vmatprep.subr.bf16.mxu0 0
        %2145 = vmatpush1.bf16.msra.mxu0 0
        %2146 = vmatprep.subr.bf16.mxu0 0
        %2147 = vmatpush1.bf16.msra.mxu0 0
        %2148 = vmatprep.subr.bf16.mxu0 0
        %2149 = vmatpush1.bf16.msra.mxu0 0
        %2150 = vmatprep.mubr.bf16.mxu0 0
        %2151 = vmatmul.mubr.bf16.gmra.mrb[0].mxu0 %v2116
        %v2152 = vpop.f32.mrb[0].mxu0
        %v2153 = vadd.f32 0.0, %v2152
        %v2154 = vpop.f32.mrb[0].mxu0
        %v2155 = vpop.f32.mrb[0].mxu0
        %v2156 = vpop.f32.mrb[0].mxu0
        %2157 = vdwg.mxu0
        %v2158 = vadd.f32 %v1938, %v2153
        %2159 = vrot.lane.b32.xlu0 %v1917, 96
        %v2160 = vpop.permute.xlu0 %2159
        %2161 = vrot.lane.b32.xlu0 %v1917, 32
        %v2162 = vpop.permute.xlu0 %2161
        %v2163 = vsel %vm1024, %v2160, 0
        %v2165 = vsel %vm1024, %v2162, 0
        %2167 = vmatprep.subr.mxu0 0.0
        %2168 = vmatpush1.xpose.msra.mxu0 %v2165
        %2169 = vmatprep.subr.mxu0 0.0
        %2170 = vmatpush1.xpose.msra.mxu0 0.0
        %2171 = vmatprep.subr.mxu0 0.0
        %2172 = vmatpush1.xpose.msra.mxu0 0.0
        %2173 = vmatprep.subr.mxu0 0.0
        %2174 = vmatpush1.xpose.msra.mxu0 0.0
        %2175 = vmatprep.subr.mxu0 0.0
        %2176 = vmatpush1.xpose.msra.mxu0 0.0
        %2177 = vmatprep.subr.mxu0 0.0
        %2178 = vmatpush1.xpose.msra.mxu0 0.0
        %2179 = vmatprep.subr.mxu0 0.0
        %2180 = vmatpush1.xpose.msra.mxu0 0.0
        %2181 = vmatprep.subr.mxu0 0.0
        %2182 = vmatpush1.xpose.msra.mxu0 0.0
        %2183 = vmatprep.subr.mxu0 0.0
        %2184 = vmatpush1.xpose.msra.mxu0 0.0
        %2185 = vmatprep.subr.mxu0 0.0
        %2186 = vmatpush1.xpose.msra.mxu0 0.0
        %2187 = vmatprep.subr.mxu0 0.0
        %2188 = vmatpush1.xpose.msra.mxu0 0.0
        %2189 = vmatprep.subr.mxu0 0.0
        %2190 = vmatpush1.xpose.msra.mxu0 0.0
        %2191 = vmatprep.subr.mxu0 0.0
        %2192 = vmatpush1.xpose.msra.mxu0 0.0
        %2193 = vmatprep.subr.mxu0 0.0
        %2194 = vmatpush1.xpose.msra.mxu0 0.0
        %2195 = vmatprep.subr.mxu0 0.0
        %2196 = vmatpush1.xpose.msra.mxu0 0.0
        %2197 = vmatprep.subr.mxu0 0.0
        %2198 = vmatpush1.xpose.msra.mxu0 0.0
        %2199 = vmatprep.subr.mxu0 0.0
        %2200 = vmatpush1.xpose.msra.mxu0 0.0
        %2201 = vmatprep.subr.mxu0 0.0
        %2202 = vmatpush1.xpose.msra.mxu0 0.0
        %2203 = vmatprep.subr.mxu0 0.0
        %2204 = vmatpush1.xpose.msra.mxu0 0.0
        %2205 = vmatprep.subr.mxu0 0.0
        %2206 = vmatpush1.xpose.msra.mxu0 0.0
        %2207 = vmatprep.subr.mxu0 0.0
        %2208 = vmatpush1.xpose.msra.mxu0 0.0
        %2209 = vmatprep.subr.mxu0 0.0
        %2210 = vmatpush1.xpose.msra.mxu0 0.0
        %2211 = vmatprep.subr.mxu0 0.0
        %2212 = vmatpush1.xpose.msra.mxu0 0.0
        %2213 = vmatprep.subr.mxu0 0.0
        %2214 = vmatpush1.xpose.msra.mxu0 0.0
        %2215 = vmatprep.subr.mxu0 0.0
        %2216 = vmatpush1.xpose.msra.mxu0 0.0
        %2217 = vmatprep.subr.mxu0 0.0
        %2218 = vmatpush1.xpose.msra.mxu0 0.0
        %2219 = vmatprep.subr.mxu0 0.0
        %2220 = vmatpush1.xpose.msra.mxu0 0.0
        %2221 = vmatprep.subr.mxu0 0.0
        %2222 = vmatpush1.xpose.msra.mxu0 0.0
        %2223 = vmatprep.subr.mxu0 0.0
        %2224 = vmatpush1.xpose.msra.mxu0 0.0
        %2225 = vmatprep.subr.mxu0 0.0
        %2226 = vmatpush1.xpose.msra.mxu0 0.0
        %2227 = vmatprep.subr.mxu0 0.0
        %2228 = vmatpush1.xpose.msra.mxu0 0.0
        %2229 = vmatprep.subr.mxu0 0.0
        %2230 = vmatpush1.xpose.msra.mxu0 0.0
        %2231 = vmatprep.mubr.f32.mxu0 0.0
        %2232 = vmatmul.mubr.f32.gmra.mrb[0].mxu0 %v2163
        %v2233 = vpop.f32.mrb[0].mxu0
        %v2234 = vadd.f32 0.0, %v2233
        %v2235 = vpop.f32.mrb[0].mxu0
        %2236 = vdwg.mxu0
        %v2237 = vsel %vm881, %v2234, -1e+09
        %v2238 = vsel %vm1100, %v2237, -inf
        %2239 = vmax.xlane.f32.xlu0 %v2238
        %v2240 = vpop.xlane.xlu0 %2239
        %v2241 = vsub.f32 %v2237, %v2240
        %v2242 = vmul.f32 %v2241, 1.442695
        %v2243 = vpow.pop %v2242
        %v2244 = vsel %vm1100, %v2243, 0.0
        %2245 = vadd.xlane.f32.xlu0 %v2244
        %v2246 = vpop.xlane.xlu0 %2245
        %v2247 = vrcp.pop %v2246
        %v2248 = vmul.f32 %v2243, %v2247
        %2250 = vrot.lane.b32.xlu0 %v1919, 96
        %v2251 = vpop.permute.xlu0 %2250
        %v2254 = vsel %vm1100, %v2248, 0
        %2256 = vmatprep.subr.mxu0 0.0
        %2257 = vmatpush1.msra.mxu0 %v2251
        %2258 = vmatprep.subr.mxu0 0.0
        %2259 = vmatpush1.msra.mxu0 0.0
        %2260 = vmatprep.subr.mxu0 0.0
        %2261 = vmatpush1.msra.mxu0 0.0
        %2262 = vmatprep.subr.mxu0 0.0
        %2263 = vmatpush1.msra.mxu0 0.0
        %2264 = vmatprep.subr.mxu0 0.0
        %2265 = vmatpush1.msra.mxu0 0.0
        %2266 = vmatprep.subr.mxu0 0.0
        %2267 = vmatpush1.msra.mxu0 0.0
        %2268 = vmatprep.subr.mxu0 0.0
        %2269 = vmatpush1.msra.mxu0 0.0
        %2270 = vmatprep.subr.mxu0 0.0
        %2271 = vmatpush1.msra.mxu0 0.0
        %2272 = vmatprep.subr.mxu0 0.0
        %2273 = vmatpush1.msra.mxu0 0.0
        %2274 = vmatprep.subr.mxu0 0.0
        %2275 = vmatpush1.msra.mxu0 0.0
        %2276 = vmatprep.subr.mxu0 0.0
        %2277 = vmatpush1.msra.mxu0 0.0
        %2278 = vmatprep.subr.mxu0 0.0
        %2279 = vmatpush1.msra.mxu0 0.0
        %2280 = vmatprep.subr.mxu0 0.0
        %2281 = vmatpush1.msra.mxu0 0.0
        %2282 = vmatprep.subr.mxu0 0.0
        %2283 = vmatpush1.msra.mxu0 0.0
        %2284 = vmatprep.subr.mxu0 0.0
        %2285 = vmatpush1.msra.mxu0 0.0
        %2286 = vmatprep.subr.mxu0 0.0
        %2287 = vmatpush1.msra.mxu0 0.0
        %2288 = vmatprep.subr.mxu0 0.0
        %2289 = vmatpush1.msra.mxu0 0.0
        %2290 = vmatprep.subr.mxu0 0.0
        %2291 = vmatpush1.msra.mxu0 0.0
        %2292 = vmatprep.subr.mxu0 0.0
        %2293 = vmatpush1.msra.mxu0 0.0
        %2294 = vmatprep.subr.mxu0 0.0
        %2295 = vmatpush1.msra.mxu0 0.0
        %2296 = vmatprep.subr.mxu0 0.0
        %2297 = vmatpush1.msra.mxu0 0.0
        %2298 = vmatprep.subr.mxu0 0.0
        %2299 = vmatpush1.msra.mxu0 0.0
        %2300 = vmatprep.subr.mxu0 0.0
        %2301 = vmatpush1.msra.mxu0 0.0
        %2302 = vmatprep.subr.mxu0 0.0
        %2303 = vmatpush1.msra.mxu0 0.0
        %2304 = vmatprep.subr.mxu0 0.0
        %2305 = vmatpush1.msra.mxu0 0.0
        %2306 = vmatprep.subr.mxu0 0.0
        %2307 = vmatpush1.msra.mxu0 0.0
        %2308 = vmatprep.subr.mxu0 0.0
        %2309 = vmatpush1.msra.mxu0 0.0
        %2310 = vmatprep.subr.mxu0 0.0
        %2311 = vmatpush1.msra.mxu0 0.0
        %2312 = vmatprep.subr.mxu0 0.0
        %2313 = vmatpush1.msra.mxu0 0.0
        %2314 = vmatprep.subr.mxu0 0.0
        %2315 = vmatpush1.msra.mxu0 0.0
        %2316 = vmatprep.subr.mxu0 0.0
        %2317 = vmatpush1.msra.mxu0 0.0
        %2318 = vmatprep.subr.mxu0 0.0
        %2319 = vmatpush1.msra.mxu0 0.0
        %2320 = vmatprep.mubr.f32.mxu0 0.0
        %2321 = vmatmul.mubr.f32.gmra.mrb[0].mxu0 %v2254
        %v2322 = vpop.f32.mrb[0].mxu0
        %v2323 = vadd.f32 0.0, %v2322
        %v2324 = vpop.f32.mrb[0].mxu0
        %2325 = vdwg.mxu0
        %v2326 = vpack.c.bf16 %v2323, %v2323
        %v2331 = vunpack.c.l.b16 %v1928
        %v2332 = vunpack.c.l.b16 %v1929
        %v2333 = vunpack.c.l.b16 %v1930
        %v2334 = vunpack.c.l.b16 %v1931
        %v2335 = vpack.c.b16 %v2332, %v2331
        %v2336 = vpack.c.b16 %v2334, %v2333
        %v2340 = vsel %vm1024, %v2326, 0
        %2342 = vmatprep.subr.bf16.mxu0 0
        %2343 = vmatpush1.bf16.msra.mxu0 %v2335
        %2344 = vmatprep.subr.bf16.mxu0 0
        %2345 = vmatpush1.bf16.msra.mxu0 %v2336
        %2346 = vmatprep.subr.bf16.mxu0 0
        %2347 = vmatpush1.bf16.msra.mxu0 0
        %2348 = vmatprep.subr.bf16.mxu0 0
        %2349 = vmatpush1.bf16.msra.mxu0 0
        %2350 = vmatprep.subr.bf16.mxu0 0
        %2351 = vmatpush1.bf16.msra.mxu0 0
        %2352 = vmatprep.subr.bf16.mxu0 0
        %2353 = vmatpush1.bf16.msra.mxu0 0
        %2354 = vmatprep.subr.bf16.mxu0 0
        %2355 = vmatpush1.bf16.msra.mxu0 0
        %2356 = vmatprep.subr.bf16.mxu0 0
        %2357 = vmatpush1.bf16.msra.mxu0 0
        %2358 = vmatprep.subr.bf16.mxu0 0
        %2359 = vmatpush1.bf16.msra.mxu0 0
        %2360 = vmatprep.subr.bf16.mxu0 0
        %2361 = vmatpush1.bf16.msra.mxu0 0
        %2362 = vmatprep.subr.bf16.mxu0 0
        %2363 = vmatpush1.bf16.msra.mxu0 0
        %2364 = vmatprep.subr.bf16.mxu0 0
        %2365 = vmatpush1.bf16.msra.mxu0 0
        %2366 = vmatprep.subr.bf16.mxu0 0
        %2367 = vmatpush1.bf16.msra.mxu0 0
        %2368 = vmatprep.subr.bf16.mxu0 0
        %2369 = vmatpush1.bf16.msra.mxu0 0
        %2370 = vmatprep.subr.bf16.mxu0 0
        %2371 = vmatpush1.bf16.msra.mxu0 0
        %2372 = vmatprep.subr.bf16.mxu0 0
        %2373 = vmatpush1.bf16.msra.mxu0 0
        %2374 = vmatprep.mubr.bf16.mxu0 0
        %2375 = vmatmul.mubr.bf16.gmra.mrb[0].mxu0 %v2340
        %v2376 = vpop.f32.mrb[0].mxu0
        %v2377 = vadd.f32 0.0, %v2376
        %v2378 = vpop.f32.mrb[0].mxu0
        %v2379 = vpop.f32.mrb[0].mxu0
        %v2380 = vpop.f32.mrb[0].mxu0
        %2381 = vdwg.mxu0
        %v2382 = vadd.f32 %v2158, %v2377
        %v2383 = vadd.f32 %v1797, %v2382
        %s2384 = scalar_lea.vmem %s10, 1
        %v2385 = vld [vmem:[%s2384] sm:$0x1]
        %s2386 = scalar_lea.vmem %s11, 1
        %v2387 = vld [vmem:[%s2386] sm:$0x1]
        %v2388 = vsel %vm884, %v2383, 0.0
        %2389 = vadd.xlane.f32.xlu0 %v2388
        %v2390 = vpop.xlane.xlu0 %2389
        %v2391 = vmul.f32 %v2390, %v888
        %v2392 = vsub.f32 %v2383, %v2391
        %v2393 = vmul.f32 %v2392, %v2392
        %v2394 = vsel %vm884, %v2393, 0.0
        %2395 = vadd.xlane.f32.xlu0 %v2394
        %v2396 = vpop.xlane.xlu0 %2395
        %v2397 = vmul.f32 %v2396, %v888
        %v2398 = vadd.f32 %v2397, 1e-05
        %v2399 = vrsqrt.pop %v2398
        %v2400 = vmul.f32 %v2392, %v2399
        %v2402 = vlaneseq
        %v2403 = vshrl.u32 %v2402, 7
        %v2404 = vsub.s32 0, %v2403
        %v2405 = vrot.slane %v2385, %v2404
        %v2407 = vmul.f32 %v2400, %v2405
        %v2409 = vlaneseq
        %v2410 = vshrl.u32 %v2409, 7
        %v2411 = vsub.s32 0, %v2410
        %v2412 = vrot.slane %v2387, %v2411
        %v2414 = vadd.f32 %v2407, %v2412
        %s2415 = scalar_lea.vmem %s12, 64
        %v2416 = vld [vmem:[%s2415] sm:$0xff]
        %v2417 = vld [vmem:[%s2415 + $0x8] sm:$0xff]
        %v2418 = vld [vmem:[%s2415 + $0x10] sm:$0xff]
        %v2419 = vld [vmem:[%s2415 + $0x18] sm:$0xff]
        %v2420 = vld [vmem:[%s2415 + $0x20] sm:$0xff]
        %v2421 = vld [vmem:[%s2415 + $0x28] sm:$0xff]
        %v2422 = vld [vmem:[%s2415 + $0x30] sm:$0xff]
        %v2423 = vld [vmem:[%s2415 + $0x38] sm:$0xff]
        %v2424 = vpack.c.bf16 %v2414, %v2414
        %s2425 = scalar_lea.vmem %s13, 2
        %v2426 = vld [vmem:[%s2425] sm:$0x3]
        %v2428 = vlaneseq
        %v2429 = vshrl.u32 %v2428, 7
        %v2430 = vsub.s32 0, %v2429
        %v2431 = vrot.slane %v2426, %v2430
        %v2432 = vlaneseq
        %v2433 = vshrl.u32 %v2432, 7
        %v2434 = vsub.s32 1, %v2433
        %v2435 = vrot.slane %v2426, %v2434
        %v2446 = vunpack.c.l.b16 %v2416
        %v2447 = vunpack.c.h.b16 %v2416
        %v2448 = vunpack.c.l.b16 %v2417
        %v2449 = vunpack.c.h.b16 %v2417
        %v2450 = vunpack.c.l.b16 %v2418
        %v2451 = vunpack.c.h.b16 %v2418
        %v2452 = vunpack.c.l.b16 %v2419
        %v2453 = vunpack.c.h.b16 %v2419
        %v2454 = vunpack.c.l.b16 %v2420
        %v2455 = vunpack.c.h.b16 %v2420
        %v2456 = vunpack.c.l.b16 %v2421
        %v2457 = vunpack.c.h.b16 %v2421
        %v2458 = vunpack.c.l.b16 %v2422
        %v2459 = vunpack.c.h.b16 %v2422
        %v2460 = vunpack.c.l.b16 %v2423
        %v2461 = vunpack.c.h.b16 %v2423
        %v2462 = vpack.c.b16 %v2448, %v2446
        %v2463 = vpack.c.b16 %v2449, %v2447
        %v2464 = vpack.c.b16 %v2452, %v2450
        %v2465 = vpack.c.b16 %v2453, %v2451
        %v2466 = vpack.c.b16 %v2456, %v2454
        %v2467 = vpack.c.b16 %v2457, %v2455
        %v2468 = vpack.c.b16 %v2460, %v2458
        %v2469 = vpack.c.b16 %v2461, %v2459
        %v2479 = vsel %vm884, %v2424, 0
        %2481 = vmatprep.subr.bf16.mxu0 %v2463
        %2482 = vmatpush1.bf16.msra.mxu0 %v2462
        %2483 = vmatprep.subr.bf16.mxu0 %v2465
        %2484 = vmatpush1.bf16.msra.mxu0 %v2464
        %2485 = vmatprep.subr.bf16.mxu0 %v2467
        %2486 = vmatpush1.bf16.msra.mxu0 %v2466
        %2487 = vmatprep.subr.bf16.mxu0 %v2469
        %2488 = vmatpush1.bf16.msra.mxu0 %v2468
        %2489 = vmatprep.subr.bf16.mxu0 0
        %2490 = vmatpush1.bf16.msra.mxu0 0
        %2491 = vmatprep.subr.bf16.mxu0 0
        %2492 = vmatpush1.bf16.msra.mxu0 0
        %2493 = vmatprep.subr.bf16.mxu0 0
        %2494 = vmatpush1.bf16.msra.mxu0 0
        %2495 = vmatprep.subr.bf16.mxu0 0
        %2496 = vmatpush1.bf16.msra.mxu0 0
        %2497 = vmatprep.subr.bf16.mxu0 0
        %2498 = vmatpush1.bf16.msra.mxu0 0
        %2499 = vmatprep.subr.bf16.mxu0 0
        %2500 = vmatpush1.bf16.msra.mxu0 0
        %2501 = vmatprep.subr.bf16.mxu0 0
        %2502 = vmatpush1.bf16.msra.mxu0 0
        %2503 = vmatprep.subr.bf16.mxu0 0
        %2504 = vmatpush1.bf16.msra.mxu0 0
        %2505 = vmatprep.subr.bf16.mxu0 0
        %2506 = vmatpush1.bf16.msra.mxu0 0
        %2507 = vmatprep.subr.bf16.mxu0 0
        %2508 = vmatpush1.bf16.msra.mxu0 0
        %2509 = vmatprep.subr.bf16.mxu0 0
        %2510 = vmatpush1.bf16.msra.mxu0 0
        %2511 = vmatprep.subr.bf16.mxu0 0
        %2512 = vmatpush1.bf16.msra.mxu0 0
        %2513 = vmatprep.mubr.bf16.mxu0 0
        %2514 = vmatmul.mubr.bf16.gmra.mrb[0].mxu0 %v2479
        %v2515 = vpop.f32.mrb[0].mxu0
        %v2516 = vadd.f32 %v2431, %v2515
        %v2517 = vpop.f32.mrb[0].mxu0
        %v2518 = vadd.f32 %v2435, %v2517
        %v2519 = vpop.f32.mrb[0].mxu0
        %v2520 = vpop.f32.mrb[0].mxu0
        %2521 = vdwg.mxu0
        %v2522 = vmul.f32 %v2516, 0.5
        %v2523 = vmul.f32 %v2518, 0.5
        %v2524 = vmul.f32 %v2516, 0.044715
        %v2525 = vmul.f32 %v2518, 0.044715
        %v2526 = vmul.f32 %v2524, %v2516
        %v2527 = vmul.f32 %v2525, %v2518
        %v2528 = vmul.f32 %v2526, %v2516
        %v2529 = vmul.f32 %v2527, %v2518
        %v2530 = vadd.f32 %v2516, %v2528
        %v2531 = vadd.f32 %v2518, %v2529
        %v2532 = vmul.f32 %v2530, 0.7978846
        %v2533 = vmul.f32 %v2531, 0.7978846
        %v2534 = vtanh.pop %v2532
        %v2535 = vtanh.pop %v2533
        %v2536 = vadd.f32 %v2534, 1.0
        %v2537 = vadd.f32 %v2535, 1.0
        %v2538 = vmul.f32 %v2522, %v2536
        %v2539 = vmul.f32 %v2523, %v2537
        %s2540 = scalar_lea.vmem %s14, 128
        %v2541 = vld [vmem:[%s2540] sm:$0xf]
        %v2542 = vld [vmem:[%s2540 + $0x4] sm:$0xf]
        %v2543 = vld [vmem:[%s2540 + $0x8] sm:$0xf]
        %v2544 = vld [vmem:[%s2540 + $0xc] sm:$0xf]
        %v2545 = vld [vmem:[%s2540 + $0x10] sm:$0xf]
        %v2546 = vld [vmem:[%s2540 + $0x14] sm:$0xf]
        %v2547 = vld [vmem:[%s2540 + $0x18] sm:$0xf]
        %v2548 = vld [vmem:[%s2540 + $0x1c] sm:$0xf]
        %v2549 = vld [vmem:[%s2540 + $0x20] sm:$0xf]
        %v2550 = vld [vmem:[%s2540 + $0x24] sm:$0xf]
        %v2551 = vld [vmem:[%s2540 + $0x28] sm:$0xf]
        %v2552 = vld [vmem:[%s2540 + $0x2c] sm:$0xf]
        %v2553 = vld [vmem:[%s2540 + $0x30] sm:$0xf]
        %v2554 = vld [vmem:[%s2540 + $0x34] sm:$0xf]
        %v2555 = vld [vmem:[%s2540 + $0x38] sm:$0xf]
        %v2556 = vld [vmem:[%s2540 + $0x3c] sm:$0xf]
        %v2557 = vld [vmem:[%s2540 + $0x40] sm:$0xf]
        %v2558 = vld [vmem:[%s2540 + $0x44] sm:$0xf]
        %v2559 = vld [vmem:[%s2540 + $0x48] sm:$0xf]
        %v2560 = vld [vmem:[%s2540 + $0x4c] sm:$0xf]
        %v2561 = vld [vmem:[%s2540 + $0x50] sm:$0xf]
        %v2562 = vld [vmem:[%s2540 + $0x54] sm:$0xf]
        %v2563 = vld [vmem:[%s2540 + $0x58] sm:$0xf]
        %v2564 = vld [vmem:[%s2540 + $0x5c] sm:$0xf]
        %v2565 = vld [vmem:[%s2540 + $0x60] sm:$0xf]
        %v2566 = vld [vmem:[%s2540 + $0x64] sm:$0xf]
        %v2567 = vld [vmem:[%s2540 + $0x68] sm:$0xf]
        %v2568 = vld [vmem:[%s2540 + $0x6c] sm:$0xf]
        %v2569 = vld [vmem:[%s2540 + $0x70] sm:$0xf]
        %v2570 = vld [vmem:[%s2540 + $0x74] sm:$0xf]
        %v2571 = vld [vmem:[%s2540 + $0x78] sm:$0xf]
        %v2572 = vld [vmem:[%s2540 + $0x7c] sm:$0xf]
        %v2573 = vpack.c.bf16 %v2538, %v2538
        %v2574 = vpack.c.bf16 %v2539, %v2539
        %v2607 = vunpack.c.l.b16 %v2541
        %v2608 = vunpack.c.l.b16 %v2542
        %v2609 = vunpack.c.l.b16 %v2543
        %v2610 = vunpack.c.l.b16 %v2544
        %v2611 = vunpack.c.l.b16 %v2545
        %v2612 = vunpack.c.l.b16 %v2546
        %v2613 = vunpack.c.l.b16 %v2547
        %v2614 = vunpack.c.l.b16 %v2548
        %v2615 = vunpack.c.l.b16 %v2549
        %v2616 = vunpack.c.l.b16 %v2550
        %v2617 = vunpack.c.l.b16 %v2551
        %v2618 = vunpack.c.l.b16 %v2552
        %v2619 = vunpack.c.l.b16 %v2553
        %v2620 = vunpack.c.l.b16 %v2554
        %v2621 = vunpack.c.l.b16 %v2555
        %v2622 = vunpack.c.l.b16 %v2556
        %v2623 = vunpack.c.l.b16 %v2557
        %v2624 = vunpack.c.l.b16 %v2558
        %v2625 = vunpack.c.l.b16 %v2559
        %v2626 = vunpack.c.l.b16 %v2560
        %v2627 = vunpack.c.l.b16 %v2561
        %v2628 = vunpack.c.l.b16 %v2562
        %v2629 = vunpack.c.l.b16 %v2563
        %v2630 = vunpack.c.l.b16 %v2564
        %v2631 = vunpack.c.l.b16 %v2565
        %v2632 = vunpack.c.l.b16 %v2566
        %v2633 = vunpack.c.l.b16 %v2567
        %v2634 = vunpack.c.l.b16 %v2568
        %v2635 = vunpack.c.l.b16 %v2569
        %v2636 = vunpack.c.l.b16 %v2570
        %v2637 = vunpack.c.l.b16 %v2571
        %v2638 = vunpack.c.l.b16 %v2572
        %v2639 = vpack.c.b16 %v2608, %v2607
        %v2640 = vpack.c.b16 %v2610, %v2609
        %v2641 = vpack.c.b16 %v2612, %v2611
        %v2642 = vpack.c.b16 %v2614, %v2613
        %v2643 = vpack.c.b16 %v2616, %v2615
        %v2644 = vpack.c.b16 %v2618, %v2617
        %v2645 = vpack.c.b16 %v2620, %v2619
        %v2646 = vpack.c.b16 %v2622, %v2621
        %v2647 = vpack.c.b16 %v2624, %v2623
        %v2648 = vpack.c.b16 %v2626, %v2625
        %v2649 = vpack.c.b16 %v2628, %v2627
        %v2650 = vpack.c.b16 %v2630, %v2629
        %v2651 = vpack.c.b16 %v2632, %v2631
        %v2652 = vpack.c.b16 %v2634, %v2633
        %v2653 = vpack.c.b16 %v2636, %v2635
        %v2654 = vpack.c.b16 %v2638, %v2637
        %2671 = vmatprep.subr.bf16.mxu0 0
        %2672 = vmatpush1.bf16.msra.mxu0 %v2639
        %2673 = vmatprep.subr.bf16.mxu0 0
        %2674 = vmatpush1.bf16.msra.mxu0 %v2640
        %2675 = vmatprep.subr.bf16.mxu0 0
        %2676 = vmatpush1.bf16.msra.mxu0 %v2641
        %2677 = vmatprep.subr.bf16.mxu0 0
        %2678 = vmatpush1.bf16.msra.mxu0 %v2642
        %2679 = vmatprep.subr.bf16.mxu0 0
        %2680 = vmatpush1.bf16.msra.mxu0 %v2643
        %2681 = vmatprep.subr.bf16.mxu0 0
        %2682 = vmatpush1.bf16.msra.mxu0 %v2644
        %2683 = vmatprep.subr.bf16.mxu0 0
        %2684 = vmatpush1.bf16.msra.mxu0 %v2645
        %2685 = vmatprep.subr.bf16.mxu0 0
        %2686 = vmatpush1.bf16.msra.mxu0 %v2646
        %2687 = vmatprep.subr.bf16.mxu0 0
        %2688 = vmatpush1.bf16.msra.mxu0 %v2647
        %2689 = vmatprep.subr.bf16.mxu0 0
        %2690 = vmatpush1.bf16.msra.mxu0 %v2648
        %2691 = vmatprep.subr.bf16.mxu0 0
        %2692 = vmatpush1.bf16.msra.mxu0 %v2649
        %2693 = vmatprep.subr.bf16.mxu0 0
        %2694 = vmatpush1.bf16.msra.mxu0 %v2650
        %2695 = vmatprep.subr.bf16.mxu0 0
        %2696 = vmatpush1.bf16.msra.mxu0 %v2651
        %2697 = vmatprep.subr.bf16.mxu0 0
        %2698 = vmatpush1.bf16.msra.mxu0 %v2652
        %2699 = vmatprep.subr.bf16.mxu0 0
        %2700 = vmatpush1.bf16.msra.mxu0 %v2653
        %2701 = vmatprep.subr.bf16.mxu0 0
        %2702 = vmatpush1.bf16.msra.mxu0 %v2654
        %2703 = vmatprep.mubr.bf16.mxu0 %v2574
        %2704 = vmatmul.mubr.bf16.gmra.mrb[0].mxu0 %v2573
        %v2705 = vpop.f32.mrb[0].mxu0
        %v2706 = vadd.f32 0.0, %v2705
        %v2707 = vpop.f32.mrb[0].mxu0
        %v2708 = vpop.f32.mrb[0].mxu0
        %v2709 = vpop.f32.mrb[0].mxu0
        %2710 = vdwg.mxu0
        %v2711 = vadd.f32 %v2383, %v2706
        %s2712 = scalar_lea.vmem %s15, 1
        %v2713 = vld [vmem:[%s2712] sm:$0x1]
        %v2715 = vlaneseq
        %v2716 = vshrl.u32 %v2715, 7
        %v2717 = vsub.s32 0, %v2716
        %v2718 = vrot.slane %v2713, %v2717
        %v2720 = vadd.f32 %v2711, %v2718
        %v2721 = vld [vmem:[%s16] sm:$0x1]
        %v2722 = vld [vmem:[%s17] sm:$0x1]
        %v2723 = vsel %vm884, %v2720, 0.0
        %2724 = vadd.xlane.f32.xlu0 %v2723
        %v2725 = vpop.xlane.xlu0 %2724
        %v2726 = vmul.f32 %v2725, %v888
        %v2727 = vsub.f32 %v2720, %v2726
        %v2728 = vmul.f32 %v2727, %v2727
        %v2729 = vsel %vm884, %v2728, 0.0
        %2730 = vadd.xlane.f32.xlu0 %v2729
        %v2731 = vpop.xlane.xlu0 %2730
        %v2732 = vmul.f32 %v2731, %v888
        %v2733 = vadd.f32 %v2732, 1e-05
        %v2734 = vrsqrt.pop %v2733
        %v2735 = vmul.f32 %v2727, %v2734
        %v2737 = vlaneseq
        %v2738 = vshrl.u32 %v2737, 7
        %v2739 = vsub.s32 0, %v2738
        %v2740 = vrot.slane %v2721, %v2739
        %v2742 = vmul.f32 %v2735, %v2740
        %v2744 = vlaneseq
        %v2745 = vshrl.u32 %v2744, 7
        %v2746 = vsub.s32 0, %v2745
        %v2747 = vrot.slane %v2722, %v2746
        %v2749 = vadd.f32 %v2742, %v2747
        %v2750 = vld [vmem:[%s18] sm:$0xf]
        %v2751 = vld [vmem:[%s18 + $0x4] sm:$0xf]
        %v2752 = vld [vmem:[%s18 + $0x8] sm:$0xf]
        %v2753 = vld [vmem:[%s18 + $0xc] sm:$0xf]
        %v2754 = vld [vmem:[%s18 + $0x10] sm:$0xf]
        %v2755 = vld [vmem:[%s18 + $0x14] sm:$0xf]
        %v2756 = vld [vmem:[%s18 + $0x18] sm:$0xf]
        %v2757 = vld [vmem:[%s18 + $0x1c] sm:$0xf]
        %v2758 = vpack.c.bf16 %v2749, %v2749
        %v2767 = vunpack.c.l.b16 %v2750
        %v2768 = vunpack.c.l.b16 %v2751
        %v2769 = vunpack.c.l.b16 %v2752
        %v2770 = vunpack.c.l.b16 %v2753
        %v2771 = vunpack.c.l.b16 %v2754
        %v2772 = vunpack.c.l.b16 %v2755
        %v2773 = vunpack.c.l.b16 %v2756
        %v2774 = vunpack.c.l.b16 %v2757
        %v2775 = vpack.c.b16 %v2768, %v2767
        %v2776 = vpack.c.b16 %v2770, %v2769
        %v2777 = vpack.c.b16 %v2772, %v2771
        %v2778 = vpack.c.b16 %v2774, %v2773
        %v2784 = vsel %vm884, %v2758, 0
        %2786 = vmatprep.subr.bf16.mxu0 0
        %2787 = vmatpush1.bf16.msra.mxu0 %v2775
        %2788 = vmatprep.subr.bf16.mxu0 0
        %2789 = vmatpush1.bf16.msra.mxu0 %v2776
        %2790 = vmatprep.subr.bf16.mxu0 0
        %2791 = vmatpush1.bf16.msra.mxu0 %v2777
        %2792 = vmatprep.subr.bf16.mxu0 0
        %2793 = vmatpush1.bf16.msra.mxu0 %v2778
        %2794 = vmatprep.subr.bf16.mxu0 0
        %2795 = vmatpush1.bf16.msra.mxu0 0
        %2796 = vmatprep.subr.bf16.mxu0 0
        %2797 = vmatpush1.bf16.msra.mxu0 0
        %2798 = vmatprep.subr.bf16.mxu0 0
        %2799 = vmatpush1.bf16.msra.mxu0 0
        %2800 = vmatprep.subr.bf16.mxu0 0
        %2801 = vmatpush1.bf16.msra.mxu0 0
        %2802 = vmatprep.subr.bf16.mxu0 0
        %2803 = vmatpush1.bf16.msra.mxu0 0
        %2804 = vmatprep.subr.bf16.mxu0 0
        %2805 = vmatpush1.bf16.msra.mxu0 0
        %2806 = vmatprep.subr.bf16.mxu0 0
        %2807 = vmatpush1.bf16.msra.mxu0 0
        %2808 = vmatprep.subr.bf16.mxu0 0
        %2809 = vmatpush1.bf16.msra.mxu0 0
        %2810 = vmatprep.subr.bf16.mxu0 0
        %2811 = vmatpush1.bf16.msra.mxu0 0
        %2812 = vmatprep.subr.bf16.mxu0 0
        %2813 = vmatpush1.bf16.msra.mxu0 0
        %2814 = vmatprep.subr.bf16.mxu0 0
        %2815 = vmatpush1.bf16.msra.mxu0 0
        %2816 = vmatprep.subr.bf16.mxu0 0
        %2817 = vmatpush1.bf16.msra.mxu0 0
        %2818 = vmatprep.mubr.bf16.mxu0 0
        %2819 = vmatmul.mubr.bf16.gmra.mrb[0].mxu0 %v2784
        %v2820 = vpop.f32.mrb[0].mxu0
        %v2821 = vadd.f32 0.0, %v2820
        %v2822 = vpop.f32.mrb[0].mxu0
        %v2823 = vpop.f32.mrb[0].mxu0
        %v2824 = vpop.f32.mrb[0].mxu0
        %2825 = vdwg.mxu0
        %s2826 = sld [smem:[#allocation2 + %s715]]
        %vm2827 = vcmp.ge.s32.totalorder %v763, 0
        %vm2828 = vcmp.lt.s32.totalorder %v763, 4
        %vm2829 = vmand %vm2827, %vm2828
        %v2830 = vstv %s2826
        %v2831 = vsel %vm2829, %v2830, 0.0
        %s2832 = sld [smem:[#allocation2 + %s720]]
        %vm2833 = vcmp.ge.s32.totalorder %v763, 4
        %vm2834 = vcmp.lt.s32.totalorder %v763, 8
        %vm2835 = vmand %vm2833, %vm2834
        %v2836 = vstv %s2832
        %v2837 = vsel %vm2835, %v2836, %v2831
        %v2838 = vmul.f32 %v2837, 0.001
        %v2839 = vmul.f32 %v2821, %v2838
        %v2840 = vld [vmem:[%s19] sm:$0xff]
        %v2841 = vld [vmem:[%s19 + $0x8] sm:$0xff]
        %v2842 = vld [vmem:[%s19 + $0x10] sm:$0xff]
        %v2843 = vld [vmem:[%s19 + $0x18] sm:$0xff]
        %v2844 = vld [vmem:[%s19 + $0x20] sm:$0xff]
        %v2845 = vld [vmem:[%s19 + $0x28] sm:$0xff]
        %v2846 = vld [vmem:[%s19 + $0x30] sm:$0xff]
        %v2847 = vld [vmem:[%s19 + $0x38] sm:$0xff]
        %v2848 = vld [vmem:[%s20] sm:$0xff]
        %v2849 = vpack.c.bf16 %v2839, %v2839
        %v2851 = vunpack.c.l.b16 %v2848
        %v2852 = vunpack.c.h.b16 %v2848
        %v2853 = vpack.c.b16 %v2851, %v2851
        %v2854 = vpack.c.b16 %v2852, %v2852
        %v2856 = vsel %vm1100, %v2849, 0
        %vm2858 = vcmask 1043456
        %v2860 = vsel %vm2858, %v2853, 0
        %v2863 = vsel %vm2858, %v2854, 0
        %2865 = vmatprep.subr.bf16.mxu0 %v2863
        %2866 = vmatpush1.bf16.msra.mxu0 %v2860
        %2867 = vmatprep.subr.bf16.mxu0 0
        %2868 = vmatpush1.bf16.msra.mxu0 0
        %2869 = vmatprep.subr.bf16.mxu0 0
        %2870 = vmatpush1.bf16.msra.mxu0 0
        %2871 = vmatprep.subr.bf16.mxu0 0
        %2872 = vmatpush1.bf16.msra.mxu0 0
        %2873 = vmatprep.subr.bf16.mxu0 0
        %2874 = vmatpush1.bf16.msra.mxu0 0
        %2875 = vmatprep.subr.bf16.mxu0 0
        %2876 = vmatpush1.bf16.msra.mxu0 0
        %2877 = vmatprep.subr.bf16.mxu0 0
        %2878 = vmatpush1.bf16.msra.mxu0 0
        %2879 = vmatprep.subr.bf16.mxu0 0
        %2880 = vmatpush1.bf16.msra.mxu0 0
        %2881 = vmatprep.subr.bf16.mxu0 0
        %2882 = vmatpush1.bf16.msra.mxu0 0
        %2883 = vmatprep.subr.bf16.mxu0 0
        %2884 = vmatpush1.bf16.msra.mxu0 0
        %2885 = vmatprep.subr.bf16.mxu0 0
        %2886 = vmatpush1.bf16.msra.mxu0 0
        %2887 = vmatprep.subr.bf16.mxu0 0
        %2888 = vmatpush1.bf16.msra.mxu0 0
        %2889 = vmatprep.subr.bf16.mxu0 0
        %2890 = vmatpush1.bf16.msra.mxu0 0
        %2891 = vmatprep.subr.bf16.mxu0 0
        %2892 = vmatpush1.bf16.msra.mxu0 0
        %2893 = vmatprep.subr.bf16.mxu0 0
        %2894 = vmatpush1.bf16.msra.mxu0 0
        %2895 = vmatprep.subr.bf16.mxu0 0
        %2896 = vmatpush1.bf16.msra.mxu0 0
        %2897 = vmatprep.mubr.bf16.mxu0 0
        %2898 = vmatmul.mubr.bf16.gmra.mrb[0].mxu0 %v2856
        %v2899 = vpop.f32.mrb[0].mxu0
        %v2900 = vadd.f32 0.0, %v2899
        %v2901 = vpop.f32.mrb[0].mxu0
        %v2902 = vadd.f32 0.0, %v2901
        %v2903 = vpop.f32.mrb[0].mxu0
        %v2904 = vpop.f32.mrb[0].mxu0
        %2905 = vdwg.mxu0
        %v2914 = vunpack.c.l.b16 %v2840
        %v2915 = vunpack.c.h.b16 %v2840
        %v2916 = vunpack.c.l.b16 %v2841
        %v2917 = vunpack.c.h.b16 %v2841
        %v2918 = vunpack.c.l.b16 %v2842
        %v2919 = vunpack.c.h.b16 %v2842
        %v2920 = vunpack.c.l.b16 %v2843
        %v2921 = vunpack.c.h.b16 %v2843
        %v2922 = vunpack.c.l.b16 %v2844
        %v2923 = vunpack.c.h.b16 %v2844
        %v2924 = vunpack.c.l.b16 %v2845
        %v2925 = vunpack.c.h.b16 %v2845
        %v2926 = vunpack.c.l.b16 %v2846
        %v2927 = vunpack.c.h.b16 %v2846
        %v2928 = vunpack.c.l.b16 %v2847
        %v2929 = vunpack.c.h.b16 %v2847
        %v2930 = vpack.c.b16 %v2916, %v2914
        %v2931 = vpack.c.b16 %v2917, %v2915
        %v2932 = vpack.c.b16 %v2920, %v2918
        %v2933 = vpack.c.b16 %v2921, %v2919
        %v2934 = vpack.c.b16 %v2924, %v2922
        %v2935 = vpack.c.b16 %v2925, %v2923
        %v2936 = vpack.c.b16 %v2928, %v2926
        %v2937 = vpack.c.b16 %v2929, %v2927
        %2946 = vmatprep.subr.bf16.mxu0 %v2931
        %2947 = vmatpush1.bf16.msra.mxu0 %v2930
        %2948 = vmatprep.subr.bf16.mxu0 %v2933
        %2949 = vmatpush1.bf16.msra.mxu0 %v2932
        %2950 = vmatprep.subr.bf16.mxu0 %v2935
        %2951 = vmatpush1.bf16.msra.mxu0 %v2934
        %2952 = vmatprep.subr.bf16.mxu0 %v2937
        %2953 = vmatpush1.bf16.msra.mxu0 %v2936
        %2954 = vmatprep.subr.bf16.mxu0 0
        %2955 = vmatpush1.bf16.msra.mxu0 0
        %2956 = vmatprep.subr.bf16.mxu0 0
        %2957 = vmatpush1.bf16.msra.mxu0 0
        %2958 = vmatprep.subr.bf16.mxu0 0
        %2959 = vmatpush1.bf16.msra.mxu0 0
        %2960 = vmatprep.subr.bf16.mxu0 0
        %2961 = vmatpush1.bf16.msra.mxu0 0
        %2962 = vmatprep.subr.bf16.mxu0 0
        %2963 = vmatpush1.bf16.msra.mxu0 0
        %2964 = vmatprep.subr.bf16.mxu0 0
        %2965 = vmatpush1.bf16.msra.mxu0 0
        %2966 = vmatprep.subr.bf16.mxu0 0
        %2967 = vmatpush1.bf16.msra.mxu0 0
        %2968 = vmatprep.subr.bf16.mxu0 0
        %2969 = vmatpush1.bf16.msra.mxu0 0
        %2970 = vmatprep.subr.bf16.mxu0 0
        %2971 = vmatpush1.bf16.msra.mxu0 0
        %2972 = vmatprep.subr.bf16.mxu0 0
        %2973 = vmatpush1.bf16.msra.mxu0 0
        %2974 = vmatprep.subr.bf16.mxu0 0
        %2975 = vmatpush1.bf16.msra.mxu0 0
        %2976 = vmatprep.subr.bf16.mxu0 0
        %2977 = vmatpush1.bf16.msra.mxu0 0
        %2978 = vmatprep.mubr.bf16.mxu0 0
        %2979 = vmatmul.mubr.bf16.gmra.mrb[0].mxu0 %v2784
        %v2980 = vpop.f32.mrb[0].mxu0
        %v2981 = vadd.f32 %v2900, %v2980
        %v2982 = vpop.f32.mrb[0].mxu0
        %v2983 = vadd.f32 %v2902, %v2982
        %v2984 = vpop.f32.mrb[0].mxu0
        %v2985 = vpop.f32.mrb[0].mxu0
        %2986 = vdwg.mxu0
        %2987 = vst [vmem:[%s700] sm:$0xff] %v2981
        %2988 = vst [vmem:[%s700 + $0x8] sm:$0xff] %v2983
        %v2989 = vmax.f32 %v2981, %v2983
        %2990 = vmax.xlane.f32.xlu0 %v2989
        %v2991 = vpop.xlane.xlu0 %2990
        %v2992 = vsub.f32 %v2981, %v2991
        %v2993 = vsub.f32 %v2983, %v2991
        %v2994 = vmul.f32 %v2992, 1.442695
        %v2995 = vpow.pop %v2994
        %v2996 = vmul.f32 %v2993, 1.442695
        %v2997 = vpow.pop %v2996
        %v2998 = vadd.f32 %v2995, %v2997
        %2999 = vadd.xlane.f32.xlu0 %v2998
        %v3000 = vpop.xlane.xlu0 %2999
        %v3001 = vlog2.pop %v3000
        %v3002 = vmul.f32 %v3001, 0.6931472
        %v3003 = vadd.f32 %v2991, %v3002
        %vm3004 = vcmp.eq.s32.totalorder %v763, %v761
        %vm3005 = vcmp.eq.s32.totalorder %v764, %v761
        %v3006 = vsel %vm3004, %v2981, 0.0
        %v3007 = vsel %vm3005, %v2983, 0.0
        %v3008 = vadd.f32 %v3006, %v3007
        %3009 = vadd.xlane.f32.xlu0 %v3008
        %v3010 = vpop.xlane.xlu0 %3009
        %v3011 = vsub.f32 %v3003, %v3010
        %vm3012 = vcmp.lt.s32.totalorder %v714, 7
        %v3013 = vsel %vm3012, %v3011, 0.0
        %vm3014 = vcmask 7168
        %v3015 = vsel %vm3014, %v3013, 0.0
        %3016 = vadd.xlane.f32.xlu0 %v3015
        %v3017 = vpop.xlane.xlu0 %3016
        %v3018 = vrot.slane %v3017, 4
        %v3019 = vadd.f32 %v3017, %v3018
        %v3020 = vrot.slane %v3019, 2
        %v3021 = vadd.f32 %v3019, %v3020
        %v3022 = vrot.slane %v3021, 1
        %v3023 = vadd.f32 %v3021, %v3022
        %s3024 = vtos %v3023
        %v3025 = vstv %s3024
        %vm3026 = vcmask 0
        %3027 = vst.msk [vmem:[%s711] sm:$0x1] %vm3026, %v3025
        %s3028 = sand.u32 %s493, 1
        %s3029 = scalar_lea.sflag [#allocation3], %s3028
        %s3030 = sand.u32 %s493, 1
        %s3031 = smul.addr %s3030, 16
        %s3032 = scalar_lea.vmem [#allocation7], %s3031
        %p3033 = scmp.lt.s32.totalorder %s39, 1
        %s3034 = scalar_select %p3033, %s39, 1
        %s3035 = scalar_lea.vmem %s22, %s3034
        // Predicated region
        $region113: #{forward.1} parent=103 // pred_check
          %p3036 = pneg %p503
        $region114: #{forward.1} parent=103 // pred_check_branch
          %3038 = sbr.rel (%p3036) target = $region116
        $region115: #{forward.1} parent=103 // pred_region
          %s3040 = ssub.s32 256, 256
          %3041 = vsyncadd %s3029, %s3040
          %s3042 = smul.addr %s39, 2
          %s3043 = smul.addr %s3042, 128
          %s3044 = scalar_lea.hbm %s21, %s3043
          %s3046 = sshll.u32 %s3032, 4
          %s3047 = int_to_ptr.vmem [resolvable:$true] %s3046
          %3049 = dma.vmem_to_hbm [thread:$0]  %s3047, 256, %s3044, %s3029
        $region116: #{forward.1} parent=103 // pred_fallthru
          _
        // Predicated region
        $region117: #{forward.1} parent=103 // pred_check
          %p3050 = pneg %p529
        $region118: #{forward.1} parent=103 // pred_check_branch
          %3052 = sbr.rel (%p3050) target = $region120
        $region119: #{forward.1} parent=103 // pred_region
          _
        $region120: #{forward.1} parent=103 // pred_fallthru
          _
      $region104: #{forward.1} parent=5 // pred_fallthru
        _
      %p3053 = scmp.le.s32.totalorder 2, %s34
      // Predicated region
      $region121: #{forward.1} parent=5 // pred_check
        %p3054 = pneg %p3053
      $region122: #{forward.1} parent=5 // pred_check_branch
        %3056 = sbr.rel (%p3054) target = $region124
      $region123: #{forward.1} parent=5 // pred_region
        %s3057 = ssub.s32 %s34, 2
        // Predicated region
        $region125: #{forward.1} parent=123 // pred_check
          %p3058 = pneg %p509
        $region126: #{forward.1} parent=123 // pred_check_branch
          %3060 = sbr.rel (%p3058) target = $region128
        $region127: #{forward.1} parent=123 // pred_region
          %s3061 = sand.u32 %s494, 1
          %s3062 = scalar_lea.sflag [#allocation3], %s3061
          %s3063 = sand.u32 %s494, 1
          %s3064 = smul.addr %s3063, 16
          %s3065 = scalar_lea.vmem [#allocation7], %s3064
          %3066 = dma.done %s3062, 256
        $region128: #{forward.1} parent=123 // pred_fallthru
          _
        // Predicated region
        $region129: #{forward.1} parent=123 // pred_check
          %p3067 = pneg %p535
        $region130: #{forward.1} parent=123 // pred_check_branch
          %3069 = sbr.rel (%p3067) target = $region132
        $region131: #{forward.1} parent=123 // pred_region
          %p3070 = scmp.lt.s32.totalorder %s40, 1
          %s3071 = scalar_select %p3070, %s40, 1
          %s3072 = scalar_lea.vmem %s22, %s3071
        $region132: #{forward.1} parent=123 // pred_fallthru
          _
      $region124: #{forward.1} parent=5 // pred_fallthru
        _
    $region6: #{forward.1} parent=1 // loop_footer
      %s38 = sadd.s32 1, %s34
    $region7: #{forward.1} parent=1 // loop_footer_branch
      %33 = sbr.rel target = $region3
    $region8: #{forward.1} parent=1 // loop_exit
      _
    %3073 = vsyncpa [#allocation3], 1
    %s3074 = scalar_lea.sflag [#allocation3], 1
    %3075 = vsyncpa %s3074, 1
    %3076 = vsyncpa [#allocation4], 1
    %s3077 = scalar_lea.sflag [#allocation4], 1
    %3078 = vsyncpa %s3077, 1
    %3079 = vsyncpa [#allocation6], 1

</llo_original>
